<compile_context>
chip_gen: v6e
topology: v6e:2x2x1
jax: 0.10.0
libtpu: 0.0.40
codegen_flags: <defaults>
</compile_context>

<pallas_src>
import jax
import jax.numpy as jnp
from jax.experimental import pallas as pl
from jax.experimental.pallas import tpu as pltpu

LN_EPS = 1e-5
BN_EPS = 1e-5
_INV_SQRT2 = 0.7071067811865476


# --------------------------- in-kernel helpers ----------------------------- #
def _erf(z):
    """Abramowitz & Stegun 7.1.26 erf (|abs err| < 1.5e-7); exp -> EUP slot."""
    a1, a2, a3, a4, a5 = (0.254829592, -0.284496736, 1.421413741,
                          -1.453152027, 1.061405429)
    p = 0.3275911
    az = jnp.abs(z)
    t = 1.0 / (1.0 + p * az)
    poly = ((((a5 * t + a4) * t + a3) * t + a2) * t + a1) * t
    e = 1.0 - poly * jnp.exp(-az * az)
    return jnp.where(z < 0.0, -e, e)


def _gelu(z):                      # exact (erf) GELU, matches nn.GELU()
    return 0.5 * z * (1.0 + _erf(z * _INV_SQRT2))


# ------------------------- parameter prep / packing ------------------------ #
def pack_params(layer_params):
    """Fold + pack raw per-layer params into depth-stacked arrays."""
    def stack(fn):
        return jnp.stack([fn(p) for p in layer_params], axis=0)

    def fold_mvec(p):
        # eval-mode BN -> scale/bias; (3,1) conv collapses to center tap.
        bn_scale = p["bn_g"][0] * jax.lax.rsqrt(p["bn_v"][0] + BN_EPS)
        bn_bias = p["bn_b"][0] - p["bn_m"][0] * bn_scale
        taps = jnp.stack([p["wch"][0],
                          p["wch"][1] + p["wcv_c"][0],
                          p["wch"][2]], axis=0) * bn_scale[None, :]
        bias = (p["bch"][0] + p["bcv"][0]) * bn_scale + bn_bias
        return jnp.concatenate([taps, p["b1"], bias[None, :]], axis=0)  # (5,C)

    return {
        # attention scale folded into the Q projection
        "wq": stack(lambda p: p["wq"] * (float(p["wq"].shape[-1]) ** -0.5)),
        "wk": stack(lambda p: p["wk"]),            # (depth, H, dim, D)
        "wv": stack(lambda p: p["wv"]),            # (depth, H, dim, D)
        "wo": stack(lambda p: p["wo"]),            # (depth, H, D, dim)
        "w1": stack(lambda p: p["w1"]),            # (depth, dim, C)
        "w2": stack(lambda p: p["w2"]),            # (depth, C, dim)
        "ls1": stack(lambda p: p["ls_w1"]),        # (depth, dim, dim//r)
        "ls2": stack(lambda p: p["ls_w2"]),        # (depth, dim//r, dim)
        "dvec": stack(lambda p: jnp.concatenate(
            [p["ln1_g"], p["ln1_b"], p["ln2_g"], p["ln2_b"],
             p["bo"], p["b2"]], axis=0)),          # (depth, 6, dim)
        "mvec": stack(fold_mvec),                  # (depth, 5, C)
    }


# ------------------------------ Pallas kernel ------------------------------ #
def lrtm_pallas(x, packed, *, heads):
    B, N, dim = x.shape
    depth = packed["wq"].shape[0]
    D = packed["wq"].shape[-1]
    mlp_dim = packed["w1"].shape[-1]
    HD = heads * D
    f32 = jnp.float32

    def kernel(x_ref, wq_ref, wk_ref, wv_ref, wo_ref, w1_ref, w2_ref,
               ls1_ref, ls2_ref, dv_ref, mv_ref, out_ref):
        # Hoisted once per batch element (invariant across layers).
        rows = jax.lax.broadcasted_iota(jnp.int32, (N, 1), 0)
        not_first = rows > 0
        not_last = rows < N - 1

        def layer_norm(z, g, b):
            mu = jnp.mean(z, axis=-1, keepdims=True)
            var = jnp.mean((z - mu) ** 2, axis=-1, keepdims=True)
            return (z - mu) * jax.lax.rsqrt(var + LN_EPS) * g + b

        def lsrc(z, ls1, ls2):                     # squeeze-excite over sequence
            y = jnp.mean(z, axis=0, keepdims=True)                     # (1,dim)
            h1 = jnp.maximum(jnp.dot(y, ls1, preferred_element_type=f32), 0.0)
            h2 = jnp.dot(h1, ls2, preferred_element_type=f32)
            s = 1.0 / (1.0 + jnp.exp(-h2))         # sigmoid via EUP exp
            return z * s

        x_cur = x_ref[0]                           # (N, dim) running state
        for l in range(depth):                     # static unroll over layers
            dv = dv_ref[l]                         # (6, dim)
            mv = mv_ref[l]                         # (5, C)
            ls1 = ls1_ref[l]
            ls2 = ls2_ref[l]

            # ---------------- MHSA (per-head accumulation, no concat) ------
            xn = layer_norm(x_cur, dv[0:1], dv[1:2])
            attn_out = None
            for h in range(heads):                 # static unroll over heads
                q = jnp.dot(xn, wq_ref[l, h], preferred_element_type=f32)
                k = jnp.dot(xn, wk_ref[l, h], preferred_element_type=f32)
                v = jnp.dot(xn, wv_ref[l, h], preferred_element_type=f32)
                dots = jax.lax.dot_general(        # q @ k.T  (scale folded in)
                    q, k, (((1,), (1,)), ((), ())), preferred_element_type=f32)
                dots = dots - jnp.max(dots, axis=-1, keepdims=True)
                e = jnp.exp(dots)
                p = e / jnp.sum(e, axis=-1, keepdims=True)      # exact divide
                o_h = jnp.dot(p, v, preferred_element_type=f32)
                contrib = jnp.dot(o_h, wo_ref[l, h],
                                  preferred_element_type=f32)
                attn_out = contrib if attn_out is None else attn_out + contrib
            x1 = lsrc(x_cur + attn_out + dv[4:5], ls1, ls2)     # +bo; dropout=id

            # ------------- MLP + ACB (BN & vertical conv folded) -----------
            xn2 = layer_norm(x1, dv[2:3], dv[3:4])
            y = _gelu(jnp.dot(xn2, w1_ref[l],
                              preferred_element_type=f32) + mv[3:4])   # (N, C)
            y_prev = jnp.where(not_first,
                               pltpu.roll(y, shift=1, axis=0), 0.0)    # y[n-1]
            y_next = jnp.where(not_last,
                               pltpu.roll(y, shift=N - 1, axis=0), 0.0)  # y[n+1]
            z = _gelu(y_prev * mv[0:1] + y * mv[1:2] + y_next * mv[2:3]
                      + mv[4:5])
            y2 = jnp.dot(z, w2_ref[l], preferred_element_type=f32) + dv[5:6]
            x_cur = lsrc(x1 + y2, ls1, ls2)        # do2 = identity (eval)

        out_ref[0] = x_cur

    names = ["wq", "wk", "wv", "wo", "w1", "w2", "ls1", "ls2", "dvec", "mvec"]
    weights = [packed[n] for n in names]

    def resident_spec(w):
        # Full-array, depth-resident block: constant index_map -> DMA'd once.
        nd = w.ndim
        return pl.BlockSpec(w.shape, lambda b, _nd=nd: (0,) * _nd)

    # Advisory cost so XLA's scheduler treats this custom call as cheap.
    flops = 2 * B * depth * (N * dim * 3 * HD            # qkv projections
                             + 2 * heads * N * N * D     # qk^T and p@v
                             + N * HD * dim              # output projection
                             + 2 * N * dim * mlp_dim)    # mlp fc1 + fc2
    transcendentals = B * depth * (2 * N * mlp_dim + heads * N * N + 2 * dim)
    param_bytes = sum(int(w.size) * w.dtype.itemsize for w in weights)
    bytes_accessed = 2 * int(x.size) * x.dtype.itemsize + param_bytes
    cost = pl.CostEstimate(flops=flops, transcendentals=transcendentals,
                           bytes_accessed=bytes_accessed)

    # Output stays (1, N, dim=32) per block (one tiny masked-lane writeback per
    # batch element); lane-dense (1, N*dim) relayout skipped at this size --
    # the relayout copy would cost more than the single narrow DMA it saves.
    return pl.pallas_call(
        kernel,
        out_shape=jax.ShapeDtypeStruct((B, N, dim), jnp.float32),
        grid=(B,),
        in_specs=[pl.BlockSpec((1, N, dim), lambda b: (b, 0, 0))]
                 + [resident_spec(w) for w in weights],
        out_specs=pl.BlockSpec((1, N, dim), lambda b: (b, 0, 0)),
        compiler_params=pltpu.CompilerParams(
            dimension_semantics=("parallel",)),
        cost_estimate=cost,
    )(x, *weights)


# --------------------------- pure-JAX reference ----------------------------- #
def _ref_layer(x, p):
    D = p["wq"].shape[2]

    def layer_norm(z, g, b):
        mu = jnp.mean(z, -1, keepdims=True)
        var = jnp.mean((z - mu) ** 2, -1, keepdims=True)
        return (z - mu) * jax.lax.rsqrt(var + LN_EPS) * g[0] + b[0]

    def gelu(z):
        return 0.5 * z * (1.0 + jax.lax.erf(z * _INV_SQRT2))

    def lsrc(z):
        y = jnp.mean(z, axis=1)                                  # (B, dim)
        s = jax.nn.sigmoid(jnp.maximum(y @ p["ls_w1"], 0.0) @ p["ls_w2"])
        return z * s[:, None, :]

    xn = layer_norm(x, p["ln1_g"], p["ln1_b"])
    q = jnp.einsum("bnd,hde->bhne", xn, p["wq"])
    k = jnp.einsum("bnd,hde->bhne", xn, p["wk"])
    v = jnp.einsum("bnd,hde->bhne", xn, p["wv"])
    dots = jnp.einsum("bhie,bhje->bhij", q, k) * (float(D) ** -0.5)
    attn = jax.nn.softmax(dots, axis=-1)
    o = jnp.einsum("bhij,bhje->bhie", attn, v)
    y = jnp.einsum("bhne,hed->bnd", o, p["wo"]) + p["bo"][0]
    x1 = lsrc(x + y)

    xn2 = layer_norm(x1, p["ln2_g"], p["ln2_b"])
    y = gelu(xn2 @ p["w1"] + p["b1"][0])                         # (B, N, C)
    y_prev = jnp.pad(y, ((0, 0), (1, 0), (0, 0)))[:, :-1]
    y_next = jnp.pad(y, ((0, 0), (0, 1), (0, 0)))[:, 1:]
    conv_h = (y_prev * p["wch"][0] + y * p["wch"][1] + y_next * p["wch"][2]
              + p["bch"][0])
    conv_v = y * p["wcv_c"][0] + p["bcv"][0]
    z = conv_h + conv_v
    z = (z - p["bn_m"][0]) * jax.lax.rsqrt(p["bn_v"][0] + BN_EPS) * p["bn_g"][0] \
        + p["bn_b"][0]
    z = gelu(z)
    y2 = z @ p["w2"] + p["b2"][0]
    return lsrc(x1 + y2)


def lrtm_ref(x, layer_params):
    for p in layer_params:
        x = _ref_layer(x, p)
    return x


# --------------------------- deterministic init ----------------------------- #
def init_layer_params(key, dim, heads, dim_head, mlp_dim, reduction=4):
    ks = jax.random.split(key, 23)
    n = lambda k, shape, s=0.1: s * jax.random.normal(k, shape, jnp.float32)
    p = {}
    p["ln1_g"] = 1.0 + n(ks[0], (1, dim))
    p["ln1_b"] = n(ks[1], (1, dim))
    p["wq"] = n(ks[2], (heads, dim, dim_head), 0.2)
    p["wk"] = n(ks[3], (heads, dim, dim_head), 0.2)
    p["wv"] = n(ks[4], (heads, dim, dim_head), 0.2)
    p["wo"] = n(ks[5], (heads, dim_head, dim), 0.2)
    p["bo"] = n(ks[6], (1, dim))
    p["ln2_g"] = 1.0 + n(ks[7], (1, dim))
    p["ln2_b"] = n(ks[8], (1, dim))
    p["w1"] = n(ks[9], (dim, mlp_dim), 0.2)
    p["b1"] = n(ks[10], (1, mlp_dim))
    p["wch"] = n(ks[11], (3, mlp_dim), 0.3)        # depthwise (1,3) taps
    p["bch"] = n(ks[12], (1, mlp_dim))
    p["wcv_c"] = n(ks[13], (1, mlp_dim), 0.3)      # center tap of (3,1) conv
    p["bcv"] = n(ks[14], (1, mlp_dim))
    p["bn_g"] = 1.0 + n(ks[15], (1, mlp_dim))
    p["bn_b"] = n(ks[16], (1, mlp_dim))
    p["bn_m"] = n(ks[17], (1, mlp_dim))
    p["bn_v"] = 1.0 + 0.5 * jax.random.uniform(ks[18], (1, mlp_dim), jnp.float32)
    p["w2"] = n(ks[19], (mlp_dim, dim), 0.2)
    p["b2"] = n(ks[20], (1, dim))
    p["ls_w1"] = n(ks[21], (dim, dim // reduction), 0.3)
    p["ls_w2"] = n(ks[22], (dim // reduction, dim), 0.3)
    return p


# ---------------------------------- main ------------------------------------ #
if __name__ == "__main__":
    B, N = 2, 8
    dim, depth, heads, dim_head, mlp_dim = 32, 2, 2, 16, 64

    key = jax.random.PRNGKey(0)
    kx, kp = jax.random.split(key)
    x = jax.random.normal(kx, (B, N, dim), jnp.float32)
    layer_keys = jax.random.split(kp, depth)
    layer_params = [
        init_layer_params(k, dim, heads, dim_head, mlp_dim) for k in layer_keys
    ]

    # TODO(synk): training-mode BatchNorm statistics / active Dropout have no
    # equivalent here; the kernel implements eval-mode semantics (folded BN,
    # identity dropout) exactly as the PyTorch module does in .eval().
    packed = pack_params(layer_params)
    out = jax.block_until_ready(lrtm_pallas(x, packed, heads=heads))
    ref = jax.block_until_ready(lrtm_ref(x, layer_params))

    # Tolerance covers the A&S erf approximation (|err| < 1.5e-7 per GELU) and
    # f32 accumulation-order differences; softmax uses an exact divide.
    err = float(jnp.max(jnp.abs(out - ref)))
    assert err < 5e-3, f"mismatch vs reference: {err}"
    print("KERNEL_OK")
</pallas_src>

<mosaic_0001>
module attributes {stable_mosaic.version = 11 : i64} {
  func.func @kernel(%arg0: i32, %arg1: memref<1x8x32xf32, #tpu.memory_space<vmem>>, %arg2: memref<2x2x32x16xf32, #tpu.memory_space<vmem>>, %arg3: memref<2x2x32x16xf32, #tpu.memory_space<vmem>>, %arg4: memref<2x2x32x16xf32, #tpu.memory_space<vmem>>, %arg5: memref<2x2x16x32xf32, #tpu.memory_space<vmem>>, %arg6: memref<2x32x64xf32, #tpu.memory_space<vmem>>, %arg7: memref<2x64x32xf32, #tpu.memory_space<vmem>>, %arg8: memref<2x32x8xf32, #tpu.memory_space<vmem>>, %arg9: memref<2x8x32xf32, #tpu.memory_space<vmem>>, %arg10: memref<2x6x32xf32, #tpu.memory_space<vmem>>, %arg11: memref<2x5x64xf32, #tpu.memory_space<vmem>>, %arg12: memref<1x8x32xf32, #tpu.memory_space<vmem>>) attributes {dimension_semantics = [#tpu.dimension_semantics<parallel>], iteration_bounds = array<i64: 2>, scalar_prefetch = 0 : i64, scratch_operands = 0 : i64, tpu.core_type = #tpu.core_type<tc>, window_params = [{transform_indices = @transform_0, window_bounds = array<i64: 1, 8, 32>}, {pipeline_mode = #tpu.pipeline_mode<synchronous>, transform_indices = @transform_1, window_bounds = array<i64: 2, 2, 32, 16>}, {pipeline_mode = #tpu.pipeline_mode<synchronous>, transform_indices = @transform_2, window_bounds = array<i64: 2, 2, 32, 16>}, {pipeline_mode = #tpu.pipeline_mode<synchronous>, transform_indices = @transform_3, window_bounds = array<i64: 2, 2, 32, 16>}, {pipeline_mode = #tpu.pipeline_mode<synchronous>, transform_indices = @transform_4, window_bounds = array<i64: 2, 2, 16, 32>}, {pipeline_mode = #tpu.pipeline_mode<synchronous>, transform_indices = @transform_5, window_bounds = array<i64: 2, 32, 64>}, {pipeline_mode = #tpu.pipeline_mode<synchronous>, transform_indices = @transform_6, window_bounds = array<i64: 2, 64, 32>}, {pipeline_mode = #tpu.pipeline_mode<synchronous>, transform_indices = @transform_7, window_bounds = array<i64: 2, 32, 8>}, {pipeline_mode = #tpu.pipeline_mode<synchronous>, transform_indices = @transform_8, window_bounds = array<i64: 2, 8, 32>}, {pipeline_mode = #tpu.pipeline_mode<synchronous>, transform_indices = @transform_9, window_bounds = array<i64: 2, 6, 32>}, {pipeline_mode = #tpu.pipeline_mode<synchronous>, transform_indices = @transform_10, window_bounds = array<i64: 2, 5, 64>}, {transform_indices = @transform_11, window_bounds = array<i64: 1, 8, 32>}]} {
    %0 = tpu.iota {dimensions = array<i32: 0>} : vector<8x1xi32>
    %c0_i32 = arith.constant 0 : i32
    %1 = vector.broadcast %c0_i32 : i32 to vector<8x1xi32>
    %2 = arith.cmpi sgt, %0, %1 : vector<8x1xi32>
    %c7_i32 = arith.constant 7 : i32
    %3 = vector.broadcast %c7_i32 : i32 to vector<8x1xi32>
    %4 = arith.cmpi slt, %0, %3 : vector<8x1xi32>
    %c0 = arith.constant 0 : index
    %c0_0 = arith.constant 0 : index
    %c0_1 = arith.constant 0 : index
    %5 = vector.load %arg1[%c0, %c0_0, %c0_1] : memref<1x8x32xf32, #tpu.memory_space<vmem>>, vector<1x8x32xf32>
    %6 = vector.shape_cast %5 : vector<1x8x32xf32> to vector<8x32xf32>
    %c0_2 = arith.constant 0 : index
    %c0_3 = arith.constant 0 : index
    %c0_4 = arith.constant 0 : index
    %7 = vector.load %arg10[%c0_2, %c0_3, %c0_4] : memref<2x6x32xf32, #tpu.memory_space<vmem>>, vector<1x6x32xf32>
    %8 = vector.shape_cast %7 : vector<1x6x32xf32> to vector<6x32xf32>
    %c0_5 = arith.constant 0 : index
    %c0_6 = arith.constant 0 : index
    %c0_7 = arith.constant 0 : index
    %9 = vector.load %arg11[%c0_5, %c0_6, %c0_7] : memref<2x5x64xf32, #tpu.memory_space<vmem>>, vector<1x5x64xf32>
    %10 = vector.shape_cast %9 : vector<1x5x64xf32> to vector<5x64xf32>
    %c0_8 = arith.constant 0 : index
    %c0_9 = arith.constant 0 : index
    %c0_10 = arith.constant 0 : index
    %11 = vector.load %arg8[%c0_8, %c0_9, %c0_10] : memref<2x32x8xf32, #tpu.memory_space<vmem>>, vector<1x32x8xf32>
    %12 = vector.shape_cast %11 : vector<1x32x8xf32> to vector<32x8xf32>
    %c0_11 = arith.constant 0 : index
    %c0_12 = arith.constant 0 : index
    %c0_13 = arith.constant 0 : index
    %13 = vector.load %arg9[%c0_11, %c0_12, %c0_13] : memref<2x8x32xf32, #tpu.memory_space<vmem>>, vector<1x8x32xf32>
    %14 = vector.shape_cast %13 : vector<1x8x32xf32> to vector<8x32xf32>
    %15 = vector.extract_strided_slice %8 {offsets = [0, 0], sizes = [1, 32], strides = [1, 1]} : vector<6x32xf32> to vector<1x32xf32>
    %16 = vector.extract_strided_slice %8 {offsets = [1, 0], sizes = [1, 32], strides = [1, 1]} : vector<6x32xf32> to vector<1x32xf32>
    %cst = arith.constant dense<0.000000e+00> : vector<8xf32>
    %17 = vector.multi_reduction <add>, %6, %cst [1] : vector<8x32xf32> to vector<8xf32>
    %18 = vector.shape_cast %17 : vector<8xf32> to vector<8x1xf32>
    %cst_14 = arith.constant 3.200000e+01 : f32
    %19 = vector.broadcast %cst_14 : f32 to vector<8x1xf32>
    %20 = arith.divf %18, %19 : vector<8x1xf32>
    %21 = vector.broadcast %20 : vector<8x1xf32> to vector<8x32xf32>
    %22 = arith.subf %6, %21 : vector<8x32xf32>
    %23 = arith.mulf %22, %22 : vector<8x32xf32>
    %cst_15 = arith.constant dense<0.000000e+00> : vector<8xf32>
    %24 = vector.multi_reduction <add>, %23, %cst_15 [1] : vector<8x32xf32> to vector<8xf32>
    %25 = vector.shape_cast %24 : vector<8xf32> to vector<8x1xf32>
    %cst_16 = arith.constant 3.200000e+01 : f32
    %26 = vector.broadcast %cst_16 : f32 to vector<8x1xf32>
    %27 = arith.divf %25, %26 : vector<8x1xf32>
    %28 = vector.broadcast %20 : vector<8x1xf32> to vector<8x32xf32>
    %29 = arith.subf %6, %28 : vector<8x32xf32>
    %cst_17 = arith.constant 9.99999974E-6 : f32
    %30 = vector.broadcast %cst_17 : f32 to vector<8x1xf32>
    %31 = arith.addf %27, %30 : vector<8x1xf32>
    %32 = math.rsqrt %31 : vector<8x1xf32>
    %33 = vector.broadcast %32 : vector<8x1xf32> to vector<8x32xf32>
    %34 = arith.mulf %29, %33 : vector<8x32xf32>
    %35 = vector.broadcast %15 : vector<1x32xf32> to vector<8x32xf32>
    %36 = arith.mulf %34, %35 : vector<8x32xf32>
    %37 = vector.broadcast %16 : vector<1x32xf32> to vector<8x32xf32>
    %38 = arith.addf %36, %37 : vector<8x32xf32>
    %c0_18 = arith.constant 0 : index
    %c0_19 = arith.constant 0 : index
    %c0_20 = arith.constant 0 : index
    %c0_21 = arith.constant 0 : index
    %39 = vector.load %arg2[%c0_18, %c0_19, %c0_20, %c0_21] : memref<2x2x32x16xf32, #tpu.memory_space<vmem>>, vector<1x1x32x16xf32>
    %40 = vector.shape_cast %39 : vector<1x1x32x16xf32> to vector<32x16xf32>
    %cst_22 = arith.constant dense<0.000000e+00> : vector<8x16xf32>
    %41 = tpu.matmul %38, %40, %cst_22 {dimension_numbers = #tpu.dot_dimension_numbers<[1], [0], [0], [1], [0, 0, 1, 1], [], []>} : vector<8x32xf32>, vector<32x16xf32>, vector<8x16xf32> -> vector<8x16xf32>
    %c0_23 = arith.constant 0 : index
    %c0_24 = arith.constant 0 : index
    %c0_25 = arith.constant 0 : index
    %c0_26 = arith.constant 0 : index
    %42 = vector.load %arg3[%c0_23, %c0_24, %c0_25, %c0_26] : memref<2x2x32x16xf32, #tpu.memory_space<vmem>>, vector<1x1x32x16xf32>
    %43 = vector.shape_cast %42 : vector<1x1x32x16xf32> to vector<32x16xf32>
    %cst_27 = arith.constant dense<0.000000e+00> : vector<8x16xf32>
    %44 = tpu.matmul %38, %43, %cst_27 {dimension_numbers = #tpu.dot_dimension_numbers<[1], [0], [0], [1], [0, 0, 1, 1], [], []>} : vector<8x32xf32>, vector<32x16xf32>, vector<8x16xf32> -> vector<8x16xf32>
    %c0_28 = arith.constant 0 : index
    %c0_29 = arith.constant 0 : index
    %c0_30 = arith.constant 0 : index
    %c0_31 = arith.constant 0 : index
    %45 = vector.load %arg4[%c0_28, %c0_29, %c0_30, %c0_31] : memref<2x2x32x16xf32, #tpu.memory_space<vmem>>, vector<1x1x32x16xf32>
    %46 = vector.shape_cast %45 : vector<1x1x32x16xf32> to vector<32x16xf32>
    %cst_32 = arith.constant dense<0.000000e+00> : vector<8x16xf32>
    %47 = tpu.matmul %38, %46, %cst_32 {dimension_numbers = #tpu.dot_dimension_numbers<[1], [0], [0], [1], [0, 0, 1, 1], [], []>} : vector<8x32xf32>, vector<32x16xf32>, vector<8x16xf32> -> vector<8x16xf32>
    %cst_33 = arith.constant dense<0.000000e+00> : vector<8x8xf32>
    %48 = tpu.matmul %41, %44, %cst_33 {dimension_numbers = #tpu.dot_dimension_numbers<[1], [1], [0], [0], [0, 0, 1, 0], [], []>} : vector<8x16xf32>, vector<8x16xf32>, vector<8x8xf32> -> vector<8x8xf32>
    %cst_34 = arith.constant dense<0xFF800000> : vector<8xf32>
    %49 = vector.multi_reduction <maximumf>, %48, %cst_34 [1] : vector<8x8xf32> to vector<8xf32>
    %50 = vector.shape_cast %49 : vector<8xf32> to vector<8x1xf32>
    %51 = vector.broadcast %50 : vector<8x1xf32> to vector<8x8xf32>
    %52 = arith.subf %48, %51 : vector<8x8xf32>
    %53 = math.exp %52 : vector<8x8xf32>
    %cst_35 = arith.constant dense<0.000000e+00> : vector<8xf32>
    %54 = vector.multi_reduction <add>, %53, %cst_35 [1] : vector<8x8xf32> to vector<8xf32>
    %55 = vector.shape_cast %54 : vector<8xf32> to vector<8x1xf32>
    %56 = vector.broadcast %55 : vector<8x1xf32> to vector<8x8xf32>
    %57 = arith.divf %53, %56 : vector<8x8xf32>
    %cst_36 = arith.constant dense<0.000000e+00> : vector<8x16xf32>
    %58 = tpu.matmul %57, %47, %cst_36 {dimension_numbers = #tpu.dot_dimension_numbers<[1], [0], [0], [1], [0, 0, 1, 1], [], []>} : vector<8x8xf32>, vector<8x16xf32>, vector<8x16xf32> -> vector<8x16xf32>
    %c0_37 = arith.constant 0 : index
    %c0_38 = arith.constant 0 : index
    %c0_39 = arith.constant 0 : index
    %c0_40 = arith.constant 0 : index
    %59 = vector.load %arg5[%c0_37, %c0_38, %c0_39, %c0_40] : memref<2x2x16x32xf32, #tpu.memory_space<vmem>>, vector<1x1x16x32xf32>
    %60 = vector.shape_cast %59 : vector<1x1x16x32xf32> to vector<16x32xf32>
    %cst_41 = arith.constant dense<0.000000e+00> : vector<8x32xf32>
    %61 = tpu.matmul %58, %60, %cst_41 {dimension_numbers = #tpu.dot_dimension_numbers<[1], [0], [0], [1], [0, 0, 1, 1], [], []>} : vector<8x16xf32>, vector<16x32xf32>, vector<8x32xf32> -> vector<8x32xf32>
    %c0_42 = arith.constant 0 : index
    %c1 = arith.constant 1 : index
    %c0_43 = arith.constant 0 : index
    %c0_44 = arith.constant 0 : index
    %62 = vector.load %arg2[%c0_42, %c1, %c0_43, %c0_44] : memref<2x2x32x16xf32, #tpu.memory_space<vmem>>, vector<1x1x32x16xf32>
    %63 = vector.shape_cast %62 : vector<1x1x32x16xf32> to vector<32x16xf32>
    %cst_45 = arith.constant dense<0.000000e+00> : vector<8x16xf32>
    %64 = tpu.matmul %38, %63, %cst_45 {dimension_numbers = #tpu.dot_dimension_numbers<[1], [0], [0], [1], [0, 0, 1, 1], [], []>} : vector<8x32xf32>, vector<32x16xf32>, vector<8x16xf32> -> vector<8x16xf32>
    %c0_46 = arith.constant 0 : index
    %c1_47 = arith.constant 1 : index
    %c0_48 = arith.constant 0 : index
    %c0_49 = arith.constant 0 : index
    %65 = vector.load %arg3[%c0_46, %c1_47, %c0_48, %c0_49] : memref<2x2x32x16xf32, #tpu.memory_space<vmem>>, vector<1x1x32x16xf32>
    %66 = vector.shape_cast %65 : vector<1x1x32x16xf32> to vector<32x16xf32>
    %cst_50 = arith.constant dense<0.000000e+00> : vector<8x16xf32>
    %67 = tpu.matmul %38, %66, %cst_50 {dimension_numbers = #tpu.dot_dimension_numbers<[1], [0], [0], [1], [0, 0, 1, 1], [], []>} : vector<8x32xf32>, vector<32x16xf32>, vector<8x16xf32> -> vector<8x16xf32>
    %c0_51 = arith.constant 0 : index
    %c1_52 = arith.constant 1 : index
    %c0_53 = arith.constant 0 : index
    %c0_54 = arith.constant 0 : index
    %68 = vector.load %arg4[%c0_51, %c1_52, %c0_53, %c0_54] : memref<2x2x32x16xf32, #tpu.memory_space<vmem>>, vector<1x1x32x16xf32>
    %69 = vector.shape_cast %68 : vector<1x1x32x16xf32> to vector<32x16xf32>
    %cst_55 = arith.constant dense<0.000000e+00> : vector<8x16xf32>
    %70 = tpu.matmul %38, %69, %cst_55 {dimension_numbers = #tpu.dot_dimension_numbers<[1], [0], [0], [1], [0, 0, 1, 1], [], []>} : vector<8x32xf32>, vector<32x16xf32>, vector<8x16xf32> -> vector<8x16xf32>
    %cst_56 = arith.constant dense<0.000000e+00> : vector<8x8xf32>
    %71 = tpu.matmul %64, %67, %cst_56 {dimension_numbers = #tpu.dot_dimension_numbers<[1], [1], [0], [0], [0, 0, 1, 0], [], []>} : vector<8x16xf32>, vector<8x16xf32>, vector<8x8xf32> -> vector<8x8xf32>
    %cst_57 = arith.constant dense<0xFF800000> : vector<8xf32>
    %72 = vector.multi_reduction <maximumf>, %71, %cst_57 [1] : vector<8x8xf32> to vector<8xf32>
    %73 = vector.shape_cast %72 : vector<8xf32> to vector<8x1xf32>
    %74 = vector.broadcast %73 : vector<8x1xf32> to vector<8x8xf32>
    %75 = arith.subf %71, %74 : vector<8x8xf32>
    %76 = math.exp %75 : vector<8x8xf32>
    %cst_58 = arith.constant dense<0.000000e+00> : vector<8xf32>
    %77 = vector.multi_reduction <add>, %76, %cst_58 [1] : vector<8x8xf32> to vector<8xf32>
    %78 = vector.shape_cast %77 : vector<8xf32> to vector<8x1xf32>
    %79 = vector.broadcast %78 : vector<8x1xf32> to vector<8x8xf32>
    %80 = arith.divf %76, %79 : vector<8x8xf32>
    %cst_59 = arith.constant dense<0.000000e+00> : vector<8x16xf32>
    %81 = tpu.matmul %80, %70, %cst_59 {dimension_numbers = #tpu.dot_dimension_numbers<[1], [0], [0], [1], [0, 0, 1, 1], [], []>} : vector<8x8xf32>, vector<8x16xf32>, vector<8x16xf32> -> vector<8x16xf32>
    %c0_60 = arith.constant 0 : index
    %c1_61 = arith.constant 1 : index
    %c0_62 = arith.constant 0 : index
    %c0_63 = arith.constant 0 : index
    %82 = vector.load %arg5[%c0_60, %c1_61, %c0_62, %c0_63] : memref<2x2x16x32xf32, #tpu.memory_space<vmem>>, vector<1x1x16x32xf32>
    %83 = vector.shape_cast %82 : vector<1x1x16x32xf32> to vector<16x32xf32>
    %cst_64 = arith.constant dense<0.000000e+00> : vector<8x32xf32>
    %84 = tpu.matmul %81, %83, %cst_64 {dimension_numbers = #tpu.dot_dimension_numbers<[1], [0], [0], [1], [0, 0, 1, 1], [], []>} : vector<8x16xf32>, vector<16x32xf32>, vector<8x32xf32> -> vector<8x32xf32>
    %85 = arith.addf %61, %84 : vector<8x32xf32>
    %86 = arith.addf %6, %85 : vector<8x32xf32>
    %87 = vector.extract_strided_slice %8 {offsets = [4, 0], sizes = [1, 32], strides = [1, 1]} : vector<6x32xf32> to vector<1x32xf32>
    %88 = vector.broadcast %87 : vector<1x32xf32> to vector<8x32xf32>
    %89 = arith.addf %86, %88 : vector<8x32xf32>
    %cst_65 = arith.constant dense<0.000000e+00> : vector<32xf32>
    %90 = vector.multi_reduction <add>, %89, %cst_65 [0] : vector<8x32xf32> to vector<32xf32>
    %91 = vector.shape_cast %90 : vector<32xf32> to vector<1x32xf32>
    %cst_66 = arith.constant 8.000000e+00 : f32
    %92 = vector.broadcast %cst_66 : f32 to vector<1x32xf32>
    %93 = arith.divf %91, %92 : vector<1x32xf32>
    %cst_67 = arith.constant dense<0.000000e+00> : vector<1x8xf32>
    %94 = tpu.matmul %93, %12, %cst_67 {dimension_numbers = #tpu.dot_dimension_numbers<[1], [0], [0], [1], [0, 0, 1, 1], [], []>} : vector<1x32xf32>, vector<32x8xf32>, vector<1x8xf32> -> vector<1x8xf32>
    %cst_68 = arith.constant 0.000000e+00 : f32
    %95 = vector.broadcast %cst_68 : f32 to vector<1x8xf32>
    %96 = arith.maximumf %94, %95 : vector<1x8xf32>
    %cst_69 = arith.constant dense<0.000000e+00> : vector<1x32xf32>
    %97 = tpu.matmul %96, %14, %cst_69 {dimension_numbers = #tpu.dot_dimension_numbers<[1], [0], [0], [1], [0, 0, 1, 1], [], []>} : vector<1x8xf32>, vector<8x32xf32>, vector<1x32xf32> -> vector<1x32xf32>
    %cst_70 = arith.constant 0.000000e+00 : f32
    %98 = vector.broadcast %cst_70 : f32 to vector<1x32xf32>
    %99 = arith.subf %98, %97 : vector<1x32xf32>
    %100 = math.exp %99 : vector<1x32xf32>
    %cst_71 = arith.constant 1.000000e+00 : f32
    %101 = vector.broadcast %cst_71 : f32 to vector<1x32xf32>
    %102 = arith.addf %101, %100 : vector<1x32xf32>
    %cst_72 = arith.constant 1.000000e+00 : f32
    %103 = vector.broadcast %cst_72 : f32 to vector<1x32xf32>
    %104 = arith.divf %103, %102 : vector<1x32xf32>
    %105 = vector.broadcast %104 : vector<1x32xf32> to vector<8x32xf32>
    %106 = arith.mulf %89, %105 : vector<8x32xf32>
    %107 = vector.extract_strided_slice %8 {offsets = [2, 0], sizes = [1, 32], strides = [1, 1]} : vector<6x32xf32> to vector<1x32xf32>
    %108 = vector.extract_strided_slice %8 {offsets = [3, 0], sizes = [1, 32], strides = [1, 1]} : vector<6x32xf32> to vector<1x32xf32>
    %cst_73 = arith.constant dense<0.000000e+00> : vector<8xf32>
    %109 = vector.multi_reduction <add>, %106, %cst_73 [1] : vector<8x32xf32> to vector<8xf32>
    %110 = vector.shape_cast %109 : vector<8xf32> to vector<8x1xf32>
    %cst_74 = arith.constant 3.200000e+01 : f32
    %111 = vector.broadcast %cst_74 : f32 to vector<8x1xf32>
    %112 = arith.divf %110, %111 : vector<8x1xf32>
    %113 = vector.broadcast %112 : vector<8x1xf32> to vector<8x32xf32>
    %114 = arith.subf %106, %113 : vector<8x32xf32>
    %115 = arith.mulf %114, %114 : vector<8x32xf32>
    %cst_75 = arith.constant dense<0.000000e+00> : vector<8xf32>
    %116 = vector.multi_reduction <add>, %115, %cst_75 [1] : vector<8x32xf32> to vector<8xf32>
    %117 = vector.shape_cast %116 : vector<8xf32> to vector<8x1xf32>
    %cst_76 = arith.constant 3.200000e+01 : f32
    %118 = vector.broadcast %cst_76 : f32 to vector<8x1xf32>
    %119 = arith.divf %117, %118 : vector<8x1xf32>
    %120 = vector.broadcast %112 : vector<8x1xf32> to vector<8x32xf32>
    %121 = arith.subf %106, %120 : vector<8x32xf32>
    %cst_77 = arith.constant 9.99999974E-6 : f32
    %122 = vector.broadcast %cst_77 : f32 to vector<8x1xf32>
    %123 = arith.addf %119, %122 : vector<8x1xf32>
    %124 = math.rsqrt %123 : vector<8x1xf32>
    %125 = vector.broadcast %124 : vector<8x1xf32> to vector<8x32xf32>
    %126 = arith.mulf %121, %125 : vector<8x32xf32>
    %127 = vector.broadcast %107 : vector<1x32xf32> to vector<8x32xf32>
    %128 = arith.mulf %126, %127 : vector<8x32xf32>
    %129 = vector.broadcast %108 : vector<1x32xf32> to vector<8x32xf32>
    %130 = arith.addf %128, %129 : vector<8x32xf32>
    %c0_78 = arith.constant 0 : index
    %c0_79 = arith.constant 0 : index
    %c0_80 = arith.constant 0 : index
    %131 = vector.load %arg6[%c0_78, %c0_79, %c0_80] : memref<2x32x64xf32, #tpu.memory_space<vmem>>, vector<1x32x64xf32>
    %132 = vector.shape_cast %131 : vector<1x32x64xf32> to vector<32x64xf32>
    %cst_81 = arith.constant dense<0.000000e+00> : vector<8x64xf32>
    %133 = tpu.matmul %130, %132, %cst_81 {dimension_numbers = #tpu.dot_dimension_numbers<[1], [0], [0], [1], [0, 0, 1, 1], [], []>} : vector<8x32xf32>, vector<32x64xf32>, vector<8x64xf32> -> vector<8x64xf32>
    %134 = vector.extract_strided_slice %10 {offsets = [3, 0], sizes = [1, 64], strides = [1, 1]} : vector<5x64xf32> to vector<1x64xf32>
    %135 = vector.broadcast %134 : vector<1x64xf32> to vector<8x64xf32>
    %136 = arith.addf %133, %135 : vector<8x64xf32>
    %cst_82 = arith.constant 5.000000e-01 : f32
    %137 = vector.broadcast %cst_82 : f32 to vector<8x64xf32>
    %138 = arith.mulf %137, %136 : vector<8x64xf32>
    %cst_83 = arith.constant 0.707106769 : f32
    %139 = vector.broadcast %cst_83 : f32 to vector<8x64xf32>
    %140 = arith.mulf %136, %139 : vector<8x64xf32>
    %141 = math.absf %140 : vector<8x64xf32>
    %cst_84 = arith.constant 0.327591091 : f32
    %142 = vector.broadcast %cst_84 : f32 to vector<8x64xf32>
    %143 = arith.mulf %142, %141 : vector<8x64xf32>
    %cst_85 = arith.constant 1.000000e+00 : f32
    %144 = vector.broadcast %cst_85 : f32 to vector<8x64xf32>
    %145 = arith.addf %144, %143 : vector<8x64xf32>
    %cst_86 = arith.constant 1.000000e+00 : f32
    %146 = vector.broadcast %cst_86 : f32 to vector<8x64xf32>
    %147 = arith.divf %146, %145 : vector<8x64xf32>
    %cst_87 = arith.constant 1.06140542 : f32
    %148 = vector.broadcast %cst_87 : f32 to vector<8x64xf32>
    %149 = arith.mulf %148, %147 : vector<8x64xf32>
    %cst_88 = arith.constant -1.45315206 : f32
    %150 = vector.broadcast %cst_88 : f32 to vector<8x64xf32>
    %151 = arith.addf %149, %150 : vector<8x64xf32>
    %152 = arith.mulf %151, %147 : vector<8x64xf32>
    %cst_89 = arith.constant 1.42141378 : f32
    %153 = vector.broadcast %cst_89 : f32 to vector<8x64xf32>
    %154 = arith.addf %152, %153 : vector<8x64xf32>
    %155 = arith.mulf %154, %147 : vector<8x64xf32>
    %cst_90 = arith.constant -0.284496725 : f32
    %156 = vector.broadcast %cst_90 : f32 to vector<8x64xf32>
    %157 = arith.addf %155, %156 : vector<8x64xf32>
    %158 = arith.mulf %157, %147 : vector<8x64xf32>
    %cst_91 = arith.constant 0.254829586 : f32
    %159 = vector.broadcast %cst_91 : f32 to vector<8x64xf32>
    %160 = arith.addf %158, %159 : vector<8x64xf32>
    %161 = arith.mulf %160, %147 : vector<8x64xf32>
    %cst_92 = arith.constant 0.000000e+00 : f32
    %162 = vector.broadcast %cst_92 : f32 to vector<8x64xf32>
    %163 = arith.subf %162, %141 : vector<8x64xf32>
    %164 = arith.mulf %163, %141 : vector<8x64xf32>
    %165 = math.exp %164 : vector<8x64xf32>
    %166 = arith.mulf %161, %165 : vector<8x64xf32>
    %cst_93 = arith.constant 1.000000e+00 : f32
    %167 = vector.broadcast %cst_93 : f32 to vector<8x64xf32>
    %168 = arith.subf %167, %166 : vector<8x64xf32>
    %cst_94 = arith.constant 0.000000e+00 : f32
    %169 = vector.broadcast %cst_94 : f32 to vector<8x64xf32>
    %170 = arith.cmpf olt, %140, %169 : vector<8x64xf32>
    %cst_95 = arith.constant 0.000000e+00 : f32
    %171 = vector.broadcast %cst_95 : f32 to vector<8x64xf32>
    %172 = arith.subf %171, %168 : vector<8x64xf32>
    %173 = arith.select %170, %172, %168 : vector<8x64xi1>, vector<8x64xf32>
    %cst_96 = arith.constant 1.000000e+00 : f32
    %174 = vector.broadcast %cst_96 : f32 to vector<8x64xf32>
    %175 = arith.addf %174, %173 : vector<8x64xf32>
    %176 = arith.mulf %138, %175 : vector<8x64xf32>
    %c1_i32 = arith.constant 1 : i32
    %177 = tpu.dynamic_rotate %176 by %c1_i32 dim 0 : vector<8x64xf32>, i32 -> vector<8x64xf32>
    %cst_97 = arith.constant 0.000000e+00 : f32
    %178 = vector.shape_cast %2 : vector<8x1xi1> to vector<8x1xi1>
    %179 = vector.broadcast %178 : vector<8x1xi1> to vector<8x64xi1>
    %180 = vector.broadcast %cst_97 : f32 to vector<8x64xf32>
    %181 = arith.select %179, %177, %180 : vector<8x64xi1>, vector<8x64xf32>
    %c7_i32_98 = arith.constant 7 : i32
    %182 = tpu.dynamic_rotate %176 by %c7_i32_98 dim 0 : vector<8x64xf32>, i32 -> vector<8x64xf32>
    %cst_99 = arith.constant 0.000000e+00 : f32
    %183 = vector.shape_cast %4 : vector<8x1xi1> to vector<8x1xi1>
    %184 = vector.broadcast %183 : vector<8x1xi1> to vector<8x64xi1>
    %185 = vector.broadcast %cst_99 : f32 to vector<8x64xf32>
    %186 = arith.select %184, %182, %185 : vector<8x64xi1>, vector<8x64xf32>
    %187 = vector.extract_strided_slice %10 {offsets = [0, 0], sizes = [1, 64], strides = [1, 1]} : vector<5x64xf32> to vector<1x64xf32>
    %188 = vector.broadcast %187 : vector<1x64xf32> to vector<8x64xf32>
    %189 = arith.mulf %181, %188 : vector<8x64xf32>
    %190 = vector.extract_strided_slice %10 {offsets = [1, 0], sizes = [1, 64], strides = [1, 1]} : vector<5x64xf32> to vector<1x64xf32>
    %191 = vector.broadcast %190 : vector<1x64xf32> to vector<8x64xf32>
    %192 = arith.mulf %176, %191 : vector<8x64xf32>
    %193 = arith.addf %189, %192 : vector<8x64xf32>
    %194 = vector.extract_strided_slice %10 {offsets = [2, 0], sizes = [1, 64], strides = [1, 1]} : vector<5x64xf32> to vector<1x64xf32>
    %195 = vector.broadcast %194 : vector<1x64xf32> to vector<8x64xf32>
    %196 = arith.mulf %186, %195 : vector<8x64xf32>
    %197 = arith.addf %193, %196 : vector<8x64xf32>
    %198 = vector.extract_strided_slice %10 {offsets = [4, 0], sizes = [1, 64], strides = [1, 1]} : vector<5x64xf32> to vector<1x64xf32>
    %199 = vector.broadcast %198 : vector<1x64xf32> to vector<8x64xf32>
    %200 = arith.addf %197, %199 : vector<8x64xf32>
    %cst_100 = arith.constant 5.000000e-01 : f32
    %201 = vector.broadcast %cst_100 : f32 to vector<8x64xf32>
    %202 = arith.mulf %201, %200 : vector<8x64xf32>
    %cst_101 = arith.constant 0.707106769 : f32
    %203 = vector.broadcast %cst_101 : f32 to vector<8x64xf32>
    %204 = arith.mulf %200, %203 : vector<8x64xf32>
    %205 = math.absf %204 : vector<8x64xf32>
    %cst_102 = arith.constant 0.327591091 : f32
    %206 = vector.broadcast %cst_102 : f32 to vector<8x64xf32>
    %207 = arith.mulf %206, %205 : vector<8x64xf32>
    %cst_103 = arith.constant 1.000000e+00 : f32
    %208 = vector.broadcast %cst_103 : f32 to vector<8x64xf32>
    %209 = arith.addf %208, %207 : vector<8x64xf32>
    %cst_104 = arith.constant 1.000000e+00 : f32
    %210 = vector.broadcast %cst_104 : f32 to vector<8x64xf32>
    %211 = arith.divf %210, %209 : vector<8x64xf32>
    %cst_105 = arith.constant 1.06140542 : f32
    %212 = vector.broadcast %cst_105 : f32 to vector<8x64xf32>
    %213 = arith.mulf %212, %211 : vector<8x64xf32>
    %cst_106 = arith.constant -1.45315206 : f32
    %214 = vector.broadcast %cst_106 : f32 to vector<8x64xf32>
    %215 = arith.addf %213, %214 : vector<8x64xf32>
    %216 = arith.mulf %215, %211 : vector<8x64xf32>
    %cst_107 = arith.constant 1.42141378 : f32
    %217 = vector.broadcast %cst_107 : f32 to vector<8x64xf32>
    %218 = arith.addf %216, %217 : vector<8x64xf32>
    %219 = arith.mulf %218, %211 : vector<8x64xf32>
    %cst_108 = arith.constant -0.284496725 : f32
    %220 = vector.broadcast %cst_108 : f32 to vector<8x64xf32>
    %221 = arith.addf %219, %220 : vector<8x64xf32>
    %222 = arith.mulf %221, %211 : vector<8x64xf32>
    %cst_109 = arith.constant 0.254829586 : f32
    %223 = vector.broadcast %cst_109 : f32 to vector<8x64xf32>
    %224 = arith.addf %222, %223 : vector<8x64xf32>
    %225 = arith.mulf %224, %211 : vector<8x64xf32>
    %cst_110 = arith.constant 0.000000e+00 : f32
    %226 = vector.broadcast %cst_110 : f32 to vector<8x64xf32>
    %227 = arith.subf %226, %205 : vector<8x64xf32>
    %228 = arith.mulf %227, %205 : vector<8x64xf32>
    %229 = math.exp %228 : vector<8x64xf32>
    %230 = arith.mulf %225, %229 : vector<8x64xf32>
    %cst_111 = arith.constant 1.000000e+00 : f32
    %231 = vector.broadcast %cst_111 : f32 to vector<8x64xf32>
    %232 = arith.subf %231, %230 : vector<8x64xf32>
    %cst_112 = arith.constant 0.000000e+00 : f32
    %233 = vector.broadcast %cst_112 : f32 to vector<8x64xf32>
    %234 = arith.cmpf olt, %204, %233 : vector<8x64xf32>
    %cst_113 = arith.constant 0.000000e+00 : f32
    %235 = vector.broadcast %cst_113 : f32 to vector<8x64xf32>
    %236 = arith.subf %235, %232 : vector<8x64xf32>
    %237 = arith.select %234, %236, %232 : vector<8x64xi1>, vector<8x64xf32>
    %cst_114 = arith.constant 1.000000e+00 : f32
    %238 = vector.broadcast %cst_114 : f32 to vector<8x64xf32>
    %239 = arith.addf %238, %237 : vector<8x64xf32>
    %240 = arith.mulf %202, %239 : vector<8x64xf32>
    %c0_115 = arith.constant 0 : index
    %c0_116 = arith.constant 0 : index
    %c0_117 = arith.constant 0 : index
    %241 = vector.load %arg7[%c0_115, %c0_116, %c0_117] : memref<2x64x32xf32, #tpu.memory_space<vmem>>, vector<1x64x32xf32>
    %242 = vector.shape_cast %241 : vector<1x64x32xf32> to vector<64x32xf32>
    %cst_118 = arith.constant dense<0.000000e+00> : vector<8x32xf32>
    %243 = tpu.matmul %240, %242, %cst_118 {dimension_numbers = #tpu.dot_dimension_numbers<[1], [0], [0], [1], [0, 0, 1, 1], [], []>} : vector<8x64xf32>, vector<64x32xf32>, vector<8x32xf32> -> vector<8x32xf32>
    %244 = vector.extract_strided_slice %8 {offsets = [5, 0], sizes = [1, 32], strides = [1, 1]} : vector<6x32xf32> to vector<1x32xf32>
    %245 = vector.broadcast %244 : vector<1x32xf32> to vector<8x32xf32>
    %246 = arith.addf %243, %245 : vector<8x32xf32>
    %247 = arith.addf %106, %246 : vector<8x32xf32>
    %cst_119 = arith.constant dense<0.000000e+00> : vector<32xf32>
    %248 = vector.multi_reduction <add>, %247, %cst_119 [0] : vector<8x32xf32> to vector<32xf32>
    %249 = vector.shape_cast %248 : vector<32xf32> to vector<1x32xf32>
    %cst_120 = arith.constant 8.000000e+00 : f32
    %250 = vector.broadcast %cst_120 : f32 to vector<1x32xf32>
    %251 = arith.divf %249, %250 : vector<1x32xf32>
    %cst_121 = arith.constant dense<0.000000e+00> : vector<1x8xf32>
    %252 = tpu.matmul %251, %12, %cst_121 {dimension_numbers = #tpu.dot_dimension_numbers<[1], [0], [0], [1], [0, 0, 1, 1], [], []>} : vector<1x32xf32>, vector<32x8xf32>, vector<1x8xf32> -> vector<1x8xf32>
    %cst_122 = arith.constant 0.000000e+00 : f32
    %253 = vector.broadcast %cst_122 : f32 to vector<1x8xf32>
    %254 = arith.maximumf %252, %253 : vector<1x8xf32>
    %cst_123 = arith.constant dense<0.000000e+00> : vector<1x32xf32>
    %255 = tpu.matmul %254, %14, %cst_123 {dimension_numbers = #tpu.dot_dimension_numbers<[1], [0], [0], [1], [0, 0, 1, 1], [], []>} : vector<1x8xf32>, vector<8x32xf32>, vector<1x32xf32> -> vector<1x32xf32>
    %cst_124 = arith.constant 0.000000e+00 : f32
    %256 = vector.broadcast %cst_124 : f32 to vector<1x32xf32>
    %257 = arith.subf %256, %255 : vector<1x32xf32>
    %258 = math.exp %257 : vector<1x32xf32>
    %cst_125 = arith.constant 1.000000e+00 : f32
    %259 = vector.broadcast %cst_125 : f32 to vector<1x32xf32>
    %260 = arith.addf %259, %258 : vector<1x32xf32>
    %cst_126 = arith.constant 1.000000e+00 : f32
    %261 = vector.broadcast %cst_126 : f32 to vector<1x32xf32>
    %262 = arith.divf %261, %260 : vector<1x32xf32>
    %263 = vector.broadcast %262 : vector<1x32xf32> to vector<8x32xf32>
    %264 = arith.mulf %247, %263 : vector<8x32xf32>
    %c1_127 = arith.constant 1 : index
    %c0_128 = arith.constant 0 : index
    %c0_129 = arith.constant 0 : index
    %265 = vector.load %arg10[%c1_127, %c0_128, %c0_129] : memref<2x6x32xf32, #tpu.memory_space<vmem>>, vector<1x6x32xf32>
    %266 = vector.shape_cast %265 : vector<1x6x32xf32> to vector<6x32xf32>
    %c1_130 = arith.constant 1 : index
    %c0_131 = arith.constant 0 : index
    %c0_132 = arith.constant 0 : index
    %267 = vector.load %arg11[%c1_130, %c0_131, %c0_132] : memref<2x5x64xf32, #tpu.memory_space<vmem>>, vector<1x5x64xf32>
    %268 = vector.shape_cast %267 : vector<1x5x64xf32> to vector<5x64xf32>
    %c1_133 = arith.constant 1 : index
    %c0_134 = arith.constant 0 : index
    %c0_135 = arith.constant 0 : index
    %269 = vector.load %arg8[%c1_133, %c0_134, %c0_135] : memref<2x32x8xf32, #tpu.memory_space<vmem>>, vector<1x32x8xf32>
    %270 = vector.shape_cast %269 : vector<1x32x8xf32> to vector<32x8xf32>
    %c1_136 = arith.constant 1 : index
    %c0_137 = arith.constant 0 : index
    %c0_138 = arith.constant 0 : index
    %271 = vector.load %arg9[%c1_136, %c0_137, %c0_138] : memref<2x8x32xf32, #tpu.memory_space<vmem>>, vector<1x8x32xf32>
    %272 = vector.shape_cast %271 : vector<1x8x32xf32> to vector<8x32xf32>
    %273 = vector.extract_strided_slice %266 {offsets = [0, 0], sizes = [1, 32], strides = [1, 1]} : vector<6x32xf32> to vector<1x32xf32>
    %274 = vector.extract_strided_slice %266 {offsets = [1, 0], sizes = [1, 32], strides = [1, 1]} : vector<6x32xf32> to vector<1x32xf32>
    %cst_139 = arith.constant dense<0.000000e+00> : vector<8xf32>
    %275 = vector.multi_reduction <add>, %264, %cst_139 [1] : vector<8x32xf32> to vector<8xf32>
    %276 = vector.shape_cast %275 : vector<8xf32> to vector<8x1xf32>
    %cst_140 = arith.constant 3.200000e+01 : f32
    %277 = vector.broadcast %cst_140 : f32 to vector<8x1xf32>
    %278 = arith.divf %276, %277 : vector<8x1xf32>
    %279 = vector.broadcast %278 : vector<8x1xf32> to vector<8x32xf32>
    %280 = arith.subf %264, %279 : vector<8x32xf32>
    %281 = arith.mulf %280, %280 : vector<8x32xf32>
    %cst_141 = arith.constant dense<0.000000e+00> : vector<8xf32>
    %282 = vector.multi_reduction <add>, %281, %cst_141 [1] : vector<8x32xf32> to vector<8xf32>
    %283 = vector.shape_cast %282 : vector<8xf32> to vector<8x1xf32>
    %cst_142 = arith.constant 3.200000e+01 : f32
    %284 = vector.broadcast %cst_142 : f32 to vector<8x1xf32>
    %285 = arith.divf %283, %284 : vector<8x1xf32>
    %286 = vector.broadcast %278 : vector<8x1xf32> to vector<8x32xf32>
    %287 = arith.subf %264, %286 : vector<8x32xf32>
    %cst_143 = arith.constant 9.99999974E-6 : f32
    %288 = vector.broadcast %cst_143 : f32 to vector<8x1xf32>
    %289 = arith.addf %285, %288 : vector<8x1xf32>
    %290 = math.rsqrt %289 : vector<8x1xf32>
    %291 = vector.broadcast %290 : vector<8x1xf32> to vector<8x32xf32>
    %292 = arith.mulf %287, %291 : vector<8x32xf32>
    %293 = vector.broadcast %273 : vector<1x32xf32> to vector<8x32xf32>
    %294 = arith.mulf %292, %293 : vector<8x32xf32>
    %295 = vector.broadcast %274 : vector<1x32xf32> to vector<8x32xf32>
    %296 = arith.addf %294, %295 : vector<8x32xf32>
    %c1_144 = arith.constant 1 : index
    %c0_145 = arith.constant 0 : index
    %c0_146 = arith.constant 0 : index
    %c0_147 = arith.constant 0 : index
    %297 = vector.load %arg2[%c1_144, %c0_145, %c0_146, %c0_147] : memref<2x2x32x16xf32, #tpu.memory_space<vmem>>, vector<1x1x32x16xf32>
    %298 = vector.shape_cast %297 : vector<1x1x32x16xf32> to vector<32x16xf32>
    %cst_148 = arith.constant dense<0.000000e+00> : vector<8x16xf32>
    %299 = tpu.matmul %296, %298, %cst_148 {dimension_numbers = #tpu.dot_dimension_numbers<[1], [0], [0], [1], [0, 0, 1, 1], [], []>} : vector<8x32xf32>, vector<32x16xf32>, vector<8x16xf32> -> vector<8x16xf32>
    %c1_149 = arith.constant 1 : index
    %c0_150 = arith.constant 0 : index
    %c0_151 = arith.constant 0 : index
    %c0_152 = arith.constant 0 : index
    %300 = vector.load %arg3[%c1_149, %c0_150, %c0_151, %c0_152] : memref<2x2x32x16xf32, #tpu.memory_space<vmem>>, vector<1x1x32x16xf32>
    %301 = vector.shape_cast %300 : vector<1x1x32x16xf32> to vector<32x16xf32>
    %cst_153 = arith.constant dense<0.000000e+00> : vector<8x16xf32>
    %302 = tpu.matmul %296, %301, %cst_153 {dimension_numbers = #tpu.dot_dimension_numbers<[1], [0], [0], [1], [0, 0, 1, 1], [], []>} : vector<8x32xf32>, vector<32x16xf32>, vector<8x16xf32> -> vector<8x16xf32>
    %c1_154 = arith.constant 1 : index
    %c0_155 = arith.constant 0 : index
    %c0_156 = arith.constant 0 : index
    %c0_157 = arith.constant 0 : index
    %303 = vector.load %arg4[%c1_154, %c0_155, %c0_156, %c0_157] : memref<2x2x32x16xf32, #tpu.memory_space<vmem>>, vector<1x1x32x16xf32>
    %304 = vector.shape_cast %303 : vector<1x1x32x16xf32> to vector<32x16xf32>
    %cst_158 = arith.constant dense<0.000000e+00> : vector<8x16xf32>
    %305 = tpu.matmul %296, %304, %cst_158 {dimension_numbers = #tpu.dot_dimension_numbers<[1], [0], [0], [1], [0, 0, 1, 1], [], []>} : vector<8x32xf32>, vector<32x16xf32>, vector<8x16xf32> -> vector<8x16xf32>
    %cst_159 = arith.constant dense<0.000000e+00> : vector<8x8xf32>
    %306 = tpu.matmul %299, %302, %cst_159 {dimension_numbers = #tpu.dot_dimension_numbers<[1], [1], [0], [0], [0, 0, 1, 0], [], []>} : vector<8x16xf32>, vector<8x16xf32>, vector<8x8xf32> -> vector<8x8xf32>
    %cst_160 = arith.constant dense<0xFF800000> : vector<8xf32>
    %307 = vector.multi_reduction <maximumf>, %306, %cst_160 [1] : vector<8x8xf32> to vector<8xf32>
    %308 = vector.shape_cast %307 : vector<8xf32> to vector<8x1xf32>
    %309 = vector.broadcast %308 : vector<8x1xf32> to vector<8x8xf32>
    %310 = arith.subf %306, %309 : vector<8x8xf32>
    %311 = math.exp %310 : vector<8x8xf32>
    %cst_161 = arith.constant dense<0.000000e+00> : vector<8xf32>
    %312 = vector.multi_reduction <add>, %311, %cst_161 [1] : vector<8x8xf32> to vector<8xf32>
    %313 = vector.shape_cast %312 : vector<8xf32> to vector<8x1xf32>
    %314 = vector.broadcast %313 : vector<8x1xf32> to vector<8x8xf32>
    %315 = arith.divf %311, %314 : vector<8x8xf32>
    %cst_162 = arith.constant dense<0.000000e+00> : vector<8x16xf32>
    %316 = tpu.matmul %315, %305, %cst_162 {dimension_numbers = #tpu.dot_dimension_numbers<[1], [0], [0], [1], [0, 0, 1, 1], [], []>} : vector<8x8xf32>, vector<8x16xf32>, vector<8x16xf32> -> vector<8x16xf32>
    %c1_163 = arith.constant 1 : index
    %c0_164 = arith.constant 0 : index
    %c0_165 = arith.constant 0 : index
    %c0_166 = arith.constant 0 : index
    %317 = vector.load %arg5[%c1_163, %c0_164, %c0_165, %c0_166] : memref<2x2x16x32xf32, #tpu.memory_space<vmem>>, vector<1x1x16x32xf32>
    %318 = vector.shape_cast %317 : vector<1x1x16x32xf32> to vector<16x32xf32>
    %cst_167 = arith.constant dense<0.000000e+00> : vector<8x32xf32>
    %319 = tpu.matmul %316, %318, %cst_167 {dimension_numbers = #tpu.dot_dimension_numbers<[1], [0], [0], [1], [0, 0, 1, 1], [], []>} : vector<8x16xf32>, vector<16x32xf32>, vector<8x32xf32> -> vector<8x32xf32>
    %c1_168 = arith.constant 1 : index
    %c1_169 = arith.constant 1 : index
    %c0_170 = arith.constant 0 : index
    %c0_171 = arith.constant 0 : index
    %320 = vector.load %arg2[%c1_168, %c1_169, %c0_170, %c0_171] : memref<2x2x32x16xf32, #tpu.memory_space<vmem>>, vector<1x1x32x16xf32>
    %321 = vector.shape_cast %320 : vector<1x1x32x16xf32> to vector<32x16xf32>
    %cst_172 = arith.constant dense<0.000000e+00> : vector<8x16xf32>
    %322 = tpu.matmul %296, %321, %cst_172 {dimension_numbers = #tpu.dot_dimension_numbers<[1], [0], [0], [1], [0, 0, 1, 1], [], []>} : vector<8x32xf32>, vector<32x16xf32>, vector<8x16xf32> -> vector<8x16xf32>
    %c1_173 = arith.constant 1 : index
    %c1_174 = arith.constant 1 : index
    %c0_175 = arith.constant 0 : index
    %c0_176 = arith.constant 0 : index
    %323 = vector.load %arg3[%c1_173, %c1_174, %c0_175, %c0_176] : memref<2x2x32x16xf32, #tpu.memory_space<vmem>>, vector<1x1x32x16xf32>
    %324 = vector.shape_cast %323 : vector<1x1x32x16xf32> to vector<32x16xf32>
    %cst_177 = arith.constant dense<0.000000e+00> : vector<8x16xf32>
    %325 = tpu.matmul %296, %324, %cst_177 {dimension_numbers = #tpu.dot_dimension_numbers<[1], [0], [0], [1], [0, 0, 1, 1], [], []>} : vector<8x32xf32>, vector<32x16xf32>, vector<8x16xf32> -> vector<8x16xf32>
    %c1_178 = arith.constant 1 : index
    %c1_179 = arith.constant 1 : index
    %c0_180 = arith.constant 0 : index
    %c0_181 = arith.constant 0 : index
    %326 = vector.load %arg4[%c1_178, %c1_179, %c0_180, %c0_181] : memref<2x2x32x16xf32, #tpu.memory_space<vmem>>, vector<1x1x32x16xf32>
    %327 = vector.shape_cast %326 : vector<1x1x32x16xf32> to vector<32x16xf32>
    %cst_182 = arith.constant dense<0.000000e+00> : vector<8x16xf32>
    %328 = tpu.matmul %296, %327, %cst_182 {dimension_numbers = #tpu.dot_dimension_numbers<[1], [0], [0], [1], [0, 0, 1, 1], [], []>} : vector<8x32xf32>, vector<32x16xf32>, vector<8x16xf32> -> vector<8x16xf32>
    %cst_183 = arith.constant dense<0.000000e+00> : vector<8x8xf32>
    %329 = tpu.matmul %322, %325, %cst_183 {dimension_numbers = #tpu.dot_dimension_numbers<[1], [1], [0], [0], [0, 0, 1, 0], [], []>} : vector<8x16xf32>, vector<8x16xf32>, vector<8x8xf32> -> vector<8x8xf32>
    %cst_184 = arith.constant dense<0xFF800000> : vector<8xf32>
    %330 = vector.multi_reduction <maximumf>, %329, %cst_184 [1] : vector<8x8xf32> to vector<8xf32>
    %331 = vector.shape_cast %330 : vector<8xf32> to vector<8x1xf32>
    %332 = vector.broadcast %331 : vector<8x1xf32> to vector<8x8xf32>
    %333 = arith.subf %329, %332 : vector<8x8xf32>
    %334 = math.exp %333 : vector<8x8xf32>
    %cst_185 = arith.constant dense<0.000000e+00> : vector<8xf32>
    %335 = vector.multi_reduction <add>, %334, %cst_185 [1] : vector<8x8xf32> to vector<8xf32>
    %336 = vector.shape_cast %335 : vector<8xf32> to vector<8x1xf32>
    %337 = vector.broadcast %336 : vector<8x1xf32> to vector<8x8xf32>
    %338 = arith.divf %334, %337 : vector<8x8xf32>
    %cst_186 = arith.constant dense<0.000000e+00> : vector<8x16xf32>
    %339 = tpu.matmul %338, %328, %cst_186 {dimension_numbers = #tpu.dot_dimension_numbers<[1], [0], [0], [1], [0, 0, 1, 1], [], []>} : vector<8x8xf32>, vector<8x16xf32>, vector<8x16xf32> -> vector<8x16xf32>
    %c1_187 = arith.constant 1 : index
    %c1_188 = arith.constant 1 : index
    %c0_189 = arith.constant 0 : index
    %c0_190 = arith.constant 0 : index
    %340 = vector.load %arg5[%c1_187, %c1_188, %c0_189, %c0_190] : memref<2x2x16x32xf32, #tpu.memory_space<vmem>>, vector<1x1x16x32xf32>
    %341 = vector.shape_cast %340 : vector<1x1x16x32xf32> to vector<16x32xf32>
    %cst_191 = arith.constant dense<0.000000e+00> : vector<8x32xf32>
    %342 = tpu.matmul %339, %341, %cst_191 {dimension_numbers = #tpu.dot_dimension_numbers<[1], [0], [0], [1], [0, 0, 1, 1], [], []>} : vector<8x16xf32>, vector<16x32xf32>, vector<8x32xf32> -> vector<8x32xf32>
    %343 = arith.addf %319, %342 : vector<8x32xf32>
    %344 = arith.addf %264, %343 : vector<8x32xf32>
    %345 = vector.extract_strided_slice %266 {offsets = [4, 0], sizes = [1, 32], strides = [1, 1]} : vector<6x32xf32> to vector<1x32xf32>
    %346 = vector.broadcast %345 : vector<1x32xf32> to vector<8x32xf32>
    %347 = arith.addf %344, %346 : vector<8x32xf32>
    %cst_192 = arith.constant dense<0.000000e+00> : vector<32xf32>
    %348 = vector.multi_reduction <add>, %347, %cst_192 [0] : vector<8x32xf32> to vector<32xf32>
    %349 = vector.shape_cast %348 : vector<32xf32> to vector<1x32xf32>
    %cst_193 = arith.constant 8.000000e+00 : f32
    %350 = vector.broadcast %cst_193 : f32 to vector<1x32xf32>
    %351 = arith.divf %349, %350 : vector<1x32xf32>
    %cst_194 = arith.constant dense<0.000000e+00> : vector<1x8xf32>
    %352 = tpu.matmul %351, %270, %cst_194 {dimension_numbers = #tpu.dot_dimension_numbers<[1], [0], [0], [1], [0, 0, 1, 1], [], []>} : vector<1x32xf32>, vector<32x8xf32>, vector<1x8xf32> -> vector<1x8xf32>
    %cst_195 = arith.constant 0.000000e+00 : f32
    %353 = vector.broadcast %cst_195 : f32 to vector<1x8xf32>
    %354 = arith.maximumf %352, %353 : vector<1x8xf32>
    %cst_196 = arith.constant dense<0.000000e+00> : vector<1x32xf32>
    %355 = tpu.matmul %354, %272, %cst_196 {dimension_numbers = #tpu.dot_dimension_numbers<[1], [0], [0], [1], [0, 0, 1, 1], [], []>} : vector<1x8xf32>, vector<8x32xf32>, vector<1x32xf32> -> vector<1x32xf32>
    %cst_197 = arith.constant 0.000000e+00 : f32
    %356 = vector.broadcast %cst_197 : f32 to vector<1x32xf32>
    %357 = arith.subf %356, %355 : vector<1x32xf32>
    %358 = math.exp %357 : vector<1x32xf32>
    %cst_198 = arith.constant 1.000000e+00 : f32
    %359 = vector.broadcast %cst_198 : f32 to vector<1x32xf32>
    %360 = arith.addf %359, %358 : vector<1x32xf32>
    %cst_199 = arith.constant 1.000000e+00 : f32
    %361 = vector.broadcast %cst_199 : f32 to vector<1x32xf32>
    %362 = arith.divf %361, %360 : vector<1x32xf32>
    %363 = vector.broadcast %362 : vector<1x32xf32> to vector<8x32xf32>
    %364 = arith.mulf %347, %363 : vector<8x32xf32>
    %365 = vector.extract_strided_slice %266 {offsets = [2, 0], sizes = [1, 32], strides = [1, 1]} : vector<6x32xf32> to vector<1x32xf32>
    %366 = vector.extract_strided_slice %266 {offsets = [3, 0], sizes = [1, 32], strides = [1, 1]} : vector<6x32xf32> to vector<1x32xf32>
    %cst_200 = arith.constant dense<0.000000e+00> : vector<8xf32>
    %367 = vector.multi_reduction <add>, %364, %cst_200 [1] : vector<8x32xf32> to vector<8xf32>
    %368 = vector.shape_cast %367 : vector<8xf32> to vector<8x1xf32>
    %cst_201 = arith.constant 3.200000e+01 : f32
    %369 = vector.broadcast %cst_201 : f32 to vector<8x1xf32>
    %370 = arith.divf %368, %369 : vector<8x1xf32>
    %371 = vector.broadcast %370 : vector<8x1xf32> to vector<8x32xf32>
    %372 = arith.subf %364, %371 : vector<8x32xf32>
    %373 = arith.mulf %372, %372 : vector<8x32xf32>
    %cst_202 = arith.constant dense<0.000000e+00> : vector<8xf32>
    %374 = vector.multi_reduction <add>, %373, %cst_202 [1] : vector<8x32xf32> to vector<8xf32>
    %375 = vector.shape_cast %374 : vector<8xf32> to vector<8x1xf32>
    %cst_203 = arith.constant 3.200000e+01 : f32
    %376 = vector.broadcast %cst_203 : f32 to vector<8x1xf32>
    %377 = arith.divf %375, %376 : vector<8x1xf32>
    %378 = vector.broadcast %370 : vector<8x1xf32> to vector<8x32xf32>
    %379 = arith.subf %364, %378 : vector<8x32xf32>
    %cst_204 = arith.constant 9.99999974E-6 : f32
    %380 = vector.broadcast %cst_204 : f32 to vector<8x1xf32>
    %381 = arith.addf %377, %380 : vector<8x1xf32>
    %382 = math.rsqrt %381 : vector<8x1xf32>
    %383 = vector.broadcast %382 : vector<8x1xf32> to vector<8x32xf32>
    %384 = arith.mulf %379, %383 : vector<8x32xf32>
    %385 = vector.broadcast %365 : vector<1x32xf32> to vector<8x32xf32>
    %386 = arith.mulf %384, %385 : vector<8x32xf32>
    %387 = vector.broadcast %366 : vector<1x32xf32> to vector<8x32xf32>
    %388 = arith.addf %386, %387 : vector<8x32xf32>
    %c1_205 = arith.constant 1 : index
    %c0_206 = arith.constant 0 : index
    %c0_207 = arith.constant 0 : index
    %389 = vector.load %arg6[%c1_205, %c0_206, %c0_207] : memref<2x32x64xf32, #tpu.memory_space<vmem>>, vector<1x32x64xf32>
    %390 = vector.shape_cast %389 : vector<1x32x64xf32> to vector<32x64xf32>
    %cst_208 = arith.constant dense<0.000000e+00> : vector<8x64xf32>
    %391 = tpu.matmul %388, %390, %cst_208 {dimension_numbers = #tpu.dot_dimension_numbers<[1], [0], [0], [1], [0, 0, 1, 1], [], []>} : vector<8x32xf32>, vector<32x64xf32>, vector<8x64xf32> -> vector<8x64xf32>
    %392 = vector.extract_strided_slice %268 {offsets = [3, 0], sizes = [1, 64], strides = [1, 1]} : vector<5x64xf32> to vector<1x64xf32>
    %393 = vector.broadcast %392 : vector<1x64xf32> to vector<8x64xf32>
    %394 = arith.addf %391, %393 : vector<8x64xf32>
    %cst_209 = arith.constant 5.000000e-01 : f32
    %395 = vector.broadcast %cst_209 : f32 to vector<8x64xf32>
    %396 = arith.mulf %395, %394 : vector<8x64xf32>
    %cst_210 = arith.constant 0.707106769 : f32
    %397 = vector.broadcast %cst_210 : f32 to vector<8x64xf32>
    %398 = arith.mulf %394, %397 : vector<8x64xf32>
    %399 = math.absf %398 : vector<8x64xf32>
    %cst_211 = arith.constant 0.327591091 : f32
    %400 = vector.broadcast %cst_211 : f32 to vector<8x64xf32>
    %401 = arith.mulf %400, %399 : vector<8x64xf32>
    %cst_212 = arith.constant 1.000000e+00 : f32
    %402 = vector.broadcast %cst_212 : f32 to vector<8x64xf32>
    %403 = arith.addf %402, %401 : vector<8x64xf32>
    %cst_213 = arith.constant 1.000000e+00 : f32
    %404 = vector.broadcast %cst_213 : f32 to vector<8x64xf32>
    %405 = arith.divf %404, %403 : vector<8x64xf32>
    %cst_214 = arith.constant 1.06140542 : f32
    %406 = vector.broadcast %cst_214 : f32 to vector<8x64xf32>
    %407 = arith.mulf %406, %405 : vector<8x64xf32>
    %cst_215 = arith.constant -1.45315206 : f32
    %408 = vector.broadcast %cst_215 : f32 to vector<8x64xf32>
    %409 = arith.addf %407, %408 : vector<8x64xf32>
    %410 = arith.mulf %409, %405 : vector<8x64xf32>
    %cst_216 = arith.constant 1.42141378 : f32
    %411 = vector.broadcast %cst_216 : f32 to vector<8x64xf32>
    %412 = arith.addf %410, %411 : vector<8x64xf32>
    %413 = arith.mulf %412, %405 : vector<8x64xf32>
    %cst_217 = arith.constant -0.284496725 : f32
    %414 = vector.broadcast %cst_217 : f32 to vector<8x64xf32>
    %415 = arith.addf %413, %414 : vector<8x64xf32>
    %416 = arith.mulf %415, %405 : vector<8x64xf32>
    %cst_218 = arith.constant 0.254829586 : f32
    %417 = vector.broadcast %cst_218 : f32 to vector<8x64xf32>
    %418 = arith.addf %416, %417 : vector<8x64xf32>
    %419 = arith.mulf %418, %405 : vector<8x64xf32>
    %cst_219 = arith.constant 0.000000e+00 : f32
    %420 = vector.broadcast %cst_219 : f32 to vector<8x64xf32>
    %421 = arith.subf %420, %399 : vector<8x64xf32>
    %422 = arith.mulf %421, %399 : vector<8x64xf32>
    %423 = math.exp %422 : vector<8x64xf32>
    %424 = arith.mulf %419, %423 : vector<8x64xf32>
    %cst_220 = arith.constant 1.000000e+00 : f32
    %425 = vector.broadcast %cst_220 : f32 to vector<8x64xf32>
    %426 = arith.subf %425, %424 : vector<8x64xf32>
    %cst_221 = arith.constant 0.000000e+00 : f32
    %427 = vector.broadcast %cst_221 : f32 to vector<8x64xf32>
    %428 = arith.cmpf olt, %398, %427 : vector<8x64xf32>
    %cst_222 = arith.constant 0.000000e+00 : f32
    %429 = vector.broadcast %cst_222 : f32 to vector<8x64xf32>
    %430 = arith.subf %429, %426 : vector<8x64xf32>
    %431 = arith.select %428, %430, %426 : vector<8x64xi1>, vector<8x64xf32>
    %cst_223 = arith.constant 1.000000e+00 : f32
    %432 = vector.broadcast %cst_223 : f32 to vector<8x64xf32>
    %433 = arith.addf %432, %431 : vector<8x64xf32>
    %434 = arith.mulf %396, %433 : vector<8x64xf32>
    %c1_i32_224 = arith.constant 1 : i32
    %435 = tpu.dynamic_rotate %434 by %c1_i32_224 dim 0 : vector<8x64xf32>, i32 -> vector<8x64xf32>
    %cst_225 = arith.constant 0.000000e+00 : f32
    %436 = vector.shape_cast %2 : vector<8x1xi1> to vector<8x1xi1>
    %437 = vector.broadcast %436 : vector<8x1xi1> to vector<8x64xi1>
    %438 = vector.broadcast %cst_225 : f32 to vector<8x64xf32>
    %439 = arith.select %437, %435, %438 : vector<8x64xi1>, vector<8x64xf32>
    %c7_i32_226 = arith.constant 7 : i32
    %440 = tpu.dynamic_rotate %434 by %c7_i32_226 dim 0 : vector<8x64xf32>, i32 -> vector<8x64xf32>
    %cst_227 = arith.constant 0.000000e+00 : f32
    %441 = vector.shape_cast %4 : vector<8x1xi1> to vector<8x1xi1>
    %442 = vector.broadcast %441 : vector<8x1xi1> to vector<8x64xi1>
    %443 = vector.broadcast %cst_227 : f32 to vector<8x64xf32>
    %444 = arith.select %442, %440, %443 : vector<8x64xi1>, vector<8x64xf32>
    %445 = vector.extract_strided_slice %268 {offsets = [0, 0], sizes = [1, 64], strides = [1, 1]} : vector<5x64xf32> to vector<1x64xf32>
    %446 = vector.broadcast %445 : vector<1x64xf32> to vector<8x64xf32>
    %447 = arith.mulf %439, %446 : vector<8x64xf32>
    %448 = vector.extract_strided_slice %268 {offsets = [1, 0], sizes = [1, 64], strides = [1, 1]} : vector<5x64xf32> to vector<1x64xf32>
    %449 = vector.broadcast %448 : vector<1x64xf32> to vector<8x64xf32>
    %450 = arith.mulf %434, %449 : vector<8x64xf32>
    %451 = arith.addf %447, %450 : vector<8x64xf32>
    %452 = vector.extract_strided_slice %268 {offsets = [2, 0], sizes = [1, 64], strides = [1, 1]} : vector<5x64xf32> to vector<1x64xf32>
    %453 = vector.broadcast %452 : vector<1x64xf32> to vector<8x64xf32>
    %454 = arith.mulf %444, %453 : vector<8x64xf32>
    %455 = arith.addf %451, %454 : vector<8x64xf32>
    %456 = vector.extract_strided_slice %268 {offsets = [4, 0], sizes = [1, 64], strides = [1, 1]} : vector<5x64xf32> to vector<1x64xf32>
    %457 = vector.broadcast %456 : vector<1x64xf32> to vector<8x64xf32>
    %458 = arith.addf %455, %457 : vector<8x64xf32>
    %cst_228 = arith.constant 5.000000e-01 : f32
    %459 = vector.broadcast %cst_228 : f32 to vector<8x64xf32>
    %460 = arith.mulf %459, %458 : vector<8x64xf32>
    %cst_229 = arith.constant 0.707106769 : f32
    %461 = vector.broadcast %cst_229 : f32 to vector<8x64xf32>
    %462 = arith.mulf %458, %461 : vector<8x64xf32>
    %463 = math.absf %462 : vector<8x64xf32>
    %cst_230 = arith.constant 0.327591091 : f32
    %464 = vector.broadcast %cst_230 : f32 to vector<8x64xf32>
    %465 = arith.mulf %464, %463 : vector<8x64xf32>
    %cst_231 = arith.constant 1.000000e+00 : f32
    %466 = vector.broadcast %cst_231 : f32 to vector<8x64xf32>
    %467 = arith.addf %466, %465 : vector<8x64xf32>
    %cst_232 = arith.constant 1.000000e+00 : f32
    %468 = vector.broadcast %cst_232 : f32 to vector<8x64xf32>
    %469 = arith.divf %468, %467 : vector<8x64xf32>
    %cst_233 = arith.constant 1.06140542 : f32
    %470 = vector.broadcast %cst_233 : f32 to vector<8x64xf32>
    %471 = arith.mulf %470, %469 : vector<8x64xf32>
    %cst_234 = arith.constant -1.45315206 : f32
    %472 = vector.broadcast %cst_234 : f32 to vector<8x64xf32>
    %473 = arith.addf %471, %472 : vector<8x64xf32>
    %474 = arith.mulf %473, %469 : vector<8x64xf32>
    %cst_235 = arith.constant 1.42141378 : f32
    %475 = vector.broadcast %cst_235 : f32 to vector<8x64xf32>
    %476 = arith.addf %474, %475 : vector<8x64xf32>
    %477 = arith.mulf %476, %469 : vector<8x64xf32>
    %cst_236 = arith.constant -0.284496725 : f32
    %478 = vector.broadcast %cst_236 : f32 to vector<8x64xf32>
    %479 = arith.addf %477, %478 : vector<8x64xf32>
    %480 = arith.mulf %479, %469 : vector<8x64xf32>
    %cst_237 = arith.constant 0.254829586 : f32
    %481 = vector.broadcast %cst_237 : f32 to vector<8x64xf32>
    %482 = arith.addf %480, %481 : vector<8x64xf32>
    %483 = arith.mulf %482, %469 : vector<8x64xf32>
    %cst_238 = arith.constant 0.000000e+00 : f32
    %484 = vector.broadcast %cst_238 : f32 to vector<8x64xf32>
    %485 = arith.subf %484, %463 : vector<8x64xf32>
    %486 = arith.mulf %485, %463 : vector<8x64xf32>
    %487 = math.exp %486 : vector<8x64xf32>
    %488 = arith.mulf %483, %487 : vector<8x64xf32>
    %cst_239 = arith.constant 1.000000e+00 : f32
    %489 = vector.broadcast %cst_239 : f32 to vector<8x64xf32>
    %490 = arith.subf %489, %488 : vector<8x64xf32>
    %cst_240 = arith.constant 0.000000e+00 : f32
    %491 = vector.broadcast %cst_240 : f32 to vector<8x64xf32>
    %492 = arith.cmpf olt, %462, %491 : vector<8x64xf32>
    %cst_241 = arith.constant 0.000000e+00 : f32
    %493 = vector.broadcast %cst_241 : f32 to vector<8x64xf32>
    %494 = arith.subf %493, %490 : vector<8x64xf32>
    %495 = arith.select %492, %494, %490 : vector<8x64xi1>, vector<8x64xf32>
    %cst_242 = arith.constant 1.000000e+00 : f32
    %496 = vector.broadcast %cst_242 : f32 to vector<8x64xf32>
    %497 = arith.addf %496, %495 : vector<8x64xf32>
    %498 = arith.mulf %460, %497 : vector<8x64xf32>
    %c1_243 = arith.constant 1 : index
    %c0_244 = arith.constant 0 : index
    %c0_245 = arith.constant 0 : index
    %499 = vector.load %arg7[%c1_243, %c0_244, %c0_245] : memref<2x64x32xf32, #tpu.memory_space<vmem>>, vector<1x64x32xf32>
    %500 = vector.shape_cast %499 : vector<1x64x32xf32> to vector<64x32xf32>
    %cst_246 = arith.constant dense<0.000000e+00> : vector<8x32xf32>
    %501 = tpu.matmul %498, %500, %cst_246 {dimension_numbers = #tpu.dot_dimension_numbers<[1], [0], [0], [1], [0, 0, 1, 1], [], []>} : vector<8x64xf32>, vector<64x32xf32>, vector<8x32xf32> -> vector<8x32xf32>
    %502 = vector.extract_strided_slice %266 {offsets = [5, 0], sizes = [1, 32], strides = [1, 1]} : vector<6x32xf32> to vector<1x32xf32>
    %503 = vector.broadcast %502 : vector<1x32xf32> to vector<8x32xf32>
    %504 = arith.addf %501, %503 : vector<8x32xf32>
    %505 = arith.addf %364, %504 : vector<8x32xf32>
    %cst_247 = arith.constant dense<0.000000e+00> : vector<32xf32>
    %506 = vector.multi_reduction <add>, %505, %cst_247 [0] : vector<8x32xf32> to vector<32xf32>
    %507 = vector.shape_cast %506 : vector<32xf32> to vector<1x32xf32>
    %cst_248 = arith.constant 8.000000e+00 : f32
    %508 = vector.broadcast %cst_248 : f32 to vector<1x32xf32>
    %509 = arith.divf %507, %508 : vector<1x32xf32>
    %cst_249 = arith.constant dense<0.000000e+00> : vector<1x8xf32>
    %510 = tpu.matmul %509, %270, %cst_249 {dimension_numbers = #tpu.dot_dimension_numbers<[1], [0], [0], [1], [0, 0, 1, 1], [], []>} : vector<1x32xf32>, vector<32x8xf32>, vector<1x8xf32> -> vector<1x8xf32>
    %cst_250 = arith.constant 0.000000e+00 : f32
    %511 = vector.broadcast %cst_250 : f32 to vector<1x8xf32>
    %512 = arith.maximumf %510, %511 : vector<1x8xf32>
    %cst_251 = arith.constant dense<0.000000e+00> : vector<1x32xf32>
    %513 = tpu.matmul %512, %272, %cst_251 {dimension_numbers = #tpu.dot_dimension_numbers<[1], [0], [0], [1], [0, 0, 1, 1], [], []>} : vector<1x8xf32>, vector<8x32xf32>, vector<1x32xf32> -> vector<1x32xf32>
    %cst_252 = arith.constant 0.000000e+00 : f32
    %514 = vector.broadcast %cst_252 : f32 to vector<1x32xf32>
    %515 = arith.subf %514, %513 : vector<1x32xf32>
    %516 = math.exp %515 : vector<1x32xf32>
    %cst_253 = arith.constant 1.000000e+00 : f32
    %517 = vector.broadcast %cst_253 : f32 to vector<1x32xf32>
    %518 = arith.addf %517, %516 : vector<1x32xf32>
    %cst_254 = arith.constant 1.000000e+00 : f32
    %519 = vector.broadcast %cst_254 : f32 to vector<1x32xf32>
    %520 = arith.divf %519, %518 : vector<1x32xf32>
    %521 = vector.broadcast %520 : vector<1x32xf32> to vector<8x32xf32>
    %522 = arith.mulf %505, %521 : vector<8x32xf32>
    %c0_255 = arith.constant 0 : index
    %c0_256 = arith.constant 0 : index
    %c0_257 = arith.constant 0 : index
    %523 = vector.load %arg12[%c0_255, %c0_256, %c0_257] : memref<1x8x32xf32, #tpu.memory_space<vmem>>, vector<1x8x32xf32>
    %524 = vector.shape_cast %523 : vector<1x8x32xf32> to vector<8x32xf32>
    %525 = vector.shape_cast %522 : vector<8x32xf32> to vector<1x8x32xf32>
    tpu.vector_store %arg12[%c0_255, %c0_256, %c0_257], %525 {strides = array<i32>} : memref<1x8x32xf32, #tpu.memory_space<vmem>>, vector<1x8x32xf32>,
    return
  }
  func.func @transform_0(%arg0: i32) -> (i32, i32, i32) {
    %c0_i32 = arith.constant 0 : i32
    %c0_i32_0 = arith.constant 0 : i32
    %c0_i32_1 = arith.constant 0 : i32
    return %arg0, %c0_i32, %c0_i32_0 : i32, i32, i32
  }
  func.func @transform_1(%arg0: i32) -> (i32, i32, i32, i32) {
    %c0_i32 = arith.constant 0 : i32
    %c0_i32_0 = arith.constant 0 : i32
    %c0_i32_1 = arith.constant 0 : i32
    %c0_i32_2 = arith.constant 0 : i32
    %c0_i32_3 = arith.constant 0 : i32
    return %c0_i32, %c0_i32_0, %c0_i32_1, %c0_i32_2 : i32, i32, i32, i32
  }
  func.func @transform_2(%arg0: i32) -> (i32, i32, i32, i32) {
    %c0_i32 = arith.constant 0 : i32
    %c0_i32_0 = arith.constant 0 : i32
    %c0_i32_1 = arith.constant 0 : i32
    %c0_i32_2 = arith.constant 0 : i32
    %c0_i32_3 = arith.constant 0 : i32
    return %c0_i32, %c0_i32_0, %c0_i32_1, %c0_i32_2 : i32, i32, i32, i32
  }
  func.func @transform_3(%arg0: i32) -> (i32, i32, i32, i32) {
    %c0_i32 = arith.constant 0 : i32
    %c0_i32_0 = arith.constant 0 : i32
    %c0_i32_1 = arith.constant 0 : i32
    %c0_i32_2 = arith.constant 0 : i32
    %c0_i32_3 = arith.constant 0 : i32
    return %c0_i32, %c0_i32_0, %c0_i32_1, %c0_i32_2 : i32, i32, i32, i32
  }
  func.func @transform_4(%arg0: i32) -> (i32, i32, i32, i32) {
    %c0_i32 = arith.constant 0 : i32
    %c0_i32_0 = arith.constant 0 : i32
    %c0_i32_1 = arith.constant 0 : i32
    %c0_i32_2 = arith.constant 0 : i32
    %c0_i32_3 = arith.constant 0 : i32
    return %c0_i32, %c0_i32_0, %c0_i32_1, %c0_i32_2 : i32, i32, i32, i32
  }
  func.func @transform_5(%arg0: i32) -> (i32, i32, i32) {
    %c0_i32 = arith.constant 0 : i32
    %c0_i32_0 = arith.constant 0 : i32
    %c0_i32_1 = arith.constant 0 : i32
    %c0_i32_2 = arith.constant 0 : i32
    return %c0_i32, %c0_i32_0, %c0_i32_1 : i32, i32, i32
  }
  func.func @transform_6(%arg0: i32) -> (i32, i32, i32) {
    %c0_i32 = arith.constant 0 : i32
    %c0_i32_0 = arith.constant 0 : i32
    %c0_i32_1 = arith.constant 0 : i32
    %c0_i32_2 = arith.constant 0 : i32
    return %c0_i32, %c0_i32_0, %c0_i32_1 : i32, i32, i32
  }
  func.func @transform_7(%arg0: i32) -> (i32, i32, i32) {
    %c0_i32 = arith.constant 0 : i32
    %c0_i32_0 = arith.constant 0 : i32
    %c0_i32_1 = arith.constant 0 : i32
    %c0_i32_2 = arith.constant 0 : i32
    return %c0_i32, %c0_i32_0, %c0_i32_1 : i32, i32, i32
  }
  func.func @transform_8(%arg0: i32) -> (i32, i32, i32) {
    %c0_i32 = arith.constant 0 : i32
    %c0_i32_0 = arith.constant 0 : i32
    %c0_i32_1 = arith.constant 0 : i32
    %c0_i32_2 = arith.constant 0 : i32
    return %c0_i32, %c0_i32_0, %c0_i32_1 : i32, i32, i32
  }
  func.func @transform_9(%arg0: i32) -> (i32, i32, i32) {
    %c0_i32 = arith.constant 0 : i32
    %c0_i32_0 = arith.constant 0 : i32
    %c0_i32_1 = arith.constant 0 : i32
    %c0_i32_2 = arith.constant 0 : i32
    return %c0_i32, %c0_i32_0, %c0_i32_1 : i32, i32, i32
  }
  func.func @transform_10(%arg0: i32) -> (i32, i32, i32) {
    %c0_i32 = arith.constant 0 : i32
    %c0_i32_0 = arith.constant 0 : i32
    %c0_i32_1 = arith.constant 0 : i32
    %c0_i32_2 = arith.constant 0 : i32
    return %c0_i32, %c0_i32_0, %c0_i32_1 : i32, i32, i32
  }
  func.func @transform_11(%arg0: i32) -> (i32, i32, i32) {
    %c0_i32 = arith.constant 0 : i32
    %c0_i32_0 = arith.constant 0 : i32
    %c0_i32_1 = arith.constant 0 : i32
    return %arg0, %c0_i32, %c0_i32_0 : i32, i32, i32
  }
}

</mosaic_0001>

<llo_original>
// kernel: tpu_custom_call.1
$region0: #{tpu_custom_call.1}
  #allocation0 [shape = 'u32[]', space=smem, size = 0x4, offset = 0x4, fixed_abs, tag = 'smem constant byte address 0x4 - core index']
  #allocation1 [shape = 'u32[144,128]{1,0:T(1,128)}', space=vmem, size = 0x12000, scoped, tag = 'internal scratch']
  %s0 = inlined_call_operand.vmem [shape: f32[2,8,32], index: 0, kind: input, shape index: {}]
  %s1 = inlined_call_operand.vmem [shape: f32[2,2,32,16], index: 1, kind: input, shape index: {}]
  %s2 = inlined_call_operand.vmem [shape: f32[2,2,32,16], index: 2, kind: input, shape index: {}]
  %s3 = inlined_call_operand.vmem [shape: f32[2,2,32,16], index: 3, kind: input, shape index: {}]
  %s4 = inlined_call_operand.vmem [shape: f32[2,2,16,32], index: 4, kind: input, shape index: {}]
  %s5 = inlined_call_operand.vmem [shape: f32[2,32,64], index: 5, kind: input, shape index: {}]
  %s6 = inlined_call_operand.vmem [shape: f32[2,64,32], index: 6, kind: input, shape index: {}]
  %s7 = inlined_call_operand.vmem [shape: f32[2,32,8], index: 7, kind: input, shape index: {}]
  %s8 = inlined_call_operand.vmem [shape: f32[2,8,32], index: 8, kind: input, shape index: {}]
  %s9 = inlined_call_operand.vmem [shape: f32[2,6,32], index: 9, kind: input, shape index: {}]
  %s10 = inlined_call_operand.vmem [shape: f32[2,5,64], index: 10, kind: input, shape index: {}]
  %s11 = inlined_call_operand.hbm [shape: f32[2,8,32], index: 11, kind: output, shape index: {}]
  %s12 = sld [smem:[#allocation0]]
  $region77: #{tpu_custom_call.1} parent=0
    _
  %s14 = ssub.s32 1, %s12
  %s15 = scalar_select 0, %s14, %s12
  $region1: #{tpu_custom_call.1} parent=0
    #allocation2 [shape = 'u8[8192]{0}', space=vmem, size = 0x2000, scoped, tag = 'output window, operand 0']
    #allocation3 [shape = 's32[2]{0}', space=sflag, size = 0x8, scoped, tag = 'scoped memory for tpu_custom_call.1']
    %16 = vsyncpa [#allocation3], 0
    %s17 = scalar_lea.sflag [#allocation3], 1
    %18 = vsyncpa %s17, 0
    loop: start=0, step=1, limit=4
    $region2: #{tpu_custom_call.1} parent=1 // loop_pre_header
      _
    $region3: #{tpu_custom_call.1} parent=1 // loop_header
      %s20 = sphi 0, %s24
      %p21 = scmp.ge.s32.totalorder %s20, 4
      %s30 = sphi 0, %s32
      %s33 = sphi 0, %s30
      %s34 = sphi 0, %s33
      %s50 = sphi 0, %s34
      %s54 = sphi 0, %s54
      %s56 = sphi 0, %s54
      %s57 = sphi 0, %s56
      %s71 = sphi 0, %s57
      %s75 = sphi 0, %s75
      %s77 = sphi 0, %s75
      %s78 = sphi 0, %s77
      %s92 = sphi 0, %s78
      %s96 = sphi 0, %s96
      %s98 = sphi 0, %s96
      %s99 = sphi 0, %s98
      %s113 = sphi 0, %s99
      %s117 = sphi 0, %s117
      %s119 = sphi 0, %s117
      %s120 = sphi 0, %s119
      %s134 = sphi 0, %s120
      %s138 = sphi 0, %s138
      %s140 = sphi 0, %s138
      %s141 = sphi 0, %s140
      %s155 = sphi 0, %s141
      %s159 = sphi 0, %s159
      %s161 = sphi 0, %s159
      %s162 = sphi 0, %s161
      %s176 = sphi 0, %s162
      %s180 = sphi 0, %s180
      %s182 = sphi 0, %s180
      %s183 = sphi 0, %s182
      %s197 = sphi 0, %s183
      %s201 = sphi 0, %s201
      %s203 = sphi 0, %s201
      %s204 = sphi 0, %s203
      %s218 = sphi 0, %s204
      %s222 = sphi 0, %s222
      %s224 = sphi 0, %s222
      %s225 = sphi 0, %s224
      %s239 = sphi 0, %s225
      %s243 = sphi 0, %s243
      %s245 = sphi 0, %s243
      %s246 = sphi 0, %s245
      %s260 = sphi 0, %s246
      %s266 = sphi 0, %s268
      %s269 = sphi 0, %s266
      %s270 = sphi 0, %s269
      %s286 = sphi 0, %s270
    $region4: #{tpu_custom_call.1} parent=1 // loop_header_branch
      %23 = sbr.rel (%p21) target = $region8
    $region5: #{tpu_custom_call.1} parent=1 // loop_body
      %s25 = ssub.s32 %s20, 1
      %s26 = ssub.s32 %s20, 2
      %s27 = sadd.s32 %s20, 1
      %s28 = ssub.s32 %s20, %s27
      %p29 = scmp.eq.s32.totalorder %s28, 0
      %s31 = sadd.s32 %s30, 1
      %s32 = scalar_select %p29, %s30, %s31
      %p35 = pneg %p29
      %p36 = scmp.eq.s32.totalorder %s20, 1
      %p37 = por %p35, %p36
      %p38 = scmp.ne.s32.totalorder %s30, %s33
      %p39 = scmp.eq.s32.totalorder %s20, 0
      %p40 = por %p38, %p39
      %p41 = scmp.ne.s32.totalorder %s30, %s33
      %p42 = scmp.eq.s32.totalorder %s25, 1
      %p43 = por %p41, %p42
      %p44 = scmp.ne.s32.totalorder %s33, %s34
      %p45 = scmp.eq.s32.totalorder %s25, 0
      %p46 = por %p44, %p45
      %p47 = scmp.ne.s32.totalorder %s33, %s34
      %p48 = scmp.eq.s32.totalorder %s26, 1
      %p49 = por %p47, %p48
      %p51 = scmp.ne.s32.totalorder %s34, %s50
      %p52 = scmp.eq.s32.totalorder %s26, 0
      %p53 = por %p51, %p52
      %s55 = sadd.s32 %s54, 1
      %p58 = scmp.eq.s32.totalorder %s20, 1
      %p59 = scmp.ne.s32.totalorder %s54, %s56
      %p60 = scmp.eq.s32.totalorder %s20, 0
      %p61 = por %p59, %p60
      %p62 = scmp.ne.s32.totalorder %s54, %s56
      %p63 = scmp.eq.s32.totalorder %s25, 1
      %p64 = por %p62, %p63
      %p65 = scmp.ne.s32.totalorder %s56, %s57
      %p66 = scmp.eq.s32.totalorder %s25, 0
      %p67 = por %p65, %p66
      %p68 = scmp.ne.s32.totalorder %s56, %s57
      %p69 = scmp.eq.s32.totalorder %s26, 1
      %p70 = por %p68, %p69
      %p72 = scmp.ne.s32.totalorder %s57, %s71
      %p73 = scmp.eq.s32.totalorder %s26, 0
      %p74 = por %p72, %p73
      %s76 = sadd.s32 %s75, 1
      %p79 = scmp.eq.s32.totalorder %s20, 1
      %p80 = scmp.ne.s32.totalorder %s75, %s77
      %p81 = scmp.eq.s32.totalorder %s20, 0
      %p82 = por %p80, %p81
      %p83 = scmp.ne.s32.totalorder %s75, %s77
      %p84 = scmp.eq.s32.totalorder %s25, 1
      %p85 = por %p83, %p84
      %p86 = scmp.ne.s32.totalorder %s77, %s78
      %p87 = scmp.eq.s32.totalorder %s25, 0
      %p88 = por %p86, %p87
      %p89 = scmp.ne.s32.totalorder %s77, %s78
      %p90 = scmp.eq.s32.totalorder %s26, 1
      %p91 = por %p89, %p90
      %p93 = scmp.ne.s32.totalorder %s78, %s92
      %p94 = scmp.eq.s32.totalorder %s26, 0
      %p95 = por %p93, %p94
      %s97 = sadd.s32 %s96, 1
      %p100 = scmp.eq.s32.totalorder %s20, 1
      %p101 = scmp.ne.s32.totalorder %s96, %s98
      %p102 = scmp.eq.s32.totalorder %s20, 0
      %p103 = por %p101, %p102
      %p104 = scmp.ne.s32.totalorder %s96, %s98
      %p105 = scmp.eq.s32.totalorder %s25, 1
      %p106 = por %p104, %p105
      %p107 = scmp.ne.s32.totalorder %s98, %s99
      %p108 = scmp.eq.s32.totalorder %s25, 0
      %p109 = por %p107, %p108
      %p110 = scmp.ne.s32.totalorder %s98, %s99
      %p111 = scmp.eq.s32.totalorder %s26, 1
      %p112 = por %p110, %p111
      %p114 = scmp.ne.s32.totalorder %s99, %s113
      %p115 = scmp.eq.s32.totalorder %s26, 0
      %p116 = por %p114, %p115
      %s118 = sadd.s32 %s117, 1
      %p121 = scmp.eq.s32.totalorder %s20, 1
      %p122 = scmp.ne.s32.totalorder %s117, %s119
      %p123 = scmp.eq.s32.totalorder %s20, 0
      %p124 = por %p122, %p123
      %p125 = scmp.ne.s32.totalorder %s117, %s119
      %p126 = scmp.eq.s32.totalorder %s25, 1
      %p127 = por %p125, %p126
      %p128 = scmp.ne.s32.totalorder %s119, %s120
      %p129 = scmp.eq.s32.totalorder %s25, 0
      %p130 = por %p128, %p129
      %p131 = scmp.ne.s32.totalorder %s119, %s120
      %p132 = scmp.eq.s32.totalorder %s26, 1
      %p133 = por %p131, %p132
      %p135 = scmp.ne.s32.totalorder %s120, %s134
      %p136 = scmp.eq.s32.totalorder %s26, 0
      %p137 = por %p135, %p136
      %s139 = sadd.s32 %s138, 1
      %p142 = scmp.eq.s32.totalorder %s20, 1
      %p143 = scmp.ne.s32.totalorder %s138, %s140
      %p144 = scmp.eq.s32.totalorder %s20, 0
      %p145 = por %p143, %p144
      %p146 = scmp.ne.s32.totalorder %s138, %s140
      %p147 = scmp.eq.s32.totalorder %s25, 1
      %p148 = por %p146, %p147
      %p149 = scmp.ne.s32.totalorder %s140, %s141
      %p150 = scmp.eq.s32.totalorder %s25, 0
      %p151 = por %p149, %p150
      %p152 = scmp.ne.s32.totalorder %s140, %s141
      %p153 = scmp.eq.s32.totalorder %s26, 1
      %p154 = por %p152, %p153
      %p156 = scmp.ne.s32.totalorder %s141, %s155
      %p157 = scmp.eq.s32.totalorder %s26, 0
      %p158 = por %p156, %p157
      %s160 = sadd.s32 %s159, 1
      %p163 = scmp.eq.s32.totalorder %s20, 1
      %p164 = scmp.ne.s32.totalorder %s159, %s161
      %p165 = scmp.eq.s32.totalorder %s20, 0
      %p166 = por %p164, %p165
      %p167 = scmp.ne.s32.totalorder %s159, %s161
      %p168 = scmp.eq.s32.totalorder %s25, 1
      %p169 = por %p167, %p168
      %p170 = scmp.ne.s32.totalorder %s161, %s162
      %p171 = scmp.eq.s32.totalorder %s25, 0
      %p172 = por %p170, %p171
      %p173 = scmp.ne.s32.totalorder %s161, %s162
      %p174 = scmp.eq.s32.totalorder %s26, 1
      %p175 = por %p173, %p174
      %p177 = scmp.ne.s32.totalorder %s162, %s176
      %p178 = scmp.eq.s32.totalorder %s26, 0
      %p179 = por %p177, %p178
      %s181 = sadd.s32 %s180, 1
      %p184 = scmp.eq.s32.totalorder %s20, 1
      %p185 = scmp.ne.s32.totalorder %s180, %s182
      %p186 = scmp.eq.s32.totalorder %s20, 0
      %p187 = por %p185, %p186
      %p188 = scmp.ne.s32.totalorder %s180, %s182
      %p189 = scmp.eq.s32.totalorder %s25, 1
      %p190 = por %p188, %p189
      %p191 = scmp.ne.s32.totalorder %s182, %s183
      %p192 = scmp.eq.s32.totalorder %s25, 0
      %p193 = por %p191, %p192
      %p194 = scmp.ne.s32.totalorder %s182, %s183
      %p195 = scmp.eq.s32.totalorder %s26, 1
      %p196 = por %p194, %p195
      %p198 = scmp.ne.s32.totalorder %s183, %s197
      %p199 = scmp.eq.s32.totalorder %s26, 0
      %p200 = por %p198, %p199
      %s202 = sadd.s32 %s201, 1
      %p205 = scmp.eq.s32.totalorder %s20, 1
      %p206 = scmp.ne.s32.totalorder %s201, %s203
      %p207 = scmp.eq.s32.totalorder %s20, 0
      %p208 = por %p206, %p207
      %p209 = scmp.ne.s32.totalorder %s201, %s203
      %p210 = scmp.eq.s32.totalorder %s25, 1
      %p211 = por %p209, %p210
      %p212 = scmp.ne.s32.totalorder %s203, %s204
      %p213 = scmp.eq.s32.totalorder %s25, 0
      %p214 = por %p212, %p213
      %p215 = scmp.ne.s32.totalorder %s203, %s204
      %p216 = scmp.eq.s32.totalorder %s26, 1
      %p217 = por %p215, %p216
      %p219 = scmp.ne.s32.totalorder %s204, %s218
      %p220 = scmp.eq.s32.totalorder %s26, 0
      %p221 = por %p219, %p220
      %s223 = sadd.s32 %s222, 1
      %p226 = scmp.eq.s32.totalorder %s20, 1
      %p227 = scmp.ne.s32.totalorder %s222, %s224
      %p228 = scmp.eq.s32.totalorder %s20, 0
      %p229 = por %p227, %p228
      %p230 = scmp.ne.s32.totalorder %s222, %s224
      %p231 = scmp.eq.s32.totalorder %s25, 1
      %p232 = por %p230, %p231
      %p233 = scmp.ne.s32.totalorder %s224, %s225
      %p234 = scmp.eq.s32.totalorder %s25, 0
      %p235 = por %p233, %p234
      %p236 = scmp.ne.s32.totalorder %s224, %s225
      %p237 = scmp.eq.s32.totalorder %s26, 1
      %p238 = por %p236, %p237
      %p240 = scmp.ne.s32.totalorder %s225, %s239
      %p241 = scmp.eq.s32.totalorder %s26, 0
      %p242 = por %p240, %p241
      %s244 = sadd.s32 %s243, 1
      %p247 = scmp.eq.s32.totalorder %s20, 1
      %p248 = scmp.ne.s32.totalorder %s243, %s245
      %p249 = scmp.eq.s32.totalorder %s20, 0
      %p250 = por %p248, %p249
      %p251 = scmp.ne.s32.totalorder %s243, %s245
      %p252 = scmp.eq.s32.totalorder %s25, 1
      %p253 = por %p251, %p252
      %p254 = scmp.ne.s32.totalorder %s245, %s246
      %p255 = scmp.eq.s32.totalorder %s25, 0
      %p256 = por %p254, %p255
      %p257 = scmp.ne.s32.totalorder %s245, %s246
      %p258 = scmp.eq.s32.totalorder %s26, 1
      %p259 = por %p257, %p258
      %p261 = scmp.ne.s32.totalorder %s246, %s260
      %p262 = scmp.eq.s32.totalorder %s26, 0
      %p263 = por %p261, %p262
      %s264 = ssub.s32 %s20, %s27
      %p265 = scmp.eq.s32.totalorder %s264, 0
      %s267 = sadd.s32 %s266, 1
      %s268 = scalar_select %p265, %s266, %s267
      %p271 = pneg %p265
      %p272 = scmp.eq.s32.totalorder %s20, 1
      %p273 = por %p271, %p272
      %p274 = scmp.ne.s32.totalorder %s266, %s269
      %p275 = scmp.eq.s32.totalorder %s20, 0
      %p276 = por %p274, %p275
      %p277 = scmp.ne.s32.totalorder %s266, %s269
      %p278 = scmp.eq.s32.totalorder %s25, 1
      %p279 = por %p277, %p278
      %p280 = scmp.ne.s32.totalorder %s269, %s270
      %p281 = scmp.eq.s32.totalorder %s25, 0
      %p282 = por %p280, %p281
      %p283 = scmp.ne.s32.totalorder %s269, %s270
      %p284 = scmp.eq.s32.totalorder %s26, 1
      %p285 = por %p283, %p284
      %p287 = scmp.ne.s32.totalorder %s270, %s286
      %p288 = scmp.eq.s32.totalorder %s26, 0
      %p289 = por %p287, %p288
      %p290 = scmp.le.s32.totalorder 1, %s20
      %p291 = scmp.lt.s32.totalorder %s20, 3
      %p292 = pnand %p290, %p291
      %p293 = pneg %p292
      // Predicated region
      $region9: #{tpu_custom_call.1} parent=5 // pred_check
        _
      $region10: #{tpu_custom_call.1} parent=5 // pred_check_branch
        %295 = sbr.rel (%p292) target = $region12
      $region11: #{tpu_custom_call.1} parent=5 // pred_region
        %s296 = ssub.s32 %s20, 1
        // Predicated region
        $region13: #{tpu_custom_call.1} parent=11 // pred_check
          %p297 = pneg %p67
        $region14: #{tpu_custom_call.1} parent=11 // pred_check_branch
          %299 = sbr.rel (%p297) target = $region16
        $region15: #{tpu_custom_call.1} parent=11 // pred_region
          _
        $region16: #{tpu_custom_call.1} parent=11 // pred_fallthru
          _
        // Predicated region
        $region17: #{tpu_custom_call.1} parent=11 // pred_check
          %p300 = pneg %p88
        $region18: #{tpu_custom_call.1} parent=11 // pred_check_branch
          %302 = sbr.rel (%p300) target = $region20
        $region19: #{tpu_custom_call.1} parent=11 // pred_region
          _
        $region20: #{tpu_custom_call.1} parent=11 // pred_fallthru
          _
        // Predicated region
        $region21: #{tpu_custom_call.1} parent=11 // pred_check
          %p303 = pneg %p109
        $region22: #{tpu_custom_call.1} parent=11 // pred_check_branch
          %305 = sbr.rel (%p303) target = $region24
        $region23: #{tpu_custom_call.1} parent=11 // pred_region
          _
        $region24: #{tpu_custom_call.1} parent=11 // pred_fallthru
          _
        // Predicated region
        $region25: #{tpu_custom_call.1} parent=11 // pred_check
          %p306 = pneg %p130
        $region26: #{tpu_custom_call.1} parent=11 // pred_check_branch
          %308 = sbr.rel (%p306) target = $region28
        $region27: #{tpu_custom_call.1} parent=11 // pred_region
          _
        $region28: #{tpu_custom_call.1} parent=11 // pred_fallthru
          _
        // Predicated region
        $region29: #{tpu_custom_call.1} parent=11 // pred_check
          %p309 = pneg %p151
        $region30: #{tpu_custom_call.1} parent=11 // pred_check_branch
          %311 = sbr.rel (%p309) target = $region32
        $region31: #{tpu_custom_call.1} parent=11 // pred_region
          _
        $region32: #{tpu_custom_call.1} parent=11 // pred_fallthru
          _
        // Predicated region
        $region33: #{tpu_custom_call.1} parent=11 // pred_check
          %p312 = pneg %p172
        $region34: #{tpu_custom_call.1} parent=11 // pred_check_branch
          %314 = sbr.rel (%p312) target = $region36
        $region35: #{tpu_custom_call.1} parent=11 // pred_region
          _
        $region36: #{tpu_custom_call.1} parent=11 // pred_fallthru
          _
        // Predicated region
        $region37: #{tpu_custom_call.1} parent=11 // pred_check
          %p315 = pneg %p193
        $region38: #{tpu_custom_call.1} parent=11 // pred_check_branch
          %317 = sbr.rel (%p315) target = $region40
        $region39: #{tpu_custom_call.1} parent=11 // pred_region
          _
        $region40: #{tpu_custom_call.1} parent=11 // pred_fallthru
          _
        // Predicated region
        $region41: #{tpu_custom_call.1} parent=11 // pred_check
          %p318 = pneg %p214
        $region42: #{tpu_custom_call.1} parent=11 // pred_check_branch
          %320 = sbr.rel (%p318) target = $region44
        $region43: #{tpu_custom_call.1} parent=11 // pred_region
          _
        $region44: #{tpu_custom_call.1} parent=11 // pred_fallthru
          _
        // Predicated region
        $region45: #{tpu_custom_call.1} parent=11 // pred_check
          %p321 = pneg %p235
        $region46: #{tpu_custom_call.1} parent=11 // pred_check_branch
          %323 = sbr.rel (%p321) target = $region48
        $region47: #{tpu_custom_call.1} parent=11 // pred_region
          _
        $region48: #{tpu_custom_call.1} parent=11 // pred_fallthru
          _
        // Predicated region
        $region49: #{tpu_custom_call.1} parent=11 // pred_check
          %p324 = pneg %p256
        $region50: #{tpu_custom_call.1} parent=11 // pred_check_branch
          %326 = sbr.rel (%p324) target = $region52
        $region51: #{tpu_custom_call.1} parent=11 // pred_region
          _
        $region52: #{tpu_custom_call.1} parent=11 // pred_fallthru
          _
      $region12: #{tpu_custom_call.1} parent=5 // pred_fallthru
        _
      %p327 = scmp.lt.s32.totalorder %s20, 2
      // Predicated region
      $region53: #{tpu_custom_call.1} parent=5 // pred_check
        %p328 = pneg %p327
      $region54: #{tpu_custom_call.1} parent=5 // pred_check_branch
        %330 = sbr.rel (%p328) target = $region56
      $region55: #{tpu_custom_call.1} parent=5 // pred_region
        // Predicated region
        $region57: #{tpu_custom_call.1} parent=55 // pred_check
          %p331 = pneg %p40
        $region58: #{tpu_custom_call.1} parent=55 // pred_check_branch
          %333 = sbr.rel (%p331) target = $region60
        $region59: #{tpu_custom_call.1} parent=55 // pred_region
          %p334 = scmp.lt.s32.totalorder %s20, 1
          %s335 = scalar_select %p334, %s20, 1
          %s336 = smul.addr %s335, 8
          %s337 = scalar_lea.vmem %s0, %s336
        $region60: #{tpu_custom_call.1} parent=55 // pred_fallthru
          _
      $region56: #{tpu_custom_call.1} parent=5 // pred_fallthru
        _
      %p338 = scmp.le.s32.totalorder 1, %s20
      %p339 = scmp.lt.s32.totalorder %s20, 3
      %p340 = pnand %p338, %p339
      %p341 = pneg %p340
      // Predicated region
      $region61: #{tpu_custom_call.1} parent=5 // pred_check
        _
      $region62: #{tpu_custom_call.1} parent=5 // pred_check_branch
        %343 = sbr.rel (%p340) target = $region64
      $region63: #{tpu_custom_call.1} parent=5 // pred_region
        %s344 = ssub.s32 %s20, 1
        %p345 = scmp.lt.s32.totalorder %s25, 1
        %s346 = scalar_select %p345, %s25, 1
        %s347 = smul.addr %s346, 8
        %s348 = scalar_lea.vmem %s0, %s347
        %p349 = pneg %p46
        %p350 = pneg %p43
        %p351 = pneg %p67
        %p352 = pneg %p64
        %p353 = pneg %p88
        %p354 = pneg %p85
        %p355 = pneg %p109
        %p356 = pneg %p106
        %p357 = pneg %p130
        %p358 = pneg %p127
        %p359 = pneg %p151
        %p360 = pneg %p148
        %p361 = pneg %p172
        %p362 = pneg %p169
        %p363 = pneg %p193
        %p364 = pneg %p190
        %p365 = pneg %p214
        %p366 = pneg %p211
        %p367 = pneg %p235
        %p368 = pneg %p232
        %p369 = pneg %p256
        %p370 = pneg %p253
        %p371 = pneg %p282
        %p372 = pneg %p279
        %s373 = sand.u32 %s269, 1
        %s374 = scalar_lea.sflag [#allocation3], %s373
        %s375 = sand.u32 %s269, 1
        %s376 = smul.addr %s375, 8
        %s377 = scalar_lea.vmem [#allocation2], %s376
        %p378 = scmp.lt.s32.totalorder %s25, 1
        %s379 = scalar_select %p378, %s25, 1
        %s380 = smul.addr %s379, 8
        %s381 = scalar_lea.vmem %s0, %s380
        %v382 = vlaneseq
        %v383 = vshrl.u32 %v382, 7
        %vm384 = vcmp.gt.s32.totalorder %v383, 0
        %vm385 = vcmp.lt.s32.totalorder %v383, 7
        %v386 = vld [vmem:[%s381] sm:$0xff]
        %v387 = vld [vmem:[%s9] sm:$0x3f]
        %v388 = vld [vmem:[%s10] sm:$0x1f]
        %v389 = vld [vmem:[%s7] sm:$0xff]
        %v390 = vld [vmem:[%s7 + $0x8] sm:$0xff]
        %v391 = vld [vmem:[%s7 + $0x10] sm:$0xff]
        %v392 = vld [vmem:[%s7 + $0x18] sm:$0xff]
        %v393 = vld [vmem:[%s8] sm:$0xff]
        %vm394 = vcmask 261120
        %v395 = vsel %vm394, %v386, 0.0
        %396 = vadd.xlane.f32.xlu0 %v395
        %v397 = vpop.xlane.xlu0 %396
        %v398 = vrcp.pop 32.0
        %v399 = vmul.f32 %v397, %v398
        %v400 = vsub.f32 %v386, %v399
        %v401 = vmul.f32 %v400, %v400
        %v402 = vsel %vm394, %v401, 0.0
        %403 = vadd.xlane.f32.xlu0 %v402
        %v404 = vpop.xlane.xlu0 %403
        %v405 = vmul.f32 %v404, %v398
        %v406 = vadd.f32 %v405, 1e-05
        %v407 = vrsqrt.pop %v406
        %v408 = vmul.f32 %v400, %v407
        %v409 = vlaneseq
        %v410 = vshrl.u32 %v409, 7
        %v411 = vsub.s32 0, %v410
        %v412 = vrot.slane %v387, %v411
        %v413 = vmul.f32 %v408, %v412
        %v414 = vlaneseq
        %v415 = vshrl.u32 %v414, 7
        %v416 = vsub.s32 1, %v415
        %v417 = vrot.slane %v387, %v416
        %v418 = vadd.f32 %v413, %v417
        %v419 = vld [vmem:[%s1] sm:$0xff]
        %v420 = vld [vmem:[%s1 + $0x8] sm:$0xff]
        %v421 = vld [vmem:[%s1 + $0x10] sm:$0xff]
        %v422 = vld [vmem:[%s1 + $0x18] sm:$0xff]
        %v424 = vsel %vm394, %v418, 0
        %426 = vmatprep.subr.mxu0 0.0
        %427 = vmatpush1.msra.mxu0 0.0
        %428 = vmatprep.subr.mxu0 0.0
        %429 = vmatpush1.msra.mxu0 0.0
        %430 = vmatprep.subr.mxu0 0.0
        %431 = vmatpush1.msra.mxu0 0.0
        %432 = vmatprep.subr.mxu0 0.0
        %433 = vmatpush1.msra.mxu0 0.0
        %434 = vmatprep.subr.mxu0 0.0
        %435 = vmatpush1.msra.mxu0 0.0
        %436 = vmatprep.subr.mxu0 0.0
        %437 = vmatpush1.msra.mxu0 0.0
        %438 = vmatprep.subr.mxu0 0.0
        %439 = vmatpush1.msra.mxu0 0.0
        %440 = vmatprep.subr.mxu0 0.0
        %441 = vmatpush1.msra.mxu0 0.0
        %442 = vmatprep.subr.mxu0 0.0
        %443 = vmatpush1.msra.mxu0 0.0
        %444 = vmatprep.subr.mxu0 0.0
        %445 = vmatpush1.msra.mxu0 0.0
        %446 = vmatprep.subr.mxu0 0.0
        %447 = vmatpush1.msra.mxu0 0.0
        %448 = vmatprep.subr.mxu0 0.0
        %449 = vmatpush1.msra.mxu0 0.0
        %450 = vmatprep.subr.mxu0 0.0
        %451 = vmatpush1.msra.mxu0 %v422
        %452 = vmatprep.subr.mxu0 0.0
        %453 = vmatpush1.msra.mxu0 %v421
        %454 = vmatprep.subr.mxu0 0.0
        %455 = vmatpush1.msra.mxu0 %v420
        %456 = vmatprep.subr.mxu0 0.0
        %457 = vmatpush1.msra.mxu0 %v419
        %458 = vmatprep.subr.mxu0 0.0
        %459 = vmatpush2.msra.mxu0 0.0
        %460 = vmatprep.subr.mxu0 0.0
        %461 = vmatpush2.msra.mxu0 0.0
        %462 = vmatprep.subr.mxu0 0.0
        %463 = vmatpush2.msra.mxu0 0.0
        %464 = vmatprep.subr.mxu0 0.0
        %465 = vmatpush2.msra.mxu0 0.0
        %466 = vmatprep.subr.mxu0 0.0
        %467 = vmatpush2.msra.mxu0 0.0
        %468 = vmatprep.subr.mxu0 0.0
        %469 = vmatpush2.msra.mxu0 0.0
        %470 = vmatprep.subr.mxu0 0.0
        %471 = vmatpush2.msra.mxu0 0.0
        %472 = vmatprep.subr.mxu0 0.0
        %473 = vmatpush2.msra.mxu0 0.0
        %474 = vmatprep.subr.mxu0 0.0
        %475 = vmatpush2.msra.mxu0 0.0
        %476 = vmatprep.subr.mxu0 0.0
        %477 = vmatpush2.msra.mxu0 0.0
        %478 = vmatprep.subr.mxu0 0.0
        %479 = vmatpush2.msra.mxu0 0.0
        %480 = vmatprep.subr.mxu0 0.0
        %481 = vmatpush2.msra.mxu0 0.0
        %482 = vmatprep.subr.mxu0 0.0
        %483 = vmatpush2.msra.mxu0 0.0
        %484 = vmatprep.subr.mxu0 0.0
        %485 = vmatpush2.msra.mxu0 0.0
        %486 = vmatprep.subr.mxu0 0.0
        %487 = vmatpush2.msra.mxu0 0.0
        %488 = vmatprep.subr.mxu0 0.0
        %489 = vmatpush2.msra.mxu0 0.0
        %490 = vmatprep.mubr.f32.mxu0 0.0
        %491 = vmatmul.mubr.f32.gmra.mxu0 %v424
        %v492 = vpop.f32.mrf.mxu0
        %v493 = vadd.f32 0.0, %v492
        %v494 = vpop.f32.mrf.mxu0
        %495 = vdwg.mxu0
        %v496 = vld [vmem:[%s2] sm:$0xff]
        %v497 = vld [vmem:[%s2 + $0x8] sm:$0xff]
        %v498 = vld [vmem:[%s2 + $0x10] sm:$0xff]
        %v499 = vld [vmem:[%s2 + $0x18] sm:$0xff]
        %500 = vmatprep.subr.mxu0 0.0
        %501 = vmatpush1.msra.mxu0 0.0
        %502 = vmatprep.subr.mxu0 0.0
        %503 = vmatpush1.msra.mxu0 0.0
        %504 = vmatprep.subr.mxu0 0.0
        %505 = vmatpush1.msra.mxu0 0.0
        %506 = vmatprep.subr.mxu0 0.0
        %507 = vmatpush1.msra.mxu0 0.0
        %508 = vmatprep.subr.mxu0 0.0
        %509 = vmatpush1.msra.mxu0 0.0
        %510 = vmatprep.subr.mxu0 0.0
        %511 = vmatpush1.msra.mxu0 0.0
        %512 = vmatprep.subr.mxu0 0.0
        %513 = vmatpush1.msra.mxu0 0.0
        %514 = vmatprep.subr.mxu0 0.0
        %515 = vmatpush1.msra.mxu0 0.0
        %516 = vmatprep.subr.mxu0 0.0
        %517 = vmatpush1.msra.mxu0 0.0
        %518 = vmatprep.subr.mxu0 0.0
        %519 = vmatpush1.msra.mxu0 0.0
        %520 = vmatprep.subr.mxu0 0.0
        %521 = vmatpush1.msra.mxu0 0.0
        %522 = vmatprep.subr.mxu0 0.0
        %523 = vmatpush1.msra.mxu0 0.0
        %524 = vmatprep.subr.mxu0 0.0
        %525 = vmatpush1.msra.mxu0 %v499
        %526 = vmatprep.subr.mxu0 0.0
        %527 = vmatpush1.msra.mxu0 %v498
        %528 = vmatprep.subr.mxu0 0.0
        %529 = vmatpush1.msra.mxu0 %v497
        %530 = vmatprep.subr.mxu0 0.0
        %531 = vmatpush1.msra.mxu0 %v496
        %532 = vmatprep.subr.mxu0 0.0
        %533 = vmatpush2.msra.mxu0 0.0
        %534 = vmatprep.subr.mxu0 0.0
        %535 = vmatpush2.msra.mxu0 0.0
        %536 = vmatprep.subr.mxu0 0.0
        %537 = vmatpush2.msra.mxu0 0.0
        %538 = vmatprep.subr.mxu0 0.0
        %539 = vmatpush2.msra.mxu0 0.0
        %540 = vmatprep.subr.mxu0 0.0
        %541 = vmatpush2.msra.mxu0 0.0
        %542 = vmatprep.subr.mxu0 0.0
        %543 = vmatpush2.msra.mxu0 0.0
        %544 = vmatprep.subr.mxu0 0.0
        %545 = vmatpush2.msra.mxu0 0.0
        %546 = vmatprep.subr.mxu0 0.0
        %547 = vmatpush2.msra.mxu0 0.0
        %548 = vmatprep.subr.mxu0 0.0
        %549 = vmatpush2.msra.mxu0 0.0
        %550 = vmatprep.subr.mxu0 0.0
        %551 = vmatpush2.msra.mxu0 0.0
        %552 = vmatprep.subr.mxu0 0.0
        %553 = vmatpush2.msra.mxu0 0.0
        %554 = vmatprep.subr.mxu0 0.0
        %555 = vmatpush2.msra.mxu0 0.0
        %556 = vmatprep.subr.mxu0 0.0
        %557 = vmatpush2.msra.mxu0 0.0
        %558 = vmatprep.subr.mxu0 0.0
        %559 = vmatpush2.msra.mxu0 0.0
        %560 = vmatprep.subr.mxu0 0.0
        %561 = vmatpush2.msra.mxu0 0.0
        %562 = vmatprep.subr.mxu0 0.0
        %563 = vmatpush2.msra.mxu0 0.0
        %564 = vmatprep.mubr.f32.mxu0 0.0
        %565 = vmatmul.mubr.f32.gmra.mxu0 %v424
        %v566 = vpop.f32.mrf.mxu0
        %v567 = vadd.f32 0.0, %v566
        %v568 = vpop.f32.mrf.mxu0
        %569 = vdwg.mxu0
        %v570 = vld [vmem:[%s3] sm:$0xff]
        %v571 = vld [vmem:[%s3 + $0x8] sm:$0xff]
        %v572 = vld [vmem:[%s3 + $0x10] sm:$0xff]
        %v573 = vld [vmem:[%s3 + $0x18] sm:$0xff]
        %574 = vmatprep.subr.mxu0 0.0
        %575 = vmatpush1.msra.mxu0 0.0
        %576 = vmatprep.subr.mxu0 0.0
        %577 = vmatpush1.msra.mxu0 0.0
        %578 = vmatprep.subr.mxu0 0.0
        %579 = vmatpush1.msra.mxu0 0.0
        %580 = vmatprep.subr.mxu0 0.0
        %581 = vmatpush1.msra.mxu0 0.0
        %582 = vmatprep.subr.mxu0 0.0
        %583 = vmatpush1.msra.mxu0 0.0
        %584 = vmatprep.subr.mxu0 0.0
        %585 = vmatpush1.msra.mxu0 0.0
        %586 = vmatprep.subr.mxu0 0.0
        %587 = vmatpush1.msra.mxu0 0.0
        %588 = vmatprep.subr.mxu0 0.0
        %589 = vmatpush1.msra.mxu0 0.0
        %590 = vmatprep.subr.mxu0 0.0
        %591 = vmatpush1.msra.mxu0 0.0
        %592 = vmatprep.subr.mxu0 0.0
        %593 = vmatpush1.msra.mxu0 0.0
        %594 = vmatprep.subr.mxu0 0.0
        %595 = vmatpush1.msra.mxu0 0.0
        %596 = vmatprep.subr.mxu0 0.0
        %597 = vmatpush1.msra.mxu0 0.0
        %598 = vmatprep.subr.mxu0 0.0
        %599 = vmatpush1.msra.mxu0 %v573
        %600 = vmatprep.subr.mxu0 0.0
        %601 = vmatpush1.msra.mxu0 %v572
        %602 = vmatprep.subr.mxu0 0.0
        %603 = vmatpush1.msra.mxu0 %v571
        %604 = vmatprep.subr.mxu0 0.0
        %605 = vmatpush1.msra.mxu0 %v570
        %606 = vmatprep.subr.mxu0 0.0
        %607 = vmatpush2.msra.mxu0 0.0
        %608 = vmatprep.subr.mxu0 0.0
        %609 = vmatpush2.msra.mxu0 0.0
        %610 = vmatprep.subr.mxu0 0.0
        %611 = vmatpush2.msra.mxu0 0.0
        %612 = vmatprep.subr.mxu0 0.0
        %613 = vmatpush2.msra.mxu0 0.0
        %614 = vmatprep.subr.mxu0 0.0
        %615 = vmatpush2.msra.mxu0 0.0
        %616 = vmatprep.subr.mxu0 0.0
        %617 = vmatpush2.msra.mxu0 0.0
        %618 = vmatprep.subr.mxu0 0.0
        %619 = vmatpush2.msra.mxu0 0.0
        %620 = vmatprep.subr.mxu0 0.0
        %621 = vmatpush2.msra.mxu0 0.0
        %622 = vmatprep.subr.mxu0 0.0
        %623 = vmatpush2.msra.mxu0 0.0
        %624 = vmatprep.subr.mxu0 0.0
        %625 = vmatpush2.msra.mxu0 0.0
        %626 = vmatprep.subr.mxu0 0.0
        %627 = vmatpush2.msra.mxu0 0.0
        %628 = vmatprep.subr.mxu0 0.0
        %629 = vmatpush2.msra.mxu0 0.0
        %630 = vmatprep.subr.mxu0 0.0
        %631 = vmatpush2.msra.mxu0 0.0
        %632 = vmatprep.subr.mxu0 0.0
        %633 = vmatpush2.msra.mxu0 0.0
        %634 = vmatprep.subr.mxu0 0.0
        %635 = vmatpush2.msra.mxu0 0.0
        %636 = vmatprep.subr.mxu0 0.0
        %637 = vmatpush2.msra.mxu0 0.0
        %638 = vmatprep.mubr.f32.mxu0 0.0
        %639 = vmatmul.mubr.f32.gmra.mxu0 %v424
        %v640 = vpop.f32.mrf.mxu0
        %v641 = vadd.f32 0.0, %v640
        %v642 = vpop.f32.mrf.mxu0
        %643 = vdwg.mxu0
        %vm644 = vcmask 130048
        %v646 = vsel %vm644, %v493, 0
        %v649 = vsel %vm644, %v567, 0
        %651 = vmatprep.subr.mxu0 0.0
        %652 = vmatpush1.xpose.msra.mxu0 0.0
        %653 = vmatprep.subr.mxu0 0.0
        %654 = vmatpush1.xpose.msra.mxu0 0.0
        %655 = vmatprep.subr.mxu0 0.0
        %656 = vmatpush1.xpose.msra.mxu0 0.0
        %657 = vmatprep.subr.mxu0 0.0
        %658 = vmatpush1.xpose.msra.mxu0 0.0
        %659 = vmatprep.subr.mxu0 0.0
        %660 = vmatpush1.xpose.msra.mxu0 0.0
        %661 = vmatprep.subr.mxu0 0.0
        %662 = vmatpush1.xpose.msra.mxu0 0.0
        %663 = vmatprep.subr.mxu0 0.0
        %664 = vmatpush1.xpose.msra.mxu0 0.0
        %665 = vmatprep.subr.mxu0 0.0
        %666 = vmatpush1.xpose.msra.mxu0 0.0
        %667 = vmatprep.subr.mxu0 0.0
        %668 = vmatpush1.xpose.msra.mxu0 0.0
        %669 = vmatprep.subr.mxu0 0.0
        %670 = vmatpush1.xpose.msra.mxu0 0.0
        %671 = vmatprep.subr.mxu0 0.0
        %672 = vmatpush1.xpose.msra.mxu0 0.0
        %673 = vmatprep.subr.mxu0 0.0
        %674 = vmatpush1.xpose.msra.mxu0 0.0
        %675 = vmatprep.subr.mxu0 0.0
        %676 = vmatpush1.xpose.msra.mxu0 0.0
        %677 = vmatprep.subr.mxu0 0.0
        %678 = vmatpush1.xpose.msra.mxu0 0.0
        %679 = vmatprep.subr.mxu0 0.0
        %680 = vmatpush1.xpose.msra.mxu0 0.0
        %681 = vmatprep.subr.mxu0 0.0
        %682 = vmatpush1.xpose.msra.mxu0 %v649
        %683 = vmatprep.subr.mxu0 0.0
        %684 = vmatpush2.xpose.msra.mxu0 0.0
        %685 = vmatprep.subr.mxu0 0.0
        %686 = vmatpush2.xpose.msra.mxu0 0.0
        %687 = vmatprep.subr.mxu0 0.0
        %688 = vmatpush2.xpose.msra.mxu0 0.0
        %689 = vmatprep.subr.mxu0 0.0
        %690 = vmatpush2.xpose.msra.mxu0 0.0
        %691 = vmatprep.subr.mxu0 0.0
        %692 = vmatpush2.xpose.msra.mxu0 0.0
        %693 = vmatprep.subr.mxu0 0.0
        %694 = vmatpush2.xpose.msra.mxu0 0.0
        %695 = vmatprep.subr.mxu0 0.0
        %696 = vmatpush2.xpose.msra.mxu0 0.0
        %697 = vmatprep.subr.mxu0 0.0
        %698 = vmatpush2.xpose.msra.mxu0 0.0
        %699 = vmatprep.subr.mxu0 0.0
        %700 = vmatpush2.xpose.msra.mxu0 0.0
        %701 = vmatprep.subr.mxu0 0.0
        %702 = vmatpush2.xpose.msra.mxu0 0.0
        %703 = vmatprep.subr.mxu0 0.0
        %704 = vmatpush2.xpose.msra.mxu0 0.0
        %705 = vmatprep.subr.mxu0 0.0
        %706 = vmatpush2.xpose.msra.mxu0 0.0
        %707 = vmatprep.subr.mxu0 0.0
        %708 = vmatpush2.xpose.msra.mxu0 0.0
        %709 = vmatprep.subr.mxu0 0.0
        %710 = vmatpush2.xpose.msra.mxu0 0.0
        %711 = vmatprep.subr.mxu0 0.0
        %712 = vmatpush2.xpose.msra.mxu0 0.0
        %713 = vmatprep.subr.mxu0 0.0
        %714 = vmatpush2.xpose.msra.mxu0 0.0
        %715 = vmatprep.mubr.f32.mxu0 0.0
        %716 = vmatmul.mubr.f32.gmra.mxu0 %v646
        %v717 = vpop.f32.mrf.mxu0
        %v718 = vadd.f32 0.0, %v717
        %v719 = vpop.f32.mrf.mxu0
        %720 = vdwg.mxu0
        %vm721 = vcmask 64512
        %v722 = vsel %vm721, %v718, -inf
        %723 = vmax.xlane.f32.xlu0 %v722
        %v724 = vpop.xlane.xlu0 %723
        %v725 = vsub.f32 %v718, %v724
        %v726 = vmul.f32 %v725, 1.442695
        %v727 = vpow.pop %v726
        %v728 = vsel %vm721, %v727, 0.0
        %729 = vadd.xlane.f32.xlu0 %v728
        %v730 = vpop.xlane.xlu0 %729
        %v731 = vrcp.pop %v730
        %v732 = vmul.f32 %v727, %v731
        %v734 = vsel %vm721, %v732, 0
        %736 = vmatprep.subr.mxu0 0.0
        %737 = vmatpush1.msra.mxu0 0.0
        %738 = vmatprep.subr.mxu0 0.0
        %739 = vmatpush1.msra.mxu0 0.0
        %740 = vmatprep.subr.mxu0 0.0
        %741 = vmatpush1.msra.mxu0 0.0
        %742 = vmatprep.subr.mxu0 0.0
        %743 = vmatpush1.msra.mxu0 0.0
        %744 = vmatprep.subr.mxu0 0.0
        %745 = vmatpush1.msra.mxu0 0.0
        %746 = vmatprep.subr.mxu0 0.0
        %747 = vmatpush1.msra.mxu0 0.0
        %748 = vmatprep.subr.mxu0 0.0
        %749 = vmatpush1.msra.mxu0 0.0
        %750 = vmatprep.subr.mxu0 0.0
        %751 = vmatpush1.msra.mxu0 0.0
        %752 = vmatprep.subr.mxu0 0.0
        %753 = vmatpush1.msra.mxu0 0.0
        %754 = vmatprep.subr.mxu0 0.0
        %755 = vmatpush1.msra.mxu0 0.0
        %756 = vmatprep.subr.mxu0 0.0
        %757 = vmatpush1.msra.mxu0 0.0
        %758 = vmatprep.subr.mxu0 0.0
        %759 = vmatpush1.msra.mxu0 0.0
        %760 = vmatprep.subr.mxu0 0.0
        %761 = vmatpush1.msra.mxu0 0.0
        %762 = vmatprep.subr.mxu0 0.0
        %763 = vmatpush1.msra.mxu0 0.0
        %764 = vmatprep.subr.mxu0 0.0
        %765 = vmatpush1.msra.mxu0 0.0
        %766 = vmatprep.subr.mxu0 0.0
        %767 = vmatpush1.msra.mxu0 %v641
        %768 = vmatprep.subr.mxu0 0.0
        %769 = vmatpush2.msra.mxu0 0.0
        %770 = vmatprep.subr.mxu0 0.0
        %771 = vmatpush2.msra.mxu0 0.0
        %772 = vmatprep.subr.mxu0 0.0
        %773 = vmatpush2.msra.mxu0 0.0
        %774 = vmatprep.subr.mxu0 0.0
        %775 = vmatpush2.msra.mxu0 0.0
        %776 = vmatprep.subr.mxu0 0.0
        %777 = vmatpush2.msra.mxu0 0.0
        %778 = vmatprep.subr.mxu0 0.0
        %779 = vmatpush2.msra.mxu0 0.0
        %780 = vmatprep.subr.mxu0 0.0
        %781 = vmatpush2.msra.mxu0 0.0
        %782 = vmatprep.subr.mxu0 0.0
        %783 = vmatpush2.msra.mxu0 0.0
        %784 = vmatprep.subr.mxu0 0.0
        %785 = vmatpush2.msra.mxu0 0.0
        %786 = vmatprep.subr.mxu0 0.0
        %787 = vmatpush2.msra.mxu0 0.0
        %788 = vmatprep.subr.mxu0 0.0
        %789 = vmatpush2.msra.mxu0 0.0
        %790 = vmatprep.subr.mxu0 0.0
        %791 = vmatpush2.msra.mxu0 0.0
        %792 = vmatprep.subr.mxu0 0.0
        %793 = vmatpush2.msra.mxu0 0.0
        %794 = vmatprep.subr.mxu0 0.0
        %795 = vmatpush2.msra.mxu0 0.0
        %796 = vmatprep.subr.mxu0 0.0
        %797 = vmatpush2.msra.mxu0 0.0
        %798 = vmatprep.subr.mxu0 0.0
        %799 = vmatpush2.msra.mxu0 0.0
        %800 = vmatprep.mubr.f32.mxu0 0.0
        %801 = vmatmul.mubr.f32.gmra.mxu0 %v734
        %v802 = vpop.f32.mrf.mxu0
        %v803 = vadd.f32 0.0, %v802
        %v804 = vpop.f32.mrf.mxu0
        %805 = vdwg.mxu0
        %v806 = vld [vmem:[%s4] sm:$0xff]
        %v807 = vld [vmem:[%s4 + $0x8] sm:$0xff]
        %s808 = scalar_lea.vmem %s1, 32
        %v809 = vld [vmem:[%s808] sm:$0xff]
        %v810 = vld [vmem:[%s808 + $0x8] sm:$0xff]
        %v811 = vld [vmem:[%s808 + $0x10] sm:$0xff]
        %v812 = vld [vmem:[%s808 + $0x18] sm:$0xff]
        %813 = vmatprep.subr.mxu0 0.0
        %814 = vmatpush1.msra.mxu0 0.0
        %815 = vmatprep.subr.mxu0 0.0
        %816 = vmatpush1.msra.mxu0 0.0
        %817 = vmatprep.subr.mxu0 0.0
        %818 = vmatpush1.msra.mxu0 0.0
        %819 = vmatprep.subr.mxu0 0.0
        %820 = vmatpush1.msra.mxu0 0.0
        %821 = vmatprep.subr.mxu0 0.0
        %822 = vmatpush1.msra.mxu0 0.0
        %823 = vmatprep.subr.mxu0 0.0
        %824 = vmatpush1.msra.mxu0 0.0
        %825 = vmatprep.subr.mxu0 0.0
        %826 = vmatpush1.msra.mxu0 0.0
        %827 = vmatprep.subr.mxu0 0.0
        %828 = vmatpush1.msra.mxu0 0.0
        %829 = vmatprep.subr.mxu0 0.0
        %830 = vmatpush1.msra.mxu0 0.0
        %831 = vmatprep.subr.mxu0 0.0
        %832 = vmatpush1.msra.mxu0 0.0
        %833 = vmatprep.subr.mxu0 0.0
        %834 = vmatpush1.msra.mxu0 0.0
        %835 = vmatprep.subr.mxu0 0.0
        %836 = vmatpush1.msra.mxu0 0.0
        %837 = vmatprep.subr.mxu0 0.0
        %838 = vmatpush1.msra.mxu0 %v812
        %839 = vmatprep.subr.mxu0 0.0
        %840 = vmatpush1.msra.mxu0 %v811
        %841 = vmatprep.subr.mxu0 0.0
        %842 = vmatpush1.msra.mxu0 %v810
        %843 = vmatprep.subr.mxu0 0.0
        %844 = vmatpush1.msra.mxu0 %v809
        %845 = vmatprep.subr.mxu0 0.0
        %846 = vmatpush2.msra.mxu0 0.0
        %847 = vmatprep.subr.mxu0 0.0
        %848 = vmatpush2.msra.mxu0 0.0
        %849 = vmatprep.subr.mxu0 0.0
        %850 = vmatpush2.msra.mxu0 0.0
        %851 = vmatprep.subr.mxu0 0.0
        %852 = vmatpush2.msra.mxu0 0.0
        %853 = vmatprep.subr.mxu0 0.0
        %854 = vmatpush2.msra.mxu0 0.0
        %855 = vmatprep.subr.mxu0 0.0
        %856 = vmatpush2.msra.mxu0 0.0
        %857 = vmatprep.subr.mxu0 0.0
        %858 = vmatpush2.msra.mxu0 0.0
        %859 = vmatprep.subr.mxu0 0.0
        %860 = vmatpush2.msra.mxu0 0.0
        %861 = vmatprep.subr.mxu0 0.0
        %862 = vmatpush2.msra.mxu0 0.0
        %863 = vmatprep.subr.mxu0 0.0
        %864 = vmatpush2.msra.mxu0 0.0
        %865 = vmatprep.subr.mxu0 0.0
        %866 = vmatpush2.msra.mxu0 0.0
        %867 = vmatprep.subr.mxu0 0.0
        %868 = vmatpush2.msra.mxu0 0.0
        %869 = vmatprep.subr.mxu0 0.0
        %870 = vmatpush2.msra.mxu0 0.0
        %871 = vmatprep.subr.mxu0 0.0
        %872 = vmatpush2.msra.mxu0 0.0
        %873 = vmatprep.subr.mxu0 0.0
        %874 = vmatpush2.msra.mxu0 0.0
        %875 = vmatprep.subr.mxu0 0.0
        %876 = vmatpush2.msra.mxu0 0.0
        %877 = vmatprep.mubr.f32.mxu0 0.0
        %878 = vmatmul.mubr.f32.gmra.mxu0 %v424
        %v879 = vpop.f32.mrf.mxu0
        %v880 = vadd.f32 0.0, %v879
        %v881 = vpop.f32.mrf.mxu0
        %882 = vdwg.mxu0
        %s883 = scalar_lea.vmem %s2, 32
        %v884 = vld [vmem:[%s883] sm:$0xff]
        %v885 = vld [vmem:[%s883 + $0x8] sm:$0xff]
        %v886 = vld [vmem:[%s883 + $0x10] sm:$0xff]
        %v887 = vld [vmem:[%s883 + $0x18] sm:$0xff]
        %888 = vmatprep.subr.mxu0 0.0
        %889 = vmatpush1.msra.mxu0 0.0
        %890 = vmatprep.subr.mxu0 0.0
        %891 = vmatpush1.msra.mxu0 0.0
        %892 = vmatprep.subr.mxu0 0.0
        %893 = vmatpush1.msra.mxu0 0.0
        %894 = vmatprep.subr.mxu0 0.0
        %895 = vmatpush1.msra.mxu0 0.0
        %896 = vmatprep.subr.mxu0 0.0
        %897 = vmatpush1.msra.mxu0 0.0
        %898 = vmatprep.subr.mxu0 0.0
        %899 = vmatpush1.msra.mxu0 0.0
        %900 = vmatprep.subr.mxu0 0.0
        %901 = vmatpush1.msra.mxu0 0.0
        %902 = vmatprep.subr.mxu0 0.0
        %903 = vmatpush1.msra.mxu0 0.0
        %904 = vmatprep.subr.mxu0 0.0
        %905 = vmatpush1.msra.mxu0 0.0
        %906 = vmatprep.subr.mxu0 0.0
        %907 = vmatpush1.msra.mxu0 0.0
        %908 = vmatprep.subr.mxu0 0.0
        %909 = vmatpush1.msra.mxu0 0.0
        %910 = vmatprep.subr.mxu0 0.0
        %911 = vmatpush1.msra.mxu0 0.0
        %912 = vmatprep.subr.mxu0 0.0
        %913 = vmatpush1.msra.mxu0 %v887
        %914 = vmatprep.subr.mxu0 0.0
        %915 = vmatpush1.msra.mxu0 %v886
        %916 = vmatprep.subr.mxu0 0.0
        %917 = vmatpush1.msra.mxu0 %v885
        %918 = vmatprep.subr.mxu0 0.0
        %919 = vmatpush1.msra.mxu0 %v884
        %920 = vmatprep.subr.mxu0 0.0
        %921 = vmatpush2.msra.mxu0 0.0
        %922 = vmatprep.subr.mxu0 0.0
        %923 = vmatpush2.msra.mxu0 0.0
        %924 = vmatprep.subr.mxu0 0.0
        %925 = vmatpush2.msra.mxu0 0.0
        %926 = vmatprep.subr.mxu0 0.0
        %927 = vmatpush2.msra.mxu0 0.0
        %928 = vmatprep.subr.mxu0 0.0
        %929 = vmatpush2.msra.mxu0 0.0
        %930 = vmatprep.subr.mxu0 0.0
        %931 = vmatpush2.msra.mxu0 0.0
        %932 = vmatprep.subr.mxu0 0.0
        %933 = vmatpush2.msra.mxu0 0.0
        %934 = vmatprep.subr.mxu0 0.0
        %935 = vmatpush2.msra.mxu0 0.0
        %936 = vmatprep.subr.mxu0 0.0
        %937 = vmatpush2.msra.mxu0 0.0
        %938 = vmatprep.subr.mxu0 0.0
        %939 = vmatpush2.msra.mxu0 0.0
        %940 = vmatprep.subr.mxu0 0.0
        %941 = vmatpush2.msra.mxu0 0.0
        %942 = vmatprep.subr.mxu0 0.0
        %943 = vmatpush2.msra.mxu0 0.0
        %944 = vmatprep.subr.mxu0 0.0
        %945 = vmatpush2.msra.mxu0 0.0
        %946 = vmatprep.subr.mxu0 0.0
        %947 = vmatpush2.msra.mxu0 0.0
        %948 = vmatprep.subr.mxu0 0.0
        %949 = vmatpush2.msra.mxu0 0.0
        %950 = vmatprep.subr.mxu0 0.0
        %951 = vmatpush2.msra.mxu0 0.0
        %952 = vmatprep.mubr.f32.mxu0 0.0
        %953 = vmatmul.mubr.f32.gmra.mxu0 %v424
        %v954 = vpop.f32.mrf.mxu0
        %v955 = vadd.f32 0.0, %v954
        %v956 = vpop.f32.mrf.mxu0
        %957 = vdwg.mxu0
        %s958 = scalar_lea.vmem %s3, 32
        %v959 = vld [vmem:[%s958] sm:$0xff]
        %v960 = vld [vmem:[%s958 + $0x8] sm:$0xff]
        %v961 = vld [vmem:[%s958 + $0x10] sm:$0xff]
        %v962 = vld [vmem:[%s958 + $0x18] sm:$0xff]
        %963 = vmatprep.subr.mxu0 0.0
        %964 = vmatpush1.msra.mxu0 0.0
        %965 = vmatprep.subr.mxu0 0.0
        %966 = vmatpush1.msra.mxu0 0.0
        %967 = vmatprep.subr.mxu0 0.0
        %968 = vmatpush1.msra.mxu0 0.0
        %969 = vmatprep.subr.mxu0 0.0
        %970 = vmatpush1.msra.mxu0 0.0
        %971 = vmatprep.subr.mxu0 0.0
        %972 = vmatpush1.msra.mxu0 0.0
        %973 = vmatprep.subr.mxu0 0.0
        %974 = vmatpush1.msra.mxu0 0.0
        %975 = vmatprep.subr.mxu0 0.0
        %976 = vmatpush1.msra.mxu0 0.0
        %977 = vmatprep.subr.mxu0 0.0
        %978 = vmatpush1.msra.mxu0 0.0
        %979 = vmatprep.subr.mxu0 0.0
        %980 = vmatpush1.msra.mxu0 0.0
        %981 = vmatprep.subr.mxu0 0.0
        %982 = vmatpush1.msra.mxu0 0.0
        %983 = vmatprep.subr.mxu0 0.0
        %984 = vmatpush1.msra.mxu0 0.0
        %985 = vmatprep.subr.mxu0 0.0
        %986 = vmatpush1.msra.mxu0 0.0
        %987 = vmatprep.subr.mxu0 0.0
        %988 = vmatpush1.msra.mxu0 %v962
        %989 = vmatprep.subr.mxu0 0.0
        %990 = vmatpush1.msra.mxu0 %v961
        %991 = vmatprep.subr.mxu0 0.0
        %992 = vmatpush1.msra.mxu0 %v960
        %993 = vmatprep.subr.mxu0 0.0
        %994 = vmatpush1.msra.mxu0 %v959
        %995 = vmatprep.subr.mxu0 0.0
        %996 = vmatpush2.msra.mxu0 0.0
        %997 = vmatprep.subr.mxu0 0.0
        %998 = vmatpush2.msra.mxu0 0.0
        %999 = vmatprep.subr.mxu0 0.0
        %1000 = vmatpush2.msra.mxu0 0.0
        %1001 = vmatprep.subr.mxu0 0.0
        %1002 = vmatpush2.msra.mxu0 0.0
        %1003 = vmatprep.subr.mxu0 0.0
        %1004 = vmatpush2.msra.mxu0 0.0
        %1005 = vmatprep.subr.mxu0 0.0
        %1006 = vmatpush2.msra.mxu0 0.0
        %1007 = vmatprep.subr.mxu0 0.0
        %1008 = vmatpush2.msra.mxu0 0.0
        %1009 = vmatprep.subr.mxu0 0.0
        %1010 = vmatpush2.msra.mxu0 0.0
        %1011 = vmatprep.subr.mxu0 0.0
        %1012 = vmatpush2.msra.mxu0 0.0
        %1013 = vmatprep.subr.mxu0 0.0
        %1014 = vmatpush2.msra.mxu0 0.0
        %1015 = vmatprep.subr.mxu0 0.0
        %1016 = vmatpush2.msra.mxu0 0.0
        %1017 = vmatprep.subr.mxu0 0.0
        %1018 = vmatpush2.msra.mxu0 0.0
        %1019 = vmatprep.subr.mxu0 0.0
        %1020 = vmatpush2.msra.mxu0 0.0
        %1021 = vmatprep.subr.mxu0 0.0
        %1022 = vmatpush2.msra.mxu0 0.0
        %1023 = vmatprep.subr.mxu0 0.0
        %1024 = vmatpush2.msra.mxu0 0.0
        %1025 = vmatprep.subr.mxu0 0.0
        %1026 = vmatpush2.msra.mxu0 0.0
        %1027 = vmatprep.mubr.f32.mxu0 0.0
        %1028 = vmatmul.mubr.f32.gmra.mxu0 %v424
        %v1029 = vpop.f32.mrf.mxu0
        %v1030 = vadd.f32 0.0, %v1029
        %v1031 = vpop.f32.mrf.mxu0
        %1032 = vdwg.mxu0
        %v1034 = vsel %vm644, %v880, 0
        %v1037 = vsel %vm644, %v955, 0
        %1039 = vmatprep.subr.mxu0 0.0
        %1040 = vmatpush1.xpose.msra.mxu0 0.0
        %1041 = vmatprep.subr.mxu0 0.0
        %1042 = vmatpush1.xpose.msra.mxu0 0.0
        %1043 = vmatprep.subr.mxu0 0.0
        %1044 = vmatpush1.xpose.msra.mxu0 0.0
        %1045 = vmatprep.subr.mxu0 0.0
        %1046 = vmatpush1.xpose.msra.mxu0 0.0
        %1047 = vmatprep.subr.mxu0 0.0
        %1048 = vmatpush1.xpose.msra.mxu0 0.0
        %1049 = vmatprep.subr.mxu0 0.0
        %1050 = vmatpush1.xpose.msra.mxu0 0.0
        %1051 = vmatprep.subr.mxu0 0.0
        %1052 = vmatpush1.xpose.msra.mxu0 0.0
        %1053 = vmatprep.subr.mxu0 0.0
        %1054 = vmatpush1.xpose.msra.mxu0 0.0
        %1055 = vmatprep.subr.mxu0 0.0
        %1056 = vmatpush1.xpose.msra.mxu0 0.0
        %1057 = vmatprep.subr.mxu0 0.0
        %1058 = vmatpush1.xpose.msra.mxu0 0.0
        %1059 = vmatprep.subr.mxu0 0.0
        %1060 = vmatpush1.xpose.msra.mxu0 0.0
        %1061 = vmatprep.subr.mxu0 0.0
        %1062 = vmatpush1.xpose.msra.mxu0 0.0
        %1063 = vmatprep.subr.mxu0 0.0
        %1064 = vmatpush1.xpose.msra.mxu0 0.0
        %1065 = vmatprep.subr.mxu0 0.0
        %1066 = vmatpush1.xpose.msra.mxu0 0.0
        %1067 = vmatprep.subr.mxu0 0.0
        %1068 = vmatpush1.xpose.msra.mxu0 0.0
        %1069 = vmatprep.subr.mxu0 0.0
        %1070 = vmatpush1.xpose.msra.mxu0 %v1037
        %1071 = vmatprep.subr.mxu0 0.0
        %1072 = vmatpush2.xpose.msra.mxu0 0.0
        %1073 = vmatprep.subr.mxu0 0.0
        %1074 = vmatpush2.xpose.msra.mxu0 0.0
        %1075 = vmatprep.subr.mxu0 0.0
        %1076 = vmatpush2.xpose.msra.mxu0 0.0
        %1077 = vmatprep.subr.mxu0 0.0
        %1078 = vmatpush2.xpose.msra.mxu0 0.0
        %1079 = vmatprep.subr.mxu0 0.0
        %1080 = vmatpush2.xpose.msra.mxu0 0.0
        %1081 = vmatprep.subr.mxu0 0.0
        %1082 = vmatpush2.xpose.msra.mxu0 0.0
        %1083 = vmatprep.subr.mxu0 0.0
        %1084 = vmatpush2.xpose.msra.mxu0 0.0
        %1085 = vmatprep.subr.mxu0 0.0
        %1086 = vmatpush2.xpose.msra.mxu0 0.0
        %1087 = vmatprep.subr.mxu0 0.0
        %1088 = vmatpush2.xpose.msra.mxu0 0.0
        %1089 = vmatprep.subr.mxu0 0.0
        %1090 = vmatpush2.xpose.msra.mxu0 0.0
        %1091 = vmatprep.subr.mxu0 0.0
        %1092 = vmatpush2.xpose.msra.mxu0 0.0
        %1093 = vmatprep.subr.mxu0 0.0
        %1094 = vmatpush2.xpose.msra.mxu0 0.0
        %1095 = vmatprep.subr.mxu0 0.0
        %1096 = vmatpush2.xpose.msra.mxu0 0.0
        %1097 = vmatprep.subr.mxu0 0.0
        %1098 = vmatpush2.xpose.msra.mxu0 0.0
        %1099 = vmatprep.subr.mxu0 0.0
        %1100 = vmatpush2.xpose.msra.mxu0 0.0
        %1101 = vmatprep.subr.mxu0 0.0
        %1102 = vmatpush2.xpose.msra.mxu0 0.0
        %1103 = vmatprep.mubr.f32.mxu0 0.0
        %1104 = vmatmul.mubr.f32.gmra.mxu0 %v1034
        %v1105 = vpop.f32.mrf.mxu0
        %v1106 = vadd.f32 0.0, %v1105
        %v1107 = vpop.f32.mrf.mxu0
        %1108 = vdwg.mxu0
        %v1109 = vsel %vm721, %v1106, -inf
        %1110 = vmax.xlane.f32.xlu0 %v1109
        %v1111 = vpop.xlane.xlu0 %1110
        %v1112 = vsub.f32 %v1106, %v1111
        %v1113 = vmul.f32 %v1112, 1.442695
        %v1114 = vpow.pop %v1113
        %v1115 = vsel %vm721, %v1114, 0.0
        %1116 = vadd.xlane.f32.xlu0 %v1115
        %v1117 = vpop.xlane.xlu0 %1116
        %v1118 = vrcp.pop %v1117
        %v1119 = vmul.f32 %v1114, %v1118
        %v1121 = vsel %vm721, %v1119, 0
        %1123 = vmatprep.subr.mxu0 0.0
        %1124 = vmatpush1.msra.mxu0 0.0
        %1125 = vmatprep.subr.mxu0 0.0
        %1126 = vmatpush1.msra.mxu0 0.0
        %1127 = vmatprep.subr.mxu0 0.0
        %1128 = vmatpush1.msra.mxu0 0.0
        %1129 = vmatprep.subr.mxu0 0.0
        %1130 = vmatpush1.msra.mxu0 0.0
        %1131 = vmatprep.subr.mxu0 0.0
        %1132 = vmatpush1.msra.mxu0 0.0
        %1133 = vmatprep.subr.mxu0 0.0
        %1134 = vmatpush1.msra.mxu0 0.0
        %1135 = vmatprep.subr.mxu0 0.0
        %1136 = vmatpush1.msra.mxu0 0.0
        %1137 = vmatprep.subr.mxu0 0.0
        %1138 = vmatpush1.msra.mxu0 0.0
        %1139 = vmatprep.subr.mxu0 0.0
        %1140 = vmatpush1.msra.mxu0 0.0
        %1141 = vmatprep.subr.mxu0 0.0
        %1142 = vmatpush1.msra.mxu0 0.0
        %1143 = vmatprep.subr.mxu0 0.0
        %1144 = vmatpush1.msra.mxu0 0.0
        %1145 = vmatprep.subr.mxu0 0.0
        %1146 = vmatpush1.msra.mxu0 0.0
        %1147 = vmatprep.subr.mxu0 0.0
        %1148 = vmatpush1.msra.mxu0 0.0
        %1149 = vmatprep.subr.mxu0 0.0
        %1150 = vmatpush1.msra.mxu0 0.0
        %1151 = vmatprep.subr.mxu0 0.0
        %1152 = vmatpush1.msra.mxu0 0.0
        %1153 = vmatprep.subr.mxu0 0.0
        %1154 = vmatpush1.msra.mxu0 %v1030
        %1155 = vmatprep.subr.mxu0 0.0
        %1156 = vmatpush2.msra.mxu0 0.0
        %1157 = vmatprep.subr.mxu0 0.0
        %1158 = vmatpush2.msra.mxu0 0.0
        %1159 = vmatprep.subr.mxu0 0.0
        %1160 = vmatpush2.msra.mxu0 0.0
        %1161 = vmatprep.subr.mxu0 0.0
        %1162 = vmatpush2.msra.mxu0 0.0
        %1163 = vmatprep.subr.mxu0 0.0
        %1164 = vmatpush2.msra.mxu0 0.0
        %1165 = vmatprep.subr.mxu0 0.0
        %1166 = vmatpush2.msra.mxu0 0.0
        %1167 = vmatprep.subr.mxu0 0.0
        %1168 = vmatpush2.msra.mxu0 0.0
        %1169 = vmatprep.subr.mxu0 0.0
        %1170 = vmatpush2.msra.mxu0 0.0
        %1171 = vmatprep.subr.mxu0 0.0
        %1172 = vmatpush2.msra.mxu0 0.0
        %1173 = vmatprep.subr.mxu0 0.0
        %1174 = vmatpush2.msra.mxu0 0.0
        %1175 = vmatprep.subr.mxu0 0.0
        %1176 = vmatpush2.msra.mxu0 0.0
        %1177 = vmatprep.subr.mxu0 0.0
        %1178 = vmatpush2.msra.mxu0 0.0
        %1179 = vmatprep.subr.mxu0 0.0
        %1180 = vmatpush2.msra.mxu0 0.0
        %1181 = vmatprep.subr.mxu0 0.0
        %1182 = vmatpush2.msra.mxu0 0.0
        %1183 = vmatprep.subr.mxu0 0.0
        %1184 = vmatpush2.msra.mxu0 0.0
        %1185 = vmatprep.subr.mxu0 0.0
        %1186 = vmatpush2.msra.mxu0 0.0
        %1187 = vmatprep.mubr.f32.mxu0 0.0
        %1188 = vmatmul.mubr.f32.gmra.mxu0 %v1121
        %v1189 = vpop.f32.mrf.mxu0
        %v1190 = vadd.f32 0.0, %v1189
        %v1191 = vpop.f32.mrf.mxu0
        %1192 = vdwg.mxu0
        %s1193 = scalar_lea.vmem %s4, 16
        %v1194 = vld [vmem:[%s1193] sm:$0xff]
        %v1195 = vld [vmem:[%s1193 + $0x8] sm:$0xff]
        %v1197 = vsel %vm644, %v1190, 0
        %1199 = vmatprep.subr.mxu0 0.0
        %1200 = vmatpush1.msra.mxu0 0.0
        %1201 = vmatprep.subr.mxu0 0.0
        %1202 = vmatpush1.msra.mxu0 0.0
        %1203 = vmatprep.subr.mxu0 0.0
        %1204 = vmatpush1.msra.mxu0 0.0
        %1205 = vmatprep.subr.mxu0 0.0
        %1206 = vmatpush1.msra.mxu0 0.0
        %1207 = vmatprep.subr.mxu0 0.0
        %1208 = vmatpush1.msra.mxu0 0.0
        %1209 = vmatprep.subr.mxu0 0.0
        %1210 = vmatpush1.msra.mxu0 0.0
        %1211 = vmatprep.subr.mxu0 0.0
        %1212 = vmatpush1.msra.mxu0 0.0
        %1213 = vmatprep.subr.mxu0 0.0
        %1214 = vmatpush1.msra.mxu0 0.0
        %1215 = vmatprep.subr.mxu0 0.0
        %1216 = vmatpush1.msra.mxu0 0.0
        %1217 = vmatprep.subr.mxu0 0.0
        %1218 = vmatpush1.msra.mxu0 0.0
        %1219 = vmatprep.subr.mxu0 0.0
        %1220 = vmatpush1.msra.mxu0 0.0
        %1221 = vmatprep.subr.mxu0 0.0
        %1222 = vmatpush1.msra.mxu0 0.0
        %1223 = vmatprep.subr.mxu0 0.0
        %1224 = vmatpush1.msra.mxu0 0.0
        %1225 = vmatprep.subr.mxu0 0.0
        %1226 = vmatpush1.msra.mxu0 0.0
        %1227 = vmatprep.subr.mxu0 0.0
        %1228 = vmatpush1.msra.mxu0 %v1195
        %1229 = vmatprep.subr.mxu0 0.0
        %1230 = vmatpush1.msra.mxu0 %v1194
        %1231 = vmatprep.subr.mxu0 0.0
        %1232 = vmatpush2.msra.mxu0 0.0
        %1233 = vmatprep.subr.mxu0 0.0
        %1234 = vmatpush2.msra.mxu0 0.0
        %1235 = vmatprep.subr.mxu0 0.0
        %1236 = vmatpush2.msra.mxu0 0.0
        %1237 = vmatprep.subr.mxu0 0.0
        %1238 = vmatpush2.msra.mxu0 0.0
        %1239 = vmatprep.subr.mxu0 0.0
        %1240 = vmatpush2.msra.mxu0 0.0
        %1241 = vmatprep.subr.mxu0 0.0
        %1242 = vmatpush2.msra.mxu0 0.0
        %1243 = vmatprep.subr.mxu0 0.0
        %1244 = vmatpush2.msra.mxu0 0.0
        %1245 = vmatprep.subr.mxu0 0.0
        %1246 = vmatpush2.msra.mxu0 0.0
        %1247 = vmatprep.subr.mxu0 0.0
        %1248 = vmatpush2.msra.mxu0 0.0
        %1249 = vmatprep.subr.mxu0 0.0
        %1250 = vmatpush2.msra.mxu0 0.0
        %1251 = vmatprep.subr.mxu0 0.0
        %1252 = vmatpush2.msra.mxu0 0.0
        %1253 = vmatprep.subr.mxu0 0.0
        %1254 = vmatpush2.msra.mxu0 0.0
        %1255 = vmatprep.subr.mxu0 0.0
        %1256 = vmatpush2.msra.mxu0 0.0
        %1257 = vmatprep.subr.mxu0 0.0
        %1258 = vmatpush2.msra.mxu0 0.0
        %1259 = vmatprep.subr.mxu0 0.0
        %1260 = vmatpush2.msra.mxu0 0.0
        %1261 = vmatprep.subr.mxu0 0.0
        %1262 = vmatpush2.msra.mxu0 0.0
        %1263 = vmatprep.mubr.f32.mxu0 0.0
        %1264 = vmatmul.mubr.f32.gmra.mxu0 %v1197
        %v1265 = vpop.f32.mrf.mxu0
        %v1266 = vadd.f32 0.0, %v1265
        %v1267 = vpop.f32.mrf.mxu0
        %1268 = vdwg.mxu0
        %v1270 = vsel %vm644, %v803, 0
        %1272 = vmatprep.subr.mxu0 0.0
        %1273 = vmatpush1.msra.mxu0 0.0
        %1274 = vmatprep.subr.mxu0 0.0
        %1275 = vmatpush1.msra.mxu0 0.0
        %1276 = vmatprep.subr.mxu0 0.0
        %1277 = vmatpush1.msra.mxu0 0.0
        %1278 = vmatprep.subr.mxu0 0.0
        %1279 = vmatpush1.msra.mxu0 0.0
        %1280 = vmatprep.subr.mxu0 0.0
        %1281 = vmatpush1.msra.mxu0 0.0
        %1282 = vmatprep.subr.mxu0 0.0
        %1283 = vmatpush1.msra.mxu0 0.0
        %1284 = vmatprep.subr.mxu0 0.0
        %1285 = vmatpush1.msra.mxu0 0.0
        %1286 = vmatprep.subr.mxu0 0.0
        %1287 = vmatpush1.msra.mxu0 0.0
        %1288 = vmatprep.subr.mxu0 0.0
        %1289 = vmatpush1.msra.mxu0 0.0
        %1290 = vmatprep.subr.mxu0 0.0
        %1291 = vmatpush1.msra.mxu0 0.0
        %1292 = vmatprep.subr.mxu0 0.0
        %1293 = vmatpush1.msra.mxu0 0.0
        %1294 = vmatprep.subr.mxu0 0.0
        %1295 = vmatpush1.msra.mxu0 0.0
        %1296 = vmatprep.subr.mxu0 0.0
        %1297 = vmatpush1.msra.mxu0 0.0
        %1298 = vmatprep.subr.mxu0 0.0
        %1299 = vmatpush1.msra.mxu0 0.0
        %1300 = vmatprep.subr.mxu0 0.0
        %1301 = vmatpush1.msra.mxu0 %v807
        %1302 = vmatprep.subr.mxu0 0.0
        %1303 = vmatpush1.msra.mxu0 %v806
        %1304 = vmatprep.subr.mxu0 0.0
        %1305 = vmatpush2.msra.mxu0 0.0
        %1306 = vmatprep.subr.mxu0 0.0
        %1307 = vmatpush2.msra.mxu0 0.0
        %1308 = vmatprep.subr.mxu0 0.0
        %1309 = vmatpush2.msra.mxu0 0.0
        %1310 = vmatprep.subr.mxu0 0.0
        %1311 = vmatpush2.msra.mxu0 0.0
        %1312 = vmatprep.subr.mxu0 0.0
        %1313 = vmatpush2.msra.mxu0 0.0
        %1314 = vmatprep.subr.mxu0 0.0
        %1315 = vmatpush2.msra.mxu0 0.0
        %1316 = vmatprep.subr.mxu0 0.0
        %1317 = vmatpush2.msra.mxu0 0.0
        %1318 = vmatprep.subr.mxu0 0.0
        %1319 = vmatpush2.msra.mxu0 0.0
        %1320 = vmatprep.subr.mxu0 0.0
        %1321 = vmatpush2.msra.mxu0 0.0
        %1322 = vmatprep.subr.mxu0 0.0
        %1323 = vmatpush2.msra.mxu0 0.0
        %1324 = vmatprep.subr.mxu0 0.0
        %1325 = vmatpush2.msra.mxu0 0.0
        %1326 = vmatprep.subr.mxu0 0.0
        %1327 = vmatpush2.msra.mxu0 0.0
        %1328 = vmatprep.subr.mxu0 0.0
        %1329 = vmatpush2.msra.mxu0 0.0
        %1330 = vmatprep.subr.mxu0 0.0
        %1331 = vmatpush2.msra.mxu0 0.0
        %1332 = vmatprep.subr.mxu0 0.0
        %1333 = vmatpush2.msra.mxu0 0.0
        %1334 = vmatprep.subr.mxu0 0.0
        %1335 = vmatpush2.msra.mxu0 0.0
        %1336 = vmatprep.mubr.f32.mxu0 0.0
        %1337 = vmatmul.mubr.f32.gmra.mxu0 %v1270
        %v1338 = vpop.f32.mrf.mxu0
        %v1339 = vadd.f32 %v1266, %v1338
        %v1340 = vpop.f32.mrf.mxu0
        %1341 = vdwg.mxu0
        %v1342 = vadd.f32 %v386, %v1339
        %v1343 = vlaneseq
        %v1344 = vshrl.u32 %v1343, 7
        %v1345 = vsub.s32 4, %v1344
        %v1346 = vrot.slane %v387, %v1345
        %v1347 = vadd.f32 %v1342, %v1346
        %v1348 = vsel %vm394, %v1347, 0.0
        %v1349 = vrot.slane %v1348, 4
        %v1350 = vadd.f32 %v1348, %v1349
        %v1351 = vrot.slane %v1350, 2
        %v1352 = vadd.f32 %v1350, %v1351
        %v1353 = vrot.slane %v1352, 1
        %v1354 = vadd.f32 %v1352, %v1353
        %v1355 = vrcp.pop 8.0
        %v1356 = vmul.f32 %v1354, %v1355
        %v1358 = vsel %vm394, %v1356, 0
        %1360 = vmatprep.subr.mxu0 0.0
        %1361 = vmatpush1.msra.mxu0 0.0
        %1362 = vmatprep.subr.mxu0 0.0
        %1363 = vmatpush1.msra.mxu0 0.0
        %1364 = vmatprep.subr.mxu0 0.0
        %1365 = vmatpush1.msra.mxu0 0.0
        %1366 = vmatprep.subr.mxu0 0.0
        %1367 = vmatpush1.msra.mxu0 0.0
        %1368 = vmatprep.subr.mxu0 0.0
        %1369 = vmatpush1.msra.mxu0 0.0
        %1370 = vmatprep.subr.mxu0 0.0
        %1371 = vmatpush1.msra.mxu0 0.0
        %1372 = vmatprep.subr.mxu0 0.0
        %1373 = vmatpush1.msra.mxu0 0.0
        %1374 = vmatprep.subr.mxu0 0.0
        %1375 = vmatpush1.msra.mxu0 0.0
        %1376 = vmatprep.subr.mxu0 0.0
        %1377 = vmatpush1.msra.mxu0 0.0
        %1378 = vmatprep.subr.mxu0 0.0
        %1379 = vmatpush1.msra.mxu0 0.0
        %1380 = vmatprep.subr.mxu0 0.0
        %1381 = vmatpush1.msra.mxu0 0.0
        %1382 = vmatprep.subr.mxu0 0.0
        %1383 = vmatpush1.msra.mxu0 0.0
        %1384 = vmatprep.subr.mxu0 0.0
        %1385 = vmatpush1.msra.mxu0 %v392
        %1386 = vmatprep.subr.mxu0 0.0
        %1387 = vmatpush1.msra.mxu0 %v391
        %1388 = vmatprep.subr.mxu0 0.0
        %1389 = vmatpush1.msra.mxu0 %v390
        %1390 = vmatprep.subr.mxu0 0.0
        %1391 = vmatpush1.msra.mxu0 %v389
        %1392 = vmatprep.subr.mxu0 0.0
        %1393 = vmatpush2.msra.mxu0 0.0
        %1394 = vmatprep.subr.mxu0 0.0
        %1395 = vmatpush2.msra.mxu0 0.0
        %1396 = vmatprep.subr.mxu0 0.0
        %1397 = vmatpush2.msra.mxu0 0.0
        %1398 = vmatprep.subr.mxu0 0.0
        %1399 = vmatpush2.msra.mxu0 0.0
        %1400 = vmatprep.subr.mxu0 0.0
        %1401 = vmatpush2.msra.mxu0 0.0
        %1402 = vmatprep.subr.mxu0 0.0
        %1403 = vmatpush2.msra.mxu0 0.0
        %1404 = vmatprep.subr.mxu0 0.0
        %1405 = vmatpush2.msra.mxu0 0.0
        %1406 = vmatprep.subr.mxu0 0.0
        %1407 = vmatpush2.msra.mxu0 0.0
        %1408 = vmatprep.subr.mxu0 0.0
        %1409 = vmatpush2.msra.mxu0 0.0
        %1410 = vmatprep.subr.mxu0 0.0
        %1411 = vmatpush2.msra.mxu0 0.0
        %1412 = vmatprep.subr.mxu0 0.0
        %1413 = vmatpush2.msra.mxu0 0.0
        %1414 = vmatprep.subr.mxu0 0.0
        %1415 = vmatpush2.msra.mxu0 0.0
        %1416 = vmatprep.subr.mxu0 0.0
        %1417 = vmatpush2.msra.mxu0 0.0
        %1418 = vmatprep.subr.mxu0 0.0
        %1419 = vmatpush2.msra.mxu0 0.0
        %1420 = vmatprep.subr.mxu0 0.0
        %1421 = vmatpush2.msra.mxu0 0.0
        %1422 = vmatprep.subr.mxu0 0.0
        %1423 = vmatpush2.msra.mxu0 0.0
        %1424 = vmatprep.mubr.f32.mxu0 0.0
        %1425 = vmatmul.mubr.f32.gmra.mxu0 %v1358
        %v1426 = vpop.f32.mrf.mxu0
        %v1427 = vadd.f32 0.0, %v1426
        %v1428 = vpop.f32.mrf.mxu0
        %1429 = vdwg.mxu0
        %v1430 = vmax.f32 %v1427, 0.0
        %v1432 = vsel %vm721, %v1430, 0
        %1434 = vmatprep.subr.mxu0 0.0
        %1435 = vmatpush1.msra.mxu0 0.0
        %1436 = vmatprep.subr.mxu0 0.0
        %1437 = vmatpush1.msra.mxu0 0.0
        %1438 = vmatprep.subr.mxu0 0.0
        %1439 = vmatpush1.msra.mxu0 0.0
        %1440 = vmatprep.subr.mxu0 0.0
        %1441 = vmatpush1.msra.mxu0 0.0
        %1442 = vmatprep.subr.mxu0 0.0
        %1443 = vmatpush1.msra.mxu0 0.0
        %1444 = vmatprep.subr.mxu0 0.0
        %1445 = vmatpush1.msra.mxu0 0.0
        %1446 = vmatprep.subr.mxu0 0.0
        %1447 = vmatpush1.msra.mxu0 0.0
        %1448 = vmatprep.subr.mxu0 0.0
        %1449 = vmatpush1.msra.mxu0 0.0
        %1450 = vmatprep.subr.mxu0 0.0
        %1451 = vmatpush1.msra.mxu0 0.0
        %1452 = vmatprep.subr.mxu0 0.0
        %1453 = vmatpush1.msra.mxu0 0.0
        %1454 = vmatprep.subr.mxu0 0.0
        %1455 = vmatpush1.msra.mxu0 0.0
        %1456 = vmatprep.subr.mxu0 0.0
        %1457 = vmatpush1.msra.mxu0 0.0
        %1458 = vmatprep.subr.mxu0 0.0
        %1459 = vmatpush1.msra.mxu0 0.0
        %1460 = vmatprep.subr.mxu0 0.0
        %1461 = vmatpush1.msra.mxu0 0.0
        %1462 = vmatprep.subr.mxu0 0.0
        %1463 = vmatpush1.msra.mxu0 0.0
        %1464 = vmatprep.subr.mxu0 0.0
        %1465 = vmatpush1.msra.mxu0 %v393
        %1466 = vmatprep.subr.mxu0 0.0
        %1467 = vmatpush2.msra.mxu0 0.0
        %1468 = vmatprep.subr.mxu0 0.0
        %1469 = vmatpush2.msra.mxu0 0.0
        %1470 = vmatprep.subr.mxu0 0.0
        %1471 = vmatpush2.msra.mxu0 0.0
        %1472 = vmatprep.subr.mxu0 0.0
        %1473 = vmatpush2.msra.mxu0 0.0
        %1474 = vmatprep.subr.mxu0 0.0
        %1475 = vmatpush2.msra.mxu0 0.0
        %1476 = vmatprep.subr.mxu0 0.0
        %1477 = vmatpush2.msra.mxu0 0.0
        %1478 = vmatprep.subr.mxu0 0.0
        %1479 = vmatpush2.msra.mxu0 0.0
        %1480 = vmatprep.subr.mxu0 0.0
        %1481 = vmatpush2.msra.mxu0 0.0
        %1482 = vmatprep.subr.mxu0 0.0
        %1483 = vmatpush2.msra.mxu0 0.0
        %1484 = vmatprep.subr.mxu0 0.0
        %1485 = vmatpush2.msra.mxu0 0.0
        %1486 = vmatprep.subr.mxu0 0.0
        %1487 = vmatpush2.msra.mxu0 0.0
        %1488 = vmatprep.subr.mxu0 0.0
        %1489 = vmatpush2.msra.mxu0 0.0
        %1490 = vmatprep.subr.mxu0 0.0
        %1491 = vmatpush2.msra.mxu0 0.0
        %1492 = vmatprep.subr.mxu0 0.0
        %1493 = vmatpush2.msra.mxu0 0.0
        %1494 = vmatprep.subr.mxu0 0.0
        %1495 = vmatpush2.msra.mxu0 0.0
        %1496 = vmatprep.subr.mxu0 0.0
        %1497 = vmatpush2.msra.mxu0 0.0
        %1498 = vmatprep.mubr.f32.mxu0 0.0
        %1499 = vmatmul.mubr.f32.gmra.mxu0 %v1432
        %v1500 = vpop.f32.mrf.mxu0
        %v1501 = vadd.f32 0.0, %v1500
        %v1502 = vpop.f32.mrf.mxu0
        %1503 = vdwg.mxu0
        %v1504 = vsub.f32 0.0, %v1501
        %v1505 = vmul.f32 %v1504, 1.442695
        %v1506 = vpow.pop %v1505
        %v1507 = vadd.f32 %v1506, 1.0
        %v1508 = vrcp.pop %v1507
        %v1509 = vmul.f32 1.0, %v1508
        %v1510 = vlaneseq
        %v1511 = vshrl.u32 %v1510, 7
        %v1512 = vsub.s32 0, %v1511
        %v1513 = vrot.slane %v1509, %v1512
        %v1514 = vmul.f32 %v1347, %v1513
        %v1515 = vsel %vm394, %v1514, 0.0
        %1516 = vadd.xlane.f32.xlu0 %v1515
        %v1517 = vpop.xlane.xlu0 %1516
        %v1518 = vmul.f32 %v1517, %v398
        %v1519 = vsub.f32 %v1514, %v1518
        %v1520 = vmul.f32 %v1519, %v1519
        %v1521 = vsel %vm394, %v1520, 0.0
        %1522 = vadd.xlane.f32.xlu0 %v1521
        %v1523 = vpop.xlane.xlu0 %1522
        %v1524 = vmul.f32 %v1523, %v398
        %v1525 = vadd.f32 %v1524, 1e-05
        %v1526 = vrsqrt.pop %v1525
        %v1527 = vmul.f32 %v1519, %v1526
        %v1528 = vlaneseq
        %v1529 = vshrl.u32 %v1528, 7
        %v1530 = vsub.s32 2, %v1529
        %v1531 = vrot.slane %v387, %v1530
        %v1532 = vmul.f32 %v1527, %v1531
        %v1533 = vlaneseq
        %v1534 = vshrl.u32 %v1533, 7
        %v1535 = vsub.s32 3, %v1534
        %v1536 = vrot.slane %v387, %v1535
        %v1537 = vadd.f32 %v1532, %v1536
        %v1538 = vld [vmem:[%s5] sm:$0xff]
        %v1539 = vld [vmem:[%s5 + $0x8] sm:$0xff]
        %v1540 = vld [vmem:[%s5 + $0x10] sm:$0xff]
        %v1541 = vld [vmem:[%s5 + $0x18] sm:$0xff]
        %v1542 = vlaneseq
        %v1543 = vshrl.u32 %v1542, 7
        %v1544 = vsub.s32 3, %v1543
        %v1545 = vrot.slane %v388, %v1544
        %v1547 = vsel %vm394, %v1537, 0
        %1549 = vmatprep.subr.mxu0 0.0
        %1550 = vmatpush1.msra.mxu0 0.0
        %1551 = vmatprep.subr.mxu0 0.0
        %1552 = vmatpush1.msra.mxu0 0.0
        %1553 = vmatprep.subr.mxu0 0.0
        %1554 = vmatpush1.msra.mxu0 0.0
        %1555 = vmatprep.subr.mxu0 0.0
        %1556 = vmatpush1.msra.mxu0 0.0
        %1557 = vmatprep.subr.mxu0 0.0
        %1558 = vmatpush1.msra.mxu0 0.0
        %1559 = vmatprep.subr.mxu0 0.0
        %1560 = vmatpush1.msra.mxu0 0.0
        %1561 = vmatprep.subr.mxu0 0.0
        %1562 = vmatpush1.msra.mxu0 0.0
        %1563 = vmatprep.subr.mxu0 0.0
        %1564 = vmatpush1.msra.mxu0 0.0
        %1565 = vmatprep.subr.mxu0 0.0
        %1566 = vmatpush1.msra.mxu0 0.0
        %1567 = vmatprep.subr.mxu0 0.0
        %1568 = vmatpush1.msra.mxu0 0.0
        %1569 = vmatprep.subr.mxu0 0.0
        %1570 = vmatpush1.msra.mxu0 0.0
        %1571 = vmatprep.subr.mxu0 0.0
        %1572 = vmatpush1.msra.mxu0 0.0
        %1573 = vmatprep.subr.mxu0 0.0
        %1574 = vmatpush1.msra.mxu0 %v1541
        %1575 = vmatprep.subr.mxu0 0.0
        %1576 = vmatpush1.msra.mxu0 %v1540
        %1577 = vmatprep.subr.mxu0 0.0
        %1578 = vmatpush1.msra.mxu0 %v1539
        %1579 = vmatprep.subr.mxu0 0.0
        %1580 = vmatpush1.msra.mxu0 %v1538
        %1581 = vmatprep.subr.mxu0 0.0
        %1582 = vmatpush2.msra.mxu0 0.0
        %1583 = vmatprep.subr.mxu0 0.0
        %1584 = vmatpush2.msra.mxu0 0.0
        %1585 = vmatprep.subr.mxu0 0.0
        %1586 = vmatpush2.msra.mxu0 0.0
        %1587 = vmatprep.subr.mxu0 0.0
        %1588 = vmatpush2.msra.mxu0 0.0
        %1589 = vmatprep.subr.mxu0 0.0
        %1590 = vmatpush2.msra.mxu0 0.0
        %1591 = vmatprep.subr.mxu0 0.0
        %1592 = vmatpush2.msra.mxu0 0.0
        %1593 = vmatprep.subr.mxu0 0.0
        %1594 = vmatpush2.msra.mxu0 0.0
        %1595 = vmatprep.subr.mxu0 0.0
        %1596 = vmatpush2.msra.mxu0 0.0
        %1597 = vmatprep.subr.mxu0 0.0
        %1598 = vmatpush2.msra.mxu0 0.0
        %1599 = vmatprep.subr.mxu0 0.0
        %1600 = vmatpush2.msra.mxu0 0.0
        %1601 = vmatprep.subr.mxu0 0.0
        %1602 = vmatpush2.msra.mxu0 0.0
        %1603 = vmatprep.subr.mxu0 0.0
        %1604 = vmatpush2.msra.mxu0 0.0
        %1605 = vmatprep.subr.mxu0 0.0
        %1606 = vmatpush2.msra.mxu0 0.0
        %1607 = vmatprep.subr.mxu0 0.0
        %1608 = vmatpush2.msra.mxu0 0.0
        %1609 = vmatprep.subr.mxu0 0.0
        %1610 = vmatpush2.msra.mxu0 0.0
        %1611 = vmatprep.subr.mxu0 0.0
        %1612 = vmatpush2.msra.mxu0 0.0
        %1613 = vmatprep.mubr.f32.mxu0 0.0
        %1614 = vmatmul.mubr.f32.gmra.mxu0 %v1547
        %v1615 = vpop.f32.mrf.mxu0
        %v1616 = vadd.f32 %v1545, %v1615
        %v1617 = vpop.f32.mrf.mxu0
        %1618 = vdwg.mxu0
        %v1619 = vmul.f32 %v1616, 0.5
        %v1620 = vmul.f32 %v1616, 0.70710677
        %v1621 = vand.u32 2147483647, %v1620
        %v1622 = vmul.f32 %v1621, 0.3275911
        %v1623 = vadd.f32 %v1622, 1.0
        %v1624 = vrcp.pop %v1623
        %v1625 = vmul.f32 1.0, %v1624
        %v1626 = vmul.f32 %v1625, 1.0614054
        %v1627 = vadd.f32 %v1626, -1.4531521
        %v1628 = vmul.f32 %v1627, %v1625
        %v1629 = vadd.f32 %v1628, 1.4214138
        %v1630 = vmul.f32 %v1629, %v1625
        %v1631 = vadd.f32 %v1630, -0.28449672
        %v1632 = vmul.f32 %v1631, %v1625
        %v1633 = vadd.f32 %v1632, 0.2548296
        %v1634 = vmul.f32 %v1633, %v1625
        %v1635 = vsub.f32 0.0, %v1621
        %v1636 = vmul.f32 %v1635, %v1621
        %v1637 = vmul.f32 %v1636, 1.442695
        %v1638 = vpow.pop %v1637
        %v1639 = vmul.f32 %v1634, %v1638
        %v1640 = vsub.f32 1.0, %v1639
        %vm1641 = vcmp.lt.f32.partialorder %v1620, 0.0
        %v1642 = vsub.f32 0.0, %v1640
        %v1643 = vsel %vm1641, %v1642, %v1640
        %v1644 = vadd.f32 %v1643, 1.0
        %v1645 = vmul.f32 %v1619, %v1644
        %v1646 = vrot.slane %v1645, 7
        %v1647 = vsel %vm384, 1, 0
        %vm1648 = vcmp.eq.s32.totalorder %v1647, 1
        %v1649 = vsel %vm1648, %v1646, 0.0
        %v1650 = vrot.slane %v1645, 1
        %v1651 = vsel %vm385, 1, 0
        %vm1652 = vcmp.eq.s32.totalorder %v1651, 1
        %v1653 = vsel %vm1652, %v1650, 0.0
        %v1654 = vlaneseq
        %v1655 = vshrl.u32 %v1654, 7
        %v1656 = vsub.s32 0, %v1655
        %v1657 = vrot.slane %v388, %v1656
        %v1658 = vmul.f32 %v1649, %v1657
        %v1659 = vlaneseq
        %v1660 = vshrl.u32 %v1659, 7
        %v1661 = vsub.s32 1, %v1660
        %v1662 = vrot.slane %v388, %v1661
        %v1663 = vmul.f32 %v1645, %v1662
        %v1664 = vadd.f32 %v1658, %v1663
        %v1665 = vlaneseq
        %v1666 = vshrl.u32 %v1665, 7
        %v1667 = vsub.s32 2, %v1666
        %v1668 = vrot.slane %v388, %v1667
        %v1669 = vmul.f32 %v1653, %v1668
        %v1670 = vadd.f32 %v1664, %v1669
        %v1671 = vlaneseq
        %v1672 = vshrl.u32 %v1671, 7
        %v1673 = vsub.s32 4, %v1672
        %v1674 = vrot.slane %v388, %v1673
        %v1675 = vadd.f32 %v1670, %v1674
        %v1676 = vmul.f32 %v1675, 0.5
        %v1677 = vmul.f32 %v1675, 0.70710677
        %v1678 = vand.u32 2147483647, %v1677
        %v1679 = vmul.f32 %v1678, 0.3275911
        %v1680 = vadd.f32 %v1679, 1.0
        %v1681 = vrcp.pop %v1680
        %v1682 = vmul.f32 1.0, %v1681
        %v1683 = vmul.f32 %v1682, 1.0614054
        %v1684 = vadd.f32 %v1683, -1.4531521
        %v1685 = vmul.f32 %v1684, %v1682
        %v1686 = vadd.f32 %v1685, 1.4214138
        %v1687 = vmul.f32 %v1686, %v1682
        %v1688 = vadd.f32 %v1687, -0.28449672
        %v1689 = vmul.f32 %v1688, %v1682
        %v1690 = vadd.f32 %v1689, 0.2548296
        %v1691 = vmul.f32 %v1690, %v1682
        %v1692 = vsub.f32 0.0, %v1678
        %v1693 = vmul.f32 %v1692, %v1678
        %v1694 = vmul.f32 %v1693, 1.442695
        %v1695 = vpow.pop %v1694
        %v1696 = vmul.f32 %v1691, %v1695
        %v1697 = vsub.f32 1.0, %v1696
        %vm1698 = vcmp.lt.f32.partialorder %v1677, 0.0
        %v1699 = vsub.f32 0.0, %v1697
        %v1700 = vsel %vm1698, %v1699, %v1697
        %v1701 = vadd.f32 %v1700, 1.0
        %v1702 = vmul.f32 %v1676, %v1701
        %v1703 = vld [vmem:[%s6] sm:$0xff]
        %v1704 = vld [vmem:[%s6 + $0x8] sm:$0xff]
        %v1705 = vld [vmem:[%s6 + $0x10] sm:$0xff]
        %v1706 = vld [vmem:[%s6 + $0x18] sm:$0xff]
        %v1707 = vld [vmem:[%s6 + $0x20] sm:$0xff]
        %v1708 = vld [vmem:[%s6 + $0x28] sm:$0xff]
        %v1709 = vld [vmem:[%s6 + $0x30] sm:$0xff]
        %v1710 = vld [vmem:[%s6 + $0x38] sm:$0xff]
        %v1711 = vlaneseq
        %v1712 = vshrl.u32 %v1711, 7
        %v1713 = vsub.s32 5, %v1712
        %v1714 = vrot.slane %v387, %v1713
        %vm1715 = vcmask 523264
        %v1717 = vsel %vm1715, %v1702, 0
        %1719 = vmatprep.subr.mxu0 0.0
        %1720 = vmatpush1.msra.mxu0 0.0
        %1721 = vmatprep.subr.mxu0 0.0
        %1722 = vmatpush1.msra.mxu0 0.0
        %1723 = vmatprep.subr.mxu0 0.0
        %1724 = vmatpush1.msra.mxu0 0.0
        %1725 = vmatprep.subr.mxu0 0.0
        %1726 = vmatpush1.msra.mxu0 0.0
        %1727 = vmatprep.subr.mxu0 0.0
        %1728 = vmatpush1.msra.mxu0 0.0
        %1729 = vmatprep.subr.mxu0 0.0
        %1730 = vmatpush1.msra.mxu0 0.0
        %1731 = vmatprep.subr.mxu0 0.0
        %1732 = vmatpush1.msra.mxu0 0.0
        %1733 = vmatprep.subr.mxu0 0.0
        %1734 = vmatpush1.msra.mxu0 0.0
        %1735 = vmatprep.subr.mxu0 0.0
        %1736 = vmatpush1.msra.mxu0 %v1710
        %1737 = vmatprep.subr.mxu0 0.0
        %1738 = vmatpush1.msra.mxu0 %v1709
        %1739 = vmatprep.subr.mxu0 0.0
        %1740 = vmatpush1.msra.mxu0 %v1708
        %1741 = vmatprep.subr.mxu0 0.0
        %1742 = vmatpush1.msra.mxu0 %v1707
        %1743 = vmatprep.subr.mxu0 0.0
        %1744 = vmatpush1.msra.mxu0 %v1706
        %1745 = vmatprep.subr.mxu0 0.0
        %1746 = vmatpush1.msra.mxu0 %v1705
        %1747 = vmatprep.subr.mxu0 0.0
        %1748 = vmatpush1.msra.mxu0 %v1704
        %1749 = vmatprep.subr.mxu0 0.0
        %1750 = vmatpush1.msra.mxu0 %v1703
        %1751 = vmatprep.subr.mxu0 0.0
        %1752 = vmatpush2.msra.mxu0 0.0
        %1753 = vmatprep.subr.mxu0 0.0
        %1754 = vmatpush2.msra.mxu0 0.0
        %1755 = vmatprep.subr.mxu0 0.0
        %1756 = vmatpush2.msra.mxu0 0.0
        %1757 = vmatprep.subr.mxu0 0.0
        %1758 = vmatpush2.msra.mxu0 0.0
        %1759 = vmatprep.subr.mxu0 0.0
        %1760 = vmatpush2.msra.mxu0 0.0
        %1761 = vmatprep.subr.mxu0 0.0
        %1762 = vmatpush2.msra.mxu0 0.0
        %1763 = vmatprep.subr.mxu0 0.0
        %1764 = vmatpush2.msra.mxu0 0.0
        %1765 = vmatprep.subr.mxu0 0.0
        %1766 = vmatpush2.msra.mxu0 0.0
        %1767 = vmatprep.subr.mxu0 0.0
        %1768 = vmatpush2.msra.mxu0 0.0
        %1769 = vmatprep.subr.mxu0 0.0
        %1770 = vmatpush2.msra.mxu0 0.0
        %1771 = vmatprep.subr.mxu0 0.0
        %1772 = vmatpush2.msra.mxu0 0.0
        %1773 = vmatprep.subr.mxu0 0.0
        %1774 = vmatpush2.msra.mxu0 0.0
        %1775 = vmatprep.subr.mxu0 0.0
        %1776 = vmatpush2.msra.mxu0 0.0
        %1777 = vmatprep.subr.mxu0 0.0
        %1778 = vmatpush2.msra.mxu0 0.0
        %1779 = vmatprep.subr.mxu0 0.0
        %1780 = vmatpush2.msra.mxu0 0.0
        %1781 = vmatprep.subr.mxu0 0.0
        %1782 = vmatpush2.msra.mxu0 0.0
        %1783 = vmatprep.mubr.f32.mxu0 0.0
        %1784 = vmatmul.mubr.f32.gmra.mxu0 %v1717
        %v1785 = vpop.f32.mrf.mxu0
        %v1786 = vadd.f32 %v1714, %v1785
        %v1787 = vpop.f32.mrf.mxu0
        %1788 = vdwg.mxu0
        %v1789 = vadd.f32 %v1514, %v1786
        %v1790 = vsel %vm394, %v1789, 0.0
        %v1791 = vrot.slane %v1790, 4
        %v1792 = vadd.f32 %v1790, %v1791
        %v1793 = vrot.slane %v1792, 2
        %v1794 = vadd.f32 %v1792, %v1793
        %v1795 = vrot.slane %v1794, 1
        %v1796 = vadd.f32 %v1794, %v1795
        %v1797 = vmul.f32 %v1796, %v1355
        %v1799 = vsel %vm394, %v1797, 0
        %1801 = vmatprep.subr.mxu0 0.0
        %1802 = vmatpush1.msra.mxu0 0.0
        %1803 = vmatprep.subr.mxu0 0.0
        %1804 = vmatpush1.msra.mxu0 0.0
        %1805 = vmatprep.subr.mxu0 0.0
        %1806 = vmatpush1.msra.mxu0 0.0
        %1807 = vmatprep.subr.mxu0 0.0
        %1808 = vmatpush1.msra.mxu0 0.0
        %1809 = vmatprep.subr.mxu0 0.0
        %1810 = vmatpush1.msra.mxu0 0.0
        %1811 = vmatprep.subr.mxu0 0.0
        %1812 = vmatpush1.msra.mxu0 0.0
        %1813 = vmatprep.subr.mxu0 0.0
        %1814 = vmatpush1.msra.mxu0 0.0
        %1815 = vmatprep.subr.mxu0 0.0
        %1816 = vmatpush1.msra.mxu0 0.0
        %1817 = vmatprep.subr.mxu0 0.0
        %1818 = vmatpush1.msra.mxu0 0.0
        %1819 = vmatprep.subr.mxu0 0.0
        %1820 = vmatpush1.msra.mxu0 0.0
        %1821 = vmatprep.subr.mxu0 0.0
        %1822 = vmatpush1.msra.mxu0 0.0
        %1823 = vmatprep.subr.mxu0 0.0
        %1824 = vmatpush1.msra.mxu0 0.0
        %1825 = vmatprep.subr.mxu0 0.0
        %1826 = vmatpush1.msra.mxu0 %v392
        %1827 = vmatprep.subr.mxu0 0.0
        %1828 = vmatpush1.msra.mxu0 %v391
        %1829 = vmatprep.subr.mxu0 0.0
        %1830 = vmatpush1.msra.mxu0 %v390
        %1831 = vmatprep.subr.mxu0 0.0
        %1832 = vmatpush1.msra.mxu0 %v389
        %1833 = vmatprep.subr.mxu0 0.0
        %1834 = vmatpush2.msra.mxu0 0.0
        %1835 = vmatprep.subr.mxu0 0.0
        %1836 = vmatpush2.msra.mxu0 0.0
        %1837 = vmatprep.subr.mxu0 0.0
        %1838 = vmatpush2.msra.mxu0 0.0
        %1839 = vmatprep.subr.mxu0 0.0
        %1840 = vmatpush2.msra.mxu0 0.0
        %1841 = vmatprep.subr.mxu0 0.0
        %1842 = vmatpush2.msra.mxu0 0.0
        %1843 = vmatprep.subr.mxu0 0.0
        %1844 = vmatpush2.msra.mxu0 0.0
        %1845 = vmatprep.subr.mxu0 0.0
        %1846 = vmatpush2.msra.mxu0 0.0
        %1847 = vmatprep.subr.mxu0 0.0
        %1848 = vmatpush2.msra.mxu0 0.0
        %1849 = vmatprep.subr.mxu0 0.0
        %1850 = vmatpush2.msra.mxu0 0.0
        %1851 = vmatprep.subr.mxu0 0.0
        %1852 = vmatpush2.msra.mxu0 0.0
        %1853 = vmatprep.subr.mxu0 0.0
        %1854 = vmatpush2.msra.mxu0 0.0
        %1855 = vmatprep.subr.mxu0 0.0
        %1856 = vmatpush2.msra.mxu0 0.0
        %1857 = vmatprep.subr.mxu0 0.0
        %1858 = vmatpush2.msra.mxu0 0.0
        %1859 = vmatprep.subr.mxu0 0.0
        %1860 = vmatpush2.msra.mxu0 0.0
        %1861 = vmatprep.subr.mxu0 0.0
        %1862 = vmatpush2.msra.mxu0 0.0
        %1863 = vmatprep.subr.mxu0 0.0
        %1864 = vmatpush2.msra.mxu0 0.0
        %1865 = vmatprep.mubr.f32.mxu0 0.0
        %1866 = vmatmul.mubr.f32.gmra.mxu0 %v1799
        %v1867 = vpop.f32.mrf.mxu0
        %v1868 = vadd.f32 0.0, %v1867
        %v1869 = vpop.f32.mrf.mxu0
        %1870 = vdwg.mxu0
        %v1871 = vmax.f32 %v1868, 0.0
        %v1873 = vsel %vm721, %v1871, 0
        %1875 = vmatprep.subr.mxu0 0.0
        %1876 = vmatpush1.msra.mxu0 0.0
        %1877 = vmatprep.subr.mxu0 0.0
        %1878 = vmatpush1.msra.mxu0 0.0
        %1879 = vmatprep.subr.mxu0 0.0
        %1880 = vmatpush1.msra.mxu0 0.0
        %1881 = vmatprep.subr.mxu0 0.0
        %1882 = vmatpush1.msra.mxu0 0.0
        %1883 = vmatprep.subr.mxu0 0.0
        %1884 = vmatpush1.msra.mxu0 0.0
        %1885 = vmatprep.subr.mxu0 0.0
        %1886 = vmatpush1.msra.mxu0 0.0
        %1887 = vmatprep.subr.mxu0 0.0
        %1888 = vmatpush1.msra.mxu0 0.0
        %1889 = vmatprep.subr.mxu0 0.0
        %1890 = vmatpush1.msra.mxu0 0.0
        %1891 = vmatprep.subr.mxu0 0.0
        %1892 = vmatpush1.msra.mxu0 0.0
        %1893 = vmatprep.subr.mxu0 0.0
        %1894 = vmatpush1.msra.mxu0 0.0
        %1895 = vmatprep.subr.mxu0 0.0
        %1896 = vmatpush1.msra.mxu0 0.0
        %1897 = vmatprep.subr.mxu0 0.0
        %1898 = vmatpush1.msra.mxu0 0.0
        %1899 = vmatprep.subr.mxu0 0.0
        %1900 = vmatpush1.msra.mxu0 0.0
        %1901 = vmatprep.subr.mxu0 0.0
        %1902 = vmatpush1.msra.mxu0 0.0
        %1903 = vmatprep.subr.mxu0 0.0
        %1904 = vmatpush1.msra.mxu0 0.0
        %1905 = vmatprep.subr.mxu0 0.0
        %1906 = vmatpush1.msra.mxu0 %v393
        %1907 = vmatprep.subr.mxu0 0.0
        %1908 = vmatpush2.msra.mxu0 0.0
        %1909 = vmatprep.subr.mxu0 0.0
        %1910 = vmatpush2.msra.mxu0 0.0
        %1911 = vmatprep.subr.mxu0 0.0
        %1912 = vmatpush2.msra.mxu0 0.0
        %1913 = vmatprep.subr.mxu0 0.0
        %1914 = vmatpush2.msra.mxu0 0.0
        %1915 = vmatprep.subr.mxu0 0.0
        %1916 = vmatpush2.msra.mxu0 0.0
        %1917 = vmatprep.subr.mxu0 0.0
        %1918 = vmatpush2.msra.mxu0 0.0
        %1919 = vmatprep.subr.mxu0 0.0
        %1920 = vmatpush2.msra.mxu0 0.0
        %1921 = vmatprep.subr.mxu0 0.0
        %1922 = vmatpush2.msra.mxu0 0.0
        %1923 = vmatprep.subr.mxu0 0.0
        %1924 = vmatpush2.msra.mxu0 0.0
        %1925 = vmatprep.subr.mxu0 0.0
        %1926 = vmatpush2.msra.mxu0 0.0
        %1927 = vmatprep.subr.mxu0 0.0
        %1928 = vmatpush2.msra.mxu0 0.0
        %1929 = vmatprep.subr.mxu0 0.0
        %1930 = vmatpush2.msra.mxu0 0.0
        %1931 = vmatprep.subr.mxu0 0.0
        %1932 = vmatpush2.msra.mxu0 0.0
        %1933 = vmatprep.subr.mxu0 0.0
        %1934 = vmatpush2.msra.mxu0 0.0
        %1935 = vmatprep.subr.mxu0 0.0
        %1936 = vmatpush2.msra.mxu0 0.0
        %1937 = vmatprep.subr.mxu0 0.0
        %1938 = vmatpush2.msra.mxu0 0.0
        %1939 = vmatprep.mubr.f32.mxu0 0.0
        %1940 = vmatmul.mubr.f32.gmra.mxu0 %v1873
        %v1941 = vpop.f32.mrf.mxu0
        %v1942 = vadd.f32 0.0, %v1941
        %v1943 = vpop.f32.mrf.mxu0
        %1944 = vdwg.mxu0
        %v1945 = vsub.f32 0.0, %v1942
        %v1946 = vmul.f32 %v1945, 1.442695
        %v1947 = vpow.pop %v1946
        %v1948 = vadd.f32 %v1947, 1.0
        %v1949 = vrcp.pop %v1948
        %v1950 = vmul.f32 1.0, %v1949
        %v1951 = vlaneseq
        %v1952 = vshrl.u32 %v1951, 7
        %v1953 = vsub.s32 0, %v1952
        %v1954 = vrot.slane %v1950, %v1953
        %v1955 = vmul.f32 %v1789, %v1954
        %s1956 = scalar_lea.vmem %s9, 8
        %v1957 = vld [vmem:[%s1956] sm:$0x3f]
        %s1958 = scalar_lea.vmem %s10, 8
        %v1959 = vld [vmem:[%s1958] sm:$0x1f]
        %s1960 = scalar_lea.vmem %s7, 32
        %v1961 = vld [vmem:[%s1960] sm:$0xff]
        %v1962 = vld [vmem:[%s1960 + $0x8] sm:$0xff]
        %v1963 = vld [vmem:[%s1960 + $0x10] sm:$0xff]
        %v1964 = vld [vmem:[%s1960 + $0x18] sm:$0xff]
        %s1965 = scalar_lea.vmem %s8, 8
        %v1966 = vld [vmem:[%s1965] sm:$0xff]
        %v1967 = vsel %vm394, %v1955, 0.0
        %1968 = vadd.xlane.f32.xlu0 %v1967
        %v1969 = vpop.xlane.xlu0 %1968
        %v1970 = vmul.f32 %v1969, %v398
        %v1971 = vsub.f32 %v1955, %v1970
        %v1972 = vmul.f32 %v1971, %v1971
        %v1973 = vsel %vm394, %v1972, 0.0
        %1974 = vadd.xlane.f32.xlu0 %v1973
        %v1975 = vpop.xlane.xlu0 %1974
        %v1976 = vmul.f32 %v1975, %v398
        %v1977 = vadd.f32 %v1976, 1e-05
        %v1978 = vrsqrt.pop %v1977
        %v1979 = vmul.f32 %v1971, %v1978
        %v1980 = vlaneseq
        %v1981 = vshrl.u32 %v1980, 7
        %v1982 = vsub.s32 0, %v1981
        %v1983 = vrot.slane %v1957, %v1982
        %v1984 = vmul.f32 %v1979, %v1983
        %v1985 = vlaneseq
        %v1986 = vshrl.u32 %v1985, 7
        %v1987 = vsub.s32 1, %v1986
        %v1988 = vrot.slane %v1957, %v1987
        %v1989 = vadd.f32 %v1984, %v1988
        %s1990 = scalar_lea.vmem %s1, 64
        %v1991 = vld [vmem:[%s1990] sm:$0xff]
        %v1992 = vld [vmem:[%s1990 + $0x8] sm:$0xff]
        %v1993 = vld [vmem:[%s1990 + $0x10] sm:$0xff]
        %v1994 = vld [vmem:[%s1990 + $0x18] sm:$0xff]
        %v1996 = vsel %vm394, %v1989, 0
        %1998 = vmatprep.subr.mxu0 0.0
        %1999 = vmatpush1.msra.mxu0 0.0
        %2000 = vmatprep.subr.mxu0 0.0
        %2001 = vmatpush1.msra.mxu0 0.0
        %2002 = vmatprep.subr.mxu0 0.0
        %2003 = vmatpush1.msra.mxu0 0.0
        %2004 = vmatprep.subr.mxu0 0.0
        %2005 = vmatpush1.msra.mxu0 0.0
        %2006 = vmatprep.subr.mxu0 0.0
        %2007 = vmatpush1.msra.mxu0 0.0
        %2008 = vmatprep.subr.mxu0 0.0
        %2009 = vmatpush1.msra.mxu0 0.0
        %2010 = vmatprep.subr.mxu0 0.0
        %2011 = vmatpush1.msra.mxu0 0.0
        %2012 = vmatprep.subr.mxu0 0.0
        %2013 = vmatpush1.msra.mxu0 0.0
        %2014 = vmatprep.subr.mxu0 0.0
        %2015 = vmatpush1.msra.mxu0 0.0
        %2016 = vmatprep.subr.mxu0 0.0
        %2017 = vmatpush1.msra.mxu0 0.0
        %2018 = vmatprep.subr.mxu0 0.0
        %2019 = vmatpush1.msra.mxu0 0.0
        %2020 = vmatprep.subr.mxu0 0.0
        %2021 = vmatpush1.msra.mxu0 0.0
        %2022 = vmatprep.subr.mxu0 0.0
        %2023 = vmatpush1.msra.mxu0 %v1994
        %2024 = vmatprep.subr.mxu0 0.0
        %2025 = vmatpush1.msra.mxu0 %v1993
        %2026 = vmatprep.subr.mxu0 0.0
        %2027 = vmatpush1.msra.mxu0 %v1992
        %2028 = vmatprep.subr.mxu0 0.0
        %2029 = vmatpush1.msra.mxu0 %v1991
        %2030 = vmatprep.subr.mxu0 0.0
        %2031 = vmatpush2.msra.mxu0 0.0
        %2032 = vmatprep.subr.mxu0 0.0
        %2033 = vmatpush2.msra.mxu0 0.0
        %2034 = vmatprep.subr.mxu0 0.0
        %2035 = vmatpush2.msra.mxu0 0.0
        %2036 = vmatprep.subr.mxu0 0.0
        %2037 = vmatpush2.msra.mxu0 0.0
        %2038 = vmatprep.subr.mxu0 0.0
        %2039 = vmatpush2.msra.mxu0 0.0
        %2040 = vmatprep.subr.mxu0 0.0
        %2041 = vmatpush2.msra.mxu0 0.0
        %2042 = vmatprep.subr.mxu0 0.0
        %2043 = vmatpush2.msra.mxu0 0.0
        %2044 = vmatprep.subr.mxu0 0.0
        %2045 = vmatpush2.msra.mxu0 0.0
        %2046 = vmatprep.subr.mxu0 0.0
        %2047 = vmatpush2.msra.mxu0 0.0
        %2048 = vmatprep.subr.mxu0 0.0
        %2049 = vmatpush2.msra.mxu0 0.0
        %2050 = vmatprep.subr.mxu0 0.0
        %2051 = vmatpush2.msra.mxu0 0.0
        %2052 = vmatprep.subr.mxu0 0.0
        %2053 = vmatpush2.msra.mxu0 0.0
        %2054 = vmatprep.subr.mxu0 0.0
        %2055 = vmatpush2.msra.mxu0 0.0
        %2056 = vmatprep.subr.mxu0 0.0
        %2057 = vmatpush2.msra.mxu0 0.0
        %2058 = vmatprep.subr.mxu0 0.0
        %2059 = vmatpush2.msra.mxu0 0.0
        %2060 = vmatprep.subr.mxu0 0.0
        %2061 = vmatpush2.msra.mxu0 0.0
        %2062 = vmatprep.mubr.f32.mxu0 0.0
        %2063 = vmatmul.mubr.f32.gmra.mxu0 %v1996
        %v2064 = vpop.f32.mrf.mxu0
        %v2065 = vadd.f32 0.0, %v2064
        %v2066 = vpop.f32.mrf.mxu0
        %2067 = vdwg.mxu0
        %s2068 = scalar_lea.vmem %s2, 64
        %v2069 = vld [vmem:[%s2068] sm:$0xff]
        %v2070 = vld [vmem:[%s2068 + $0x8] sm:$0xff]
        %v2071 = vld [vmem:[%s2068 + $0x10] sm:$0xff]
        %v2072 = vld [vmem:[%s2068 + $0x18] sm:$0xff]
        %2073 = vmatprep.subr.mxu0 0.0
        %2074 = vmatpush1.msra.mxu0 0.0
        %2075 = vmatprep.subr.mxu0 0.0
        %2076 = vmatpush1.msra.mxu0 0.0
        %2077 = vmatprep.subr.mxu0 0.0
        %2078 = vmatpush1.msra.mxu0 0.0
        %2079 = vmatprep.subr.mxu0 0.0
        %2080 = vmatpush1.msra.mxu0 0.0
        %2081 = vmatprep.subr.mxu0 0.0
        %2082 = vmatpush1.msra.mxu0 0.0
        %2083 = vmatprep.subr.mxu0 0.0
        %2084 = vmatpush1.msra.mxu0 0.0
        %2085 = vmatprep.subr.mxu0 0.0
        %2086 = vmatpush1.msra.mxu0 0.0
        %2087 = vmatprep.subr.mxu0 0.0
        %2088 = vmatpush1.msra.mxu0 0.0
        %2089 = vmatprep.subr.mxu0 0.0
        %2090 = vmatpush1.msra.mxu0 0.0
        %2091 = vmatprep.subr.mxu0 0.0
        %2092 = vmatpush1.msra.mxu0 0.0
        %2093 = vmatprep.subr.mxu0 0.0
        %2094 = vmatpush1.msra.mxu0 0.0
        %2095 = vmatprep.subr.mxu0 0.0
        %2096 = vmatpush1.msra.mxu0 0.0
        %2097 = vmatprep.subr.mxu0 0.0
        %2098 = vmatpush1.msra.mxu0 %v2072
        %2099 = vmatprep.subr.mxu0 0.0
        %2100 = vmatpush1.msra.mxu0 %v2071
        %2101 = vmatprep.subr.mxu0 0.0
        %2102 = vmatpush1.msra.mxu0 %v2070
        %2103 = vmatprep.subr.mxu0 0.0
        %2104 = vmatpush1.msra.mxu0 %v2069
        %2105 = vmatprep.subr.mxu0 0.0
        %2106 = vmatpush2.msra.mxu0 0.0
        %2107 = vmatprep.subr.mxu0 0.0
        %2108 = vmatpush2.msra.mxu0 0.0
        %2109 = vmatprep.subr.mxu0 0.0
        %2110 = vmatpush2.msra.mxu0 0.0
        %2111 = vmatprep.subr.mxu0 0.0
        %2112 = vmatpush2.msra.mxu0 0.0
        %2113 = vmatprep.subr.mxu0 0.0
        %2114 = vmatpush2.msra.mxu0 0.0
        %2115 = vmatprep.subr.mxu0 0.0
        %2116 = vmatpush2.msra.mxu0 0.0
        %2117 = vmatprep.subr.mxu0 0.0
        %2118 = vmatpush2.msra.mxu0 0.0
        %2119 = vmatprep.subr.mxu0 0.0
        %2120 = vmatpush2.msra.mxu0 0.0
        %2121 = vmatprep.subr.mxu0 0.0
        %2122 = vmatpush2.msra.mxu0 0.0
        %2123 = vmatprep.subr.mxu0 0.0
        %2124 = vmatpush2.msra.mxu0 0.0
        %2125 = vmatprep.subr.mxu0 0.0
        %2126 = vmatpush2.msra.mxu0 0.0
        %2127 = vmatprep.subr.mxu0 0.0
        %2128 = vmatpush2.msra.mxu0 0.0
        %2129 = vmatprep.subr.mxu0 0.0
        %2130 = vmatpush2.msra.mxu0 0.0
        %2131 = vmatprep.subr.mxu0 0.0
        %2132 = vmatpush2.msra.mxu0 0.0
        %2133 = vmatprep.subr.mxu0 0.0
        %2134 = vmatpush2.msra.mxu0 0.0
        %2135 = vmatprep.subr.mxu0 0.0
        %2136 = vmatpush2.msra.mxu0 0.0
        %2137 = vmatprep.mubr.f32.mxu0 0.0
        %2138 = vmatmul.mubr.f32.gmra.mxu0 %v1996
        %v2139 = vpop.f32.mrf.mxu0
        %v2140 = vadd.f32 0.0, %v2139
        %v2141 = vpop.f32.mrf.mxu0
        %2142 = vdwg.mxu0
        %s2143 = scalar_lea.vmem %s3, 64
        %v2144 = vld [vmem:[%s2143] sm:$0xff]
        %v2145 = vld [vmem:[%s2143 + $0x8] sm:$0xff]
        %v2146 = vld [vmem:[%s2143 + $0x10] sm:$0xff]
        %v2147 = vld [vmem:[%s2143 + $0x18] sm:$0xff]
        %2148 = vmatprep.subr.mxu0 0.0
        %2149 = vmatpush1.msra.mxu0 0.0
        %2150 = vmatprep.subr.mxu0 0.0
        %2151 = vmatpush1.msra.mxu0 0.0
        %2152 = vmatprep.subr.mxu0 0.0
        %2153 = vmatpush1.msra.mxu0 0.0
        %2154 = vmatprep.subr.mxu0 0.0
        %2155 = vmatpush1.msra.mxu0 0.0
        %2156 = vmatprep.subr.mxu0 0.0
        %2157 = vmatpush1.msra.mxu0 0.0
        %2158 = vmatprep.subr.mxu0 0.0
        %2159 = vmatpush1.msra.mxu0 0.0
        %2160 = vmatprep.subr.mxu0 0.0
        %2161 = vmatpush1.msra.mxu0 0.0
        %2162 = vmatprep.subr.mxu0 0.0
        %2163 = vmatpush1.msra.mxu0 0.0
        %2164 = vmatprep.subr.mxu0 0.0
        %2165 = vmatpush1.msra.mxu0 0.0
        %2166 = vmatprep.subr.mxu0 0.0
        %2167 = vmatpush1.msra.mxu0 0.0
        %2168 = vmatprep.subr.mxu0 0.0
        %2169 = vmatpush1.msra.mxu0 0.0
        %2170 = vmatprep.subr.mxu0 0.0
        %2171 = vmatpush1.msra.mxu0 0.0
        %2172 = vmatprep.subr.mxu0 0.0
        %2173 = vmatpush1.msra.mxu0 %v2147
        %2174 = vmatprep.subr.mxu0 0.0
        %2175 = vmatpush1.msra.mxu0 %v2146
        %2176 = vmatprep.subr.mxu0 0.0
        %2177 = vmatpush1.msra.mxu0 %v2145
        %2178 = vmatprep.subr.mxu0 0.0
        %2179 = vmatpush1.msra.mxu0 %v2144
        %2180 = vmatprep.subr.mxu0 0.0
        %2181 = vmatpush2.msra.mxu0 0.0
        %2182 = vmatprep.subr.mxu0 0.0
        %2183 = vmatpush2.msra.mxu0 0.0
        %2184 = vmatprep.subr.mxu0 0.0
        %2185 = vmatpush2.msra.mxu0 0.0
        %2186 = vmatprep.subr.mxu0 0.0
        %2187 = vmatpush2.msra.mxu0 0.0
        %2188 = vmatprep.subr.mxu0 0.0
        %2189 = vmatpush2.msra.mxu0 0.0
        %2190 = vmatprep.subr.mxu0 0.0
        %2191 = vmatpush2.msra.mxu0 0.0
        %2192 = vmatprep.subr.mxu0 0.0
        %2193 = vmatpush2.msra.mxu0 0.0
        %2194 = vmatprep.subr.mxu0 0.0
        %2195 = vmatpush2.msra.mxu0 0.0
        %2196 = vmatprep.subr.mxu0 0.0
        %2197 = vmatpush2.msra.mxu0 0.0
        %2198 = vmatprep.subr.mxu0 0.0
        %2199 = vmatpush2.msra.mxu0 0.0
        %2200 = vmatprep.subr.mxu0 0.0
        %2201 = vmatpush2.msra.mxu0 0.0
        %2202 = vmatprep.subr.mxu0 0.0
        %2203 = vmatpush2.msra.mxu0 0.0
        %2204 = vmatprep.subr.mxu0 0.0
        %2205 = vmatpush2.msra.mxu0 0.0
        %2206 = vmatprep.subr.mxu0 0.0
        %2207 = vmatpush2.msra.mxu0 0.0
        %2208 = vmatprep.subr.mxu0 0.0
        %2209 = vmatpush2.msra.mxu0 0.0
        %2210 = vmatprep.subr.mxu0 0.0
        %2211 = vmatpush2.msra.mxu0 0.0
        %2212 = vmatprep.mubr.f32.mxu0 0.0
        %2213 = vmatmul.mubr.f32.gmra.mxu0 %v1996
        %v2214 = vpop.f32.mrf.mxu0
        %v2215 = vadd.f32 0.0, %v2214
        %v2216 = vpop.f32.mrf.mxu0
        %2217 = vdwg.mxu0
        %v2219 = vsel %vm644, %v2065, 0
        %v2222 = vsel %vm644, %v2140, 0
        %2224 = vmatprep.subr.mxu0 0.0
        %2225 = vmatpush1.xpose.msra.mxu0 0.0
        %2226 = vmatprep.subr.mxu0 0.0
        %2227 = vmatpush1.xpose.msra.mxu0 0.0
        %2228 = vmatprep.subr.mxu0 0.0
        %2229 = vmatpush1.xpose.msra.mxu0 0.0
        %2230 = vmatprep.subr.mxu0 0.0
        %2231 = vmatpush1.xpose.msra.mxu0 0.0
        %2232 = vmatprep.subr.mxu0 0.0
        %2233 = vmatpush1.xpose.msra.mxu0 0.0
        %2234 = vmatprep.subr.mxu0 0.0
        %2235 = vmatpush1.xpose.msra.mxu0 0.0
        %2236 = vmatprep.subr.mxu0 0.0
        %2237 = vmatpush1.xpose.msra.mxu0 0.0
        %2238 = vmatprep.subr.mxu0 0.0
        %2239 = vmatpush1.xpose.msra.mxu0 0.0
        %2240 = vmatprep.subr.mxu0 0.0
        %2241 = vmatpush1.xpose.msra.mxu0 0.0
        %2242 = vmatprep.subr.mxu0 0.0
        %2243 = vmatpush1.xpose.msra.mxu0 0.0
        %2244 = vmatprep.subr.mxu0 0.0
        %2245 = vmatpush1.xpose.msra.mxu0 0.0
        %2246 = vmatprep.subr.mxu0 0.0
        %2247 = vmatpush1.xpose.msra.mxu0 0.0
        %2248 = vmatprep.subr.mxu0 0.0
        %2249 = vmatpush1.xpose.msra.mxu0 0.0
        %2250 = vmatprep.subr.mxu0 0.0
        %2251 = vmatpush1.xpose.msra.mxu0 0.0
        %2252 = vmatprep.subr.mxu0 0.0
        %2253 = vmatpush1.xpose.msra.mxu0 0.0
        %2254 = vmatprep.subr.mxu0 0.0
        %2255 = vmatpush1.xpose.msra.mxu0 %v2222
        %2256 = vmatprep.subr.mxu0 0.0
        %2257 = vmatpush2.xpose.msra.mxu0 0.0
        %2258 = vmatprep.subr.mxu0 0.0
        %2259 = vmatpush2.xpose.msra.mxu0 0.0
        %2260 = vmatprep.subr.mxu0 0.0
        %2261 = vmatpush2.xpose.msra.mxu0 0.0
        %2262 = vmatprep.subr.mxu0 0.0
        %2263 = vmatpush2.xpose.msra.mxu0 0.0
        %2264 = vmatprep.subr.mxu0 0.0
        %2265 = vmatpush2.xpose.msra.mxu0 0.0
        %2266 = vmatprep.subr.mxu0 0.0
        %2267 = vmatpush2.xpose.msra.mxu0 0.0
        %2268 = vmatprep.subr.mxu0 0.0
        %2269 = vmatpush2.xpose.msra.mxu0 0.0
        %2270 = vmatprep.subr.mxu0 0.0
        %2271 = vmatpush2.xpose.msra.mxu0 0.0
        %2272 = vmatprep.subr.mxu0 0.0
        %2273 = vmatpush2.xpose.msra.mxu0 0.0
        %2274 = vmatprep.subr.mxu0 0.0
        %2275 = vmatpush2.xpose.msra.mxu0 0.0
        %2276 = vmatprep.subr.mxu0 0.0
        %2277 = vmatpush2.xpose.msra.mxu0 0.0
        %2278 = vmatprep.subr.mxu0 0.0
        %2279 = vmatpush2.xpose.msra.mxu0 0.0
        %2280 = vmatprep.subr.mxu0 0.0
        %2281 = vmatpush2.xpose.msra.mxu0 0.0
        %2282 = vmatprep.subr.mxu0 0.0
        %2283 = vmatpush2.xpose.msra.mxu0 0.0
        %2284 = vmatprep.subr.mxu0 0.0
        %2285 = vmatpush2.xpose.msra.mxu0 0.0
        %2286 = vmatprep.subr.mxu0 0.0
        %2287 = vmatpush2.xpose.msra.mxu0 0.0
        %2288 = vmatprep.mubr.f32.mxu0 0.0
        %2289 = vmatmul.mubr.f32.gmra.mxu0 %v2219
        %v2290 = vpop.f32.mrf.mxu0
        %v2291 = vadd.f32 0.0, %v2290
        %v2292 = vpop.f32.mrf.mxu0
        %2293 = vdwg.mxu0
        %v2294 = vsel %vm721, %v2291, -inf
        %2295 = vmax.xlane.f32.xlu0 %v2294
        %v2296 = vpop.xlane.xlu0 %2295
        %v2297 = vsub.f32 %v2291, %v2296
        %v2298 = vmul.f32 %v2297, 1.442695
        %v2299 = vpow.pop %v2298
        %v2300 = vsel %vm721, %v2299, 0.0
        %2301 = vadd.xlane.f32.xlu0 %v2300
        %v2302 = vpop.xlane.xlu0 %2301
        %v2303 = vrcp.pop %v2302
        %v2304 = vmul.f32 %v2299, %v2303
        %v2306 = vsel %vm721, %v2304, 0
        %2308 = vmatprep.subr.mxu0 0.0
        %2309 = vmatpush1.msra.mxu0 0.0
        %2310 = vmatprep.subr.mxu0 0.0
        %2311 = vmatpush1.msra.mxu0 0.0
        %2312 = vmatprep.subr.mxu0 0.0
        %2313 = vmatpush1.msra.mxu0 0.0
        %2314 = vmatprep.subr.mxu0 0.0
        %2315 = vmatpush1.msra.mxu0 0.0
        %2316 = vmatprep.subr.mxu0 0.0
        %2317 = vmatpush1.msra.mxu0 0.0
        %2318 = vmatprep.subr.mxu0 0.0
        %2319 = vmatpush1.msra.mxu0 0.0
        %2320 = vmatprep.subr.mxu0 0.0
        %2321 = vmatpush1.msra.mxu0 0.0
        %2322 = vmatprep.subr.mxu0 0.0
        %2323 = vmatpush1.msra.mxu0 0.0
        %2324 = vmatprep.subr.mxu0 0.0
        %2325 = vmatpush1.msra.mxu0 0.0
        %2326 = vmatprep.subr.mxu0 0.0
        %2327 = vmatpush1.msra.mxu0 0.0
        %2328 = vmatprep.subr.mxu0 0.0
        %2329 = vmatpush1.msra.mxu0 0.0
        %2330 = vmatprep.subr.mxu0 0.0
        %2331 = vmatpush1.msra.mxu0 0.0
        %2332 = vmatprep.subr.mxu0 0.0
        %2333 = vmatpush1.msra.mxu0 0.0
        %2334 = vmatprep.subr.mxu0 0.0
        %2335 = vmatpush1.msra.mxu0 0.0
        %2336 = vmatprep.subr.mxu0 0.0
        %2337 = vmatpush1.msra.mxu0 0.0
        %2338 = vmatprep.subr.mxu0 0.0
        %2339 = vmatpush1.msra.mxu0 %v2215
        %2340 = vmatprep.subr.mxu0 0.0
        %2341 = vmatpush2.msra.mxu0 0.0
        %2342 = vmatprep.subr.mxu0 0.0
        %2343 = vmatpush2.msra.mxu0 0.0
        %2344 = vmatprep.subr.mxu0 0.0
        %2345 = vmatpush2.msra.mxu0 0.0
        %2346 = vmatprep.subr.mxu0 0.0
        %2347 = vmatpush2.msra.mxu0 0.0
        %2348 = vmatprep.subr.mxu0 0.0
        %2349 = vmatpush2.msra.mxu0 0.0
        %2350 = vmatprep.subr.mxu0 0.0
        %2351 = vmatpush2.msra.mxu0 0.0
        %2352 = vmatprep.subr.mxu0 0.0
        %2353 = vmatpush2.msra.mxu0 0.0
        %2354 = vmatprep.subr.mxu0 0.0
        %2355 = vmatpush2.msra.mxu0 0.0
        %2356 = vmatprep.subr.mxu0 0.0
        %2357 = vmatpush2.msra.mxu0 0.0
        %2358 = vmatprep.subr.mxu0 0.0
        %2359 = vmatpush2.msra.mxu0 0.0
        %2360 = vmatprep.subr.mxu0 0.0
        %2361 = vmatpush2.msra.mxu0 0.0
        %2362 = vmatprep.subr.mxu0 0.0
        %2363 = vmatpush2.msra.mxu0 0.0
        %2364 = vmatprep.subr.mxu0 0.0
        %2365 = vmatpush2.msra.mxu0 0.0
        %2366 = vmatprep.subr.mxu0 0.0
        %2367 = vmatpush2.msra.mxu0 0.0
        %2368 = vmatprep.subr.mxu0 0.0
        %2369 = vmatpush2.msra.mxu0 0.0
        %2370 = vmatprep.subr.mxu0 0.0
        %2371 = vmatpush2.msra.mxu0 0.0
        %2372 = vmatprep.mubr.f32.mxu0 0.0
        %2373 = vmatmul.mubr.f32.gmra.mxu0 %v2306
        %v2374 = vpop.f32.mrf.mxu0
        %v2375 = vadd.f32 0.0, %v2374
        %v2376 = vpop.f32.mrf.mxu0
        %2377 = vdwg.mxu0
        %s2378 = scalar_lea.vmem %s4, 32
        %v2379 = vld [vmem:[%s2378] sm:$0xff]
        %v2380 = vld [vmem:[%s2378 + $0x8] sm:$0xff]
        %s2381 = scalar_lea.vmem %s1, 96
        %v2382 = vld [vmem:[%s2381] sm:$0xff]
        %v2383 = vld [vmem:[%s2381 + $0x8] sm:$0xff]
        %v2384 = vld [vmem:[%s2381 + $0x10] sm:$0xff]
        %v2385 = vld [vmem:[%s2381 + $0x18] sm:$0xff]
        %2386 = vmatprep.subr.mxu0 0.0
        %2387 = vmatpush1.msra.mxu0 0.0
        %2388 = vmatprep.subr.mxu0 0.0
        %2389 = vmatpush1.msra.mxu0 0.0
        %2390 = vmatprep.subr.mxu0 0.0
        %2391 = vmatpush1.msra.mxu0 0.0
        %2392 = vmatprep.subr.mxu0 0.0
        %2393 = vmatpush1.msra.mxu0 0.0
        %2394 = vmatprep.subr.mxu0 0.0
        %2395 = vmatpush1.msra.mxu0 0.0
        %2396 = vmatprep.subr.mxu0 0.0
        %2397 = vmatpush1.msra.mxu0 0.0
        %2398 = vmatprep.subr.mxu0 0.0
        %2399 = vmatpush1.msra.mxu0 0.0
        %2400 = vmatprep.subr.mxu0 0.0
        %2401 = vmatpush1.msra.mxu0 0.0
        %2402 = vmatprep.subr.mxu0 0.0
        %2403 = vmatpush1.msra.mxu0 0.0
        %2404 = vmatprep.subr.mxu0 0.0
        %2405 = vmatpush1.msra.mxu0 0.0
        %2406 = vmatprep.subr.mxu0 0.0
        %2407 = vmatpush1.msra.mxu0 0.0
        %2408 = vmatprep.subr.mxu0 0.0
        %2409 = vmatpush1.msra.mxu0 0.0
        %2410 = vmatprep.subr.mxu0 0.0
        %2411 = vmatpush1.msra.mxu0 %v2385
        %2412 = vmatprep.subr.mxu0 0.0
        %2413 = vmatpush1.msra.mxu0 %v2384
        %2414 = vmatprep.subr.mxu0 0.0
        %2415 = vmatpush1.msra.mxu0 %v2383
        %2416 = vmatprep.subr.mxu0 0.0
        %2417 = vmatpush1.msra.mxu0 %v2382
        %2418 = vmatprep.subr.mxu0 0.0
        %2419 = vmatpush2.msra.mxu0 0.0
        %2420 = vmatprep.subr.mxu0 0.0
        %2421 = vmatpush2.msra.mxu0 0.0
        %2422 = vmatprep.subr.mxu0 0.0
        %2423 = vmatpush2.msra.mxu0 0.0
        %2424 = vmatprep.subr.mxu0 0.0
        %2425 = vmatpush2.msra.mxu0 0.0
        %2426 = vmatprep.subr.mxu0 0.0
        %2427 = vmatpush2.msra.mxu0 0.0
        %2428 = vmatprep.subr.mxu0 0.0
        %2429 = vmatpush2.msra.mxu0 0.0
        %2430 = vmatprep.subr.mxu0 0.0
        %2431 = vmatpush2.msra.mxu0 0.0
        %2432 = vmatprep.subr.mxu0 0.0
        %2433 = vmatpush2.msra.mxu0 0.0
        %2434 = vmatprep.subr.mxu0 0.0
        %2435 = vmatpush2.msra.mxu0 0.0
        %2436 = vmatprep.subr.mxu0 0.0
        %2437 = vmatpush2.msra.mxu0 0.0
        %2438 = vmatprep.subr.mxu0 0.0
        %2439 = vmatpush2.msra.mxu0 0.0
        %2440 = vmatprep.subr.mxu0 0.0
        %2441 = vmatpush2.msra.mxu0 0.0
        %2442 = vmatprep.subr.mxu0 0.0
        %2443 = vmatpush2.msra.mxu0 0.0
        %2444 = vmatprep.subr.mxu0 0.0
        %2445 = vmatpush2.msra.mxu0 0.0
        %2446 = vmatprep.subr.mxu0 0.0
        %2447 = vmatpush2.msra.mxu0 0.0
        %2448 = vmatprep.subr.mxu0 0.0
        %2449 = vmatpush2.msra.mxu0 0.0
        %2450 = vmatprep.mubr.f32.mxu0 0.0
        %2451 = vmatmul.mubr.f32.gmra.mxu0 %v1996
        %v2452 = vpop.f32.mrf.mxu0
        %v2453 = vadd.f32 0.0, %v2452
        %v2454 = vpop.f32.mrf.mxu0
        %2455 = vdwg.mxu0
        %s2456 = scalar_lea.vmem %s2, 96
        %v2457 = vld [vmem:[%s2456] sm:$0xff]
        %v2458 = vld [vmem:[%s2456 + $0x8] sm:$0xff]
        %v2459 = vld [vmem:[%s2456 + $0x10] sm:$0xff]
        %v2460 = vld [vmem:[%s2456 + $0x18] sm:$0xff]
        %2461 = vmatprep.subr.mxu0 0.0
        %2462 = vmatpush1.msra.mxu0 0.0
        %2463 = vmatprep.subr.mxu0 0.0
        %2464 = vmatpush1.msra.mxu0 0.0
        %2465 = vmatprep.subr.mxu0 0.0
        %2466 = vmatpush1.msra.mxu0 0.0
        %2467 = vmatprep.subr.mxu0 0.0
        %2468 = vmatpush1.msra.mxu0 0.0
        %2469 = vmatprep.subr.mxu0 0.0
        %2470 = vmatpush1.msra.mxu0 0.0
        %2471 = vmatprep.subr.mxu0 0.0
        %2472 = vmatpush1.msra.mxu0 0.0
        %2473 = vmatprep.subr.mxu0 0.0
        %2474 = vmatpush1.msra.mxu0 0.0
        %2475 = vmatprep.subr.mxu0 0.0
        %2476 = vmatpush1.msra.mxu0 0.0
        %2477 = vmatprep.subr.mxu0 0.0
        %2478 = vmatpush1.msra.mxu0 0.0
        %2479 = vmatprep.subr.mxu0 0.0
        %2480 = vmatpush1.msra.mxu0 0.0
        %2481 = vmatprep.subr.mxu0 0.0
        %2482 = vmatpush1.msra.mxu0 0.0
        %2483 = vmatprep.subr.mxu0 0.0
        %2484 = vmatpush1.msra.mxu0 0.0
        %2485 = vmatprep.subr.mxu0 0.0
        %2486 = vmatpush1.msra.mxu0 %v2460
        %2487 = vmatprep.subr.mxu0 0.0
        %2488 = vmatpush1.msra.mxu0 %v2459
        %2489 = vmatprep.subr.mxu0 0.0
        %2490 = vmatpush1.msra.mxu0 %v2458
        %2491 = vmatprep.subr.mxu0 0.0
        %2492 = vmatpush1.msra.mxu0 %v2457
        %2493 = vmatprep.subr.mxu0 0.0
        %2494 = vmatpush2.msra.mxu0 0.0
        %2495 = vmatprep.subr.mxu0 0.0
        %2496 = vmatpush2.msra.mxu0 0.0
        %2497 = vmatprep.subr.mxu0 0.0
        %2498 = vmatpush2.msra.mxu0 0.0
        %2499 = vmatprep.subr.mxu0 0.0
        %2500 = vmatpush2.msra.mxu0 0.0
        %2501 = vmatprep.subr.mxu0 0.0
        %2502 = vmatpush2.msra.mxu0 0.0
        %2503 = vmatprep.subr.mxu0 0.0
        %2504 = vmatpush2.msra.mxu0 0.0
        %2505 = vmatprep.subr.mxu0 0.0
        %2506 = vmatpush2.msra.mxu0 0.0
        %2507 = vmatprep.subr.mxu0 0.0
        %2508 = vmatpush2.msra.mxu0 0.0
        %2509 = vmatprep.subr.mxu0 0.0
        %2510 = vmatpush2.msra.mxu0 0.0
        %2511 = vmatprep.subr.mxu0 0.0
        %2512 = vmatpush2.msra.mxu0 0.0
        %2513 = vmatprep.subr.mxu0 0.0
        %2514 = vmatpush2.msra.mxu0 0.0
        %2515 = vmatprep.subr.mxu0 0.0
        %2516 = vmatpush2.msra.mxu0 0.0
        %2517 = vmatprep.subr.mxu0 0.0
        %2518 = vmatpush2.msra.mxu0 0.0
        %2519 = vmatprep.subr.mxu0 0.0
        %2520 = vmatpush2.msra.mxu0 0.0
        %2521 = vmatprep.subr.mxu0 0.0
        %2522 = vmatpush2.msra.mxu0 0.0
        %2523 = vmatprep.subr.mxu0 0.0
        %2524 = vmatpush2.msra.mxu0 0.0
        %2525 = vmatprep.mubr.f32.mxu0 0.0
        %2526 = vmatmul.mubr.f32.gmra.mxu0 %v1996
        %v2527 = vpop.f32.mrf.mxu0
        %v2528 = vadd.f32 0.0, %v2527
        %v2529 = vpop.f32.mrf.mxu0
        %2530 = vdwg.mxu0
        %s2531 = scalar_lea.vmem %s3, 96
        %v2532 = vld [vmem:[%s2531] sm:$0xff]
        %v2533 = vld [vmem:[%s2531 + $0x8] sm:$0xff]
        %v2534 = vld [vmem:[%s2531 + $0x10] sm:$0xff]
        %v2535 = vld [vmem:[%s2531 + $0x18] sm:$0xff]
        %2536 = vmatprep.subr.mxu0 0.0
        %2537 = vmatpush1.msra.mxu0 0.0
        %2538 = vmatprep.subr.mxu0 0.0
        %2539 = vmatpush1.msra.mxu0 0.0
        %2540 = vmatprep.subr.mxu0 0.0
        %2541 = vmatpush1.msra.mxu0 0.0
        %2542 = vmatprep.subr.mxu0 0.0
        %2543 = vmatpush1.msra.mxu0 0.0
        %2544 = vmatprep.subr.mxu0 0.0
        %2545 = vmatpush1.msra.mxu0 0.0
        %2546 = vmatprep.subr.mxu0 0.0
        %2547 = vmatpush1.msra.mxu0 0.0
        %2548 = vmatprep.subr.mxu0 0.0
        %2549 = vmatpush1.msra.mxu0 0.0
        %2550 = vmatprep.subr.mxu0 0.0
        %2551 = vmatpush1.msra.mxu0 0.0
        %2552 = vmatprep.subr.mxu0 0.0
        %2553 = vmatpush1.msra.mxu0 0.0
        %2554 = vmatprep.subr.mxu0 0.0
        %2555 = vmatpush1.msra.mxu0 0.0
        %2556 = vmatprep.subr.mxu0 0.0
        %2557 = vmatpush1.msra.mxu0 0.0
        %2558 = vmatprep.subr.mxu0 0.0
        %2559 = vmatpush1.msra.mxu0 0.0
        %2560 = vmatprep.subr.mxu0 0.0
        %2561 = vmatpush1.msra.mxu0 %v2535
        %2562 = vmatprep.subr.mxu0 0.0
        %2563 = vmatpush1.msra.mxu0 %v2534
        %2564 = vmatprep.subr.mxu0 0.0
        %2565 = vmatpush1.msra.mxu0 %v2533
        %2566 = vmatprep.subr.mxu0 0.0
        %2567 = vmatpush1.msra.mxu0 %v2532
        %2568 = vmatprep.subr.mxu0 0.0
        %2569 = vmatpush2.msra.mxu0 0.0
        %2570 = vmatprep.subr.mxu0 0.0
        %2571 = vmatpush2.msra.mxu0 0.0
        %2572 = vmatprep.subr.mxu0 0.0
        %2573 = vmatpush2.msra.mxu0 0.0
        %2574 = vmatprep.subr.mxu0 0.0
        %2575 = vmatpush2.msra.mxu0 0.0
        %2576 = vmatprep.subr.mxu0 0.0
        %2577 = vmatpush2.msra.mxu0 0.0
        %2578 = vmatprep.subr.mxu0 0.0
        %2579 = vmatpush2.msra.mxu0 0.0
        %2580 = vmatprep.subr.mxu0 0.0
        %2581 = vmatpush2.msra.mxu0 0.0
        %2582 = vmatprep.subr.mxu0 0.0
        %2583 = vmatpush2.msra.mxu0 0.0
        %2584 = vmatprep.subr.mxu0 0.0
        %2585 = vmatpush2.msra.mxu0 0.0
        %2586 = vmatprep.subr.mxu0 0.0
        %2587 = vmatpush2.msra.mxu0 0.0
        %2588 = vmatprep.subr.mxu0 0.0
        %2589 = vmatpush2.msra.mxu0 0.0
        %2590 = vmatprep.subr.mxu0 0.0
        %2591 = vmatpush2.msra.mxu0 0.0
        %2592 = vmatprep.subr.mxu0 0.0
        %2593 = vmatpush2.msra.mxu0 0.0
        %2594 = vmatprep.subr.mxu0 0.0
        %2595 = vmatpush2.msra.mxu0 0.0
        %2596 = vmatprep.subr.mxu0 0.0
        %2597 = vmatpush2.msra.mxu0 0.0
        %2598 = vmatprep.subr.mxu0 0.0
        %2599 = vmatpush2.msra.mxu0 0.0
        %2600 = vmatprep.mubr.f32.mxu0 0.0
        %2601 = vmatmul.mubr.f32.gmra.mxu0 %v1996
        %v2602 = vpop.f32.mrf.mxu0
        %v2603 = vadd.f32 0.0, %v2602
        %v2604 = vpop.f32.mrf.mxu0
        %2605 = vdwg.mxu0
        %v2607 = vsel %vm644, %v2453, 0
        %v2610 = vsel %vm644, %v2528, 0
        %2612 = vmatprep.subr.mxu0 0.0
        %2613 = vmatpush1.xpose.msra.mxu0 0.0
        %2614 = vmatprep.subr.mxu0 0.0
        %2615 = vmatpush1.xpose.msra.mxu0 0.0
        %2616 = vmatprep.subr.mxu0 0.0
        %2617 = vmatpush1.xpose.msra.mxu0 0.0
        %2618 = vmatprep.subr.mxu0 0.0
        %2619 = vmatpush1.xpose.msra.mxu0 0.0
        %2620 = vmatprep.subr.mxu0 0.0
        %2621 = vmatpush1.xpose.msra.mxu0 0.0
        %2622 = vmatprep.subr.mxu0 0.0
        %2623 = vmatpush1.xpose.msra.mxu0 0.0
        %2624 = vmatprep.subr.mxu0 0.0
        %2625 = vmatpush1.xpose.msra.mxu0 0.0
        %2626 = vmatprep.subr.mxu0 0.0
        %2627 = vmatpush1.xpose.msra.mxu0 0.0
        %2628 = vmatprep.subr.mxu0 0.0
        %2629 = vmatpush1.xpose.msra.mxu0 0.0
        %2630 = vmatprep.subr.mxu0 0.0
        %2631 = vmatpush1.xpose.msra.mxu0 0.0
        %2632 = vmatprep.subr.mxu0 0.0
        %2633 = vmatpush1.xpose.msra.mxu0 0.0
        %2634 = vmatprep.subr.mxu0 0.0
        %2635 = vmatpush1.xpose.msra.mxu0 0.0
        %2636 = vmatprep.subr.mxu0 0.0
        %2637 = vmatpush1.xpose.msra.mxu0 0.0
        %2638 = vmatprep.subr.mxu0 0.0
        %2639 = vmatpush1.xpose.msra.mxu0 0.0
        %2640 = vmatprep.subr.mxu0 0.0
        %2641 = vmatpush1.xpose.msra.mxu0 0.0
        %2642 = vmatprep.subr.mxu0 0.0
        %2643 = vmatpush1.xpose.msra.mxu0 %v2610
        %2644 = vmatprep.subr.mxu0 0.0
        %2645 = vmatpush2.xpose.msra.mxu0 0.0
        %2646 = vmatprep.subr.mxu0 0.0
        %2647 = vmatpush2.xpose.msra.mxu0 0.0
        %2648 = vmatprep.subr.mxu0 0.0
        %2649 = vmatpush2.xpose.msra.mxu0 0.0
        %2650 = vmatprep.subr.mxu0 0.0
        %2651 = vmatpush2.xpose.msra.mxu0 0.0
        %2652 = vmatprep.subr.mxu0 0.0
        %2653 = vmatpush2.xpose.msra.mxu0 0.0
        %2654 = vmatprep.subr.mxu0 0.0
        %2655 = vmatpush2.xpose.msra.mxu0 0.0
        %2656 = vmatprep.subr.mxu0 0.0
        %2657 = vmatpush2.xpose.msra.mxu0 0.0
        %2658 = vmatprep.subr.mxu0 0.0
        %2659 = vmatpush2.xpose.msra.mxu0 0.0
        %2660 = vmatprep.subr.mxu0 0.0
        %2661 = vmatpush2.xpose.msra.mxu0 0.0
        %2662 = vmatprep.subr.mxu0 0.0
        %2663 = vmatpush2.xpose.msra.mxu0 0.0
        %2664 = vmatprep.subr.mxu0 0.0
        %2665 = vmatpush2.xpose.msra.mxu0 0.0
        %2666 = vmatprep.subr.mxu0 0.0
        %2667 = vmatpush2.xpose.msra.mxu0 0.0
        %2668 = vmatprep.subr.mxu0 0.0
        %2669 = vmatpush2.xpose.msra.mxu0 0.0
        %2670 = vmatprep.subr.mxu0 0.0
        %2671 = vmatpush2.xpose.msra.mxu0 0.0
        %2672 = vmatprep.subr.mxu0 0.0
        %2673 = vmatpush2.xpose.msra.mxu0 0.0
        %2674 = vmatprep.subr.mxu0 0.0
        %2675 = vmatpush2.xpose.msra.mxu0 0.0
        %2676 = vmatprep.mubr.f32.mxu0 0.0
        %2677 = vmatmul.mubr.f32.gmra.mxu0 %v2607
        %v2678 = vpop.f32.mrf.mxu0
        %v2679 = vadd.f32 0.0, %v2678
        %v2680 = vpop.f32.mrf.mxu0
        %2681 = vdwg.mxu0
        %v2682 = vsel %vm721, %v2679, -inf
        %2683 = vmax.xlane.f32.xlu0 %v2682
        %v2684 = vpop.xlane.xlu0 %2683
        %v2685 = vsub.f32 %v2679, %v2684
        %v2686 = vmul.f32 %v2685, 1.442695
        %v2687 = vpow.pop %v2686
        %v2688 = vsel %vm721, %v2687, 0.0
        %2689 = vadd.xlane.f32.xlu0 %v2688
        %v2690 = vpop.xlane.xlu0 %2689
        %v2691 = vrcp.pop %v2690
        %v2692 = vmul.f32 %v2687, %v2691
        %v2694 = vsel %vm721, %v2692, 0
        %2696 = vmatprep.subr.mxu0 0.0
        %2697 = vmatpush1.msra.mxu0 0.0
        %2698 = vmatprep.subr.mxu0 0.0
        %2699 = vmatpush1.msra.mxu0 0.0
        %2700 = vmatprep.subr.mxu0 0.0
        %2701 = vmatpush1.msra.mxu0 0.0
        %2702 = vmatprep.subr.mxu0 0.0
        %2703 = vmatpush1.msra.mxu0 0.0
        %2704 = vmatprep.subr.mxu0 0.0
        %2705 = vmatpush1.msra.mxu0 0.0
        %2706 = vmatprep.subr.mxu0 0.0
        %2707 = vmatpush1.msra.mxu0 0.0
        %2708 = vmatprep.subr.mxu0 0.0
        %2709 = vmatpush1.msra.mxu0 0.0
        %2710 = vmatprep.subr.mxu0 0.0
        %2711 = vmatpush1.msra.mxu0 0.0
        %2712 = vmatprep.subr.mxu0 0.0
        %2713 = vmatpush1.msra.mxu0 0.0
        %2714 = vmatprep.subr.mxu0 0.0
        %2715 = vmatpush1.msra.mxu0 0.0
        %2716 = vmatprep.subr.mxu0 0.0
        %2717 = vmatpush1.msra.mxu0 0.0
        %2718 = vmatprep.subr.mxu0 0.0
        %2719 = vmatpush1.msra.mxu0 0.0
        %2720 = vmatprep.subr.mxu0 0.0
        %2721 = vmatpush1.msra.mxu0 0.0
        %2722 = vmatprep.subr.mxu0 0.0
        %2723 = vmatpush1.msra.mxu0 0.0
        %2724 = vmatprep.subr.mxu0 0.0
        %2725 = vmatpush1.msra.mxu0 0.0
        %2726 = vmatprep.subr.mxu0 0.0
        %2727 = vmatpush1.msra.mxu0 %v2603
        %2728 = vmatprep.subr.mxu0 0.0
        %2729 = vmatpush2.msra.mxu0 0.0
        %2730 = vmatprep.subr.mxu0 0.0
        %2731 = vmatpush2.msra.mxu0 0.0
        %2732 = vmatprep.subr.mxu0 0.0
        %2733 = vmatpush2.msra.mxu0 0.0
        %2734 = vmatprep.subr.mxu0 0.0
        %2735 = vmatpush2.msra.mxu0 0.0
        %2736 = vmatprep.subr.mxu0 0.0
        %2737 = vmatpush2.msra.mxu0 0.0
        %2738 = vmatprep.subr.mxu0 0.0
        %2739 = vmatpush2.msra.mxu0 0.0
        %2740 = vmatprep.subr.mxu0 0.0
        %2741 = vmatpush2.msra.mxu0 0.0
        %2742 = vmatprep.subr.mxu0 0.0
        %2743 = vmatpush2.msra.mxu0 0.0
        %2744 = vmatprep.subr.mxu0 0.0
        %2745 = vmatpush2.msra.mxu0 0.0
        %2746 = vmatprep.subr.mxu0 0.0
        %2747 = vmatpush2.msra.mxu0 0.0
        %2748 = vmatprep.subr.mxu0 0.0
        %2749 = vmatpush2.msra.mxu0 0.0
        %2750 = vmatprep.subr.mxu0 0.0
        %2751 = vmatpush2.msra.mxu0 0.0
        %2752 = vmatprep.subr.mxu0 0.0
        %2753 = vmatpush2.msra.mxu0 0.0
        %2754 = vmatprep.subr.mxu0 0.0
        %2755 = vmatpush2.msra.mxu0 0.0
        %2756 = vmatprep.subr.mxu0 0.0
        %2757 = vmatpush2.msra.mxu0 0.0
        %2758 = vmatprep.subr.mxu0 0.0
        %2759 = vmatpush2.msra.mxu0 0.0
        %2760 = vmatprep.mubr.f32.mxu0 0.0
        %2761 = vmatmul.mubr.f32.gmra.mxu0 %v2694
        %v2762 = vpop.f32.mrf.mxu0
        %v2763 = vadd.f32 0.0, %v2762
        %v2764 = vpop.f32.mrf.mxu0
        %2765 = vdwg.mxu0
        %s2766 = scalar_lea.vmem %s4, 48
        %v2767 = vld [vmem:[%s2766] sm:$0xff]
        %v2768 = vld [vmem:[%s2766 + $0x8] sm:$0xff]
        %v2770 = vsel %vm644, %v2763, 0
        %2772 = vmatprep.subr.mxu0 0.0
        %2773 = vmatpush1.msra.mxu0 0.0
        %2774 = vmatprep.subr.mxu0 0.0
        %2775 = vmatpush1.msra.mxu0 0.0
        %2776 = vmatprep.subr.mxu0 0.0
        %2777 = vmatpush1.msra.mxu0 0.0
        %2778 = vmatprep.subr.mxu0 0.0
        %2779 = vmatpush1.msra.mxu0 0.0
        %2780 = vmatprep.subr.mxu0 0.0
        %2781 = vmatpush1.msra.mxu0 0.0
        %2782 = vmatprep.subr.mxu0 0.0
        %2783 = vmatpush1.msra.mxu0 0.0
        %2784 = vmatprep.subr.mxu0 0.0
        %2785 = vmatpush1.msra.mxu0 0.0
        %2786 = vmatprep.subr.mxu0 0.0
        %2787 = vmatpush1.msra.mxu0 0.0
        %2788 = vmatprep.subr.mxu0 0.0
        %2789 = vmatpush1.msra.mxu0 0.0
        %2790 = vmatprep.subr.mxu0 0.0
        %2791 = vmatpush1.msra.mxu0 0.0
        %2792 = vmatprep.subr.mxu0 0.0
        %2793 = vmatpush1.msra.mxu0 0.0
        %2794 = vmatprep.subr.mxu0 0.0
        %2795 = vmatpush1.msra.mxu0 0.0
        %2796 = vmatprep.subr.mxu0 0.0
        %2797 = vmatpush1.msra.mxu0 0.0
        %2798 = vmatprep.subr.mxu0 0.0
        %2799 = vmatpush1.msra.mxu0 0.0
        %2800 = vmatprep.subr.mxu0 0.0
        %2801 = vmatpush1.msra.mxu0 %v2768
        %2802 = vmatprep.subr.mxu0 0.0
        %2803 = vmatpush1.msra.mxu0 %v2767
        %2804 = vmatprep.subr.mxu0 0.0
        %2805 = vmatpush2.msra.mxu0 0.0
        %2806 = vmatprep.subr.mxu0 0.0
        %2807 = vmatpush2.msra.mxu0 0.0
        %2808 = vmatprep.subr.mxu0 0.0
        %2809 = vmatpush2.msra.mxu0 0.0
        %2810 = vmatprep.subr.mxu0 0.0
        %2811 = vmatpush2.msra.mxu0 0.0
        %2812 = vmatprep.subr.mxu0 0.0
        %2813 = vmatpush2.msra.mxu0 0.0
        %2814 = vmatprep.subr.mxu0 0.0
        %2815 = vmatpush2.msra.mxu0 0.0
        %2816 = vmatprep.subr.mxu0 0.0
        %2817 = vmatpush2.msra.mxu0 0.0
        %2818 = vmatprep.subr.mxu0 0.0
        %2819 = vmatpush2.msra.mxu0 0.0
        %2820 = vmatprep.subr.mxu0 0.0
        %2821 = vmatpush2.msra.mxu0 0.0
        %2822 = vmatprep.subr.mxu0 0.0
        %2823 = vmatpush2.msra.mxu0 0.0
        %2824 = vmatprep.subr.mxu0 0.0
        %2825 = vmatpush2.msra.mxu0 0.0
        %2826 = vmatprep.subr.mxu0 0.0
        %2827 = vmatpush2.msra.mxu0 0.0
        %2828 = vmatprep.subr.mxu0 0.0
        %2829 = vmatpush2.msra.mxu0 0.0
        %2830 = vmatprep.subr.mxu0 0.0
        %2831 = vmatpush2.msra.mxu0 0.0
        %2832 = vmatprep.subr.mxu0 0.0
        %2833 = vmatpush2.msra.mxu0 0.0
        %2834 = vmatprep.subr.mxu0 0.0
        %2835 = vmatpush2.msra.mxu0 0.0
        %2836 = vmatprep.mubr.f32.mxu0 0.0
        %2837 = vmatmul.mubr.f32.gmra.mxu0 %v2770
        %v2838 = vpop.f32.mrf.mxu0
        %v2839 = vadd.f32 0.0, %v2838
        %v2840 = vpop.f32.mrf.mxu0
        %2841 = vdwg.mxu0
        %v2843 = vsel %vm644, %v2375, 0
        %2845 = vmatprep.subr.mxu0 0.0
        %2846 = vmatpush1.msra.mxu0 0.0
        %2847 = vmatprep.subr.mxu0 0.0
        %2848 = vmatpush1.msra.mxu0 0.0
        %2849 = vmatprep.subr.mxu0 0.0
        %2850 = vmatpush1.msra.mxu0 0.0
        %2851 = vmatprep.subr.mxu0 0.0
        %2852 = vmatpush1.msra.mxu0 0.0
        %2853 = vmatprep.subr.mxu0 0.0
        %2854 = vmatpush1.msra.mxu0 0.0
        %2855 = vmatprep.subr.mxu0 0.0
        %2856 = vmatpush1.msra.mxu0 0.0
        %2857 = vmatprep.subr.mxu0 0.0
        %2858 = vmatpush1.msra.mxu0 0.0
        %2859 = vmatprep.subr.mxu0 0.0
        %2860 = vmatpush1.msra.mxu0 0.0
        %2861 = vmatprep.subr.mxu0 0.0
        %2862 = vmatpush1.msra.mxu0 0.0
        %2863 = vmatprep.subr.mxu0 0.0
        %2864 = vmatpush1.msra.mxu0 0.0
        %2865 = vmatprep.subr.mxu0 0.0
        %2866 = vmatpush1.msra.mxu0 0.0
        %2867 = vmatprep.subr.mxu0 0.0
        %2868 = vmatpush1.msra.mxu0 0.0
        %2869 = vmatprep.subr.mxu0 0.0
        %2870 = vmatpush1.msra.mxu0 0.0
        %2871 = vmatprep.subr.mxu0 0.0
        %2872 = vmatpush1.msra.mxu0 0.0
        %2873 = vmatprep.subr.mxu0 0.0
        %2874 = vmatpush1.msra.mxu0 %v2380
        %2875 = vmatprep.subr.mxu0 0.0
        %2876 = vmatpush1.msra.mxu0 %v2379
        %2877 = vmatprep.subr.mxu0 0.0
        %2878 = vmatpush2.msra.mxu0 0.0
        %2879 = vmatprep.subr.mxu0 0.0
        %2880 = vmatpush2.msra.mxu0 0.0
        %2881 = vmatprep.subr.mxu0 0.0
        %2882 = vmatpush2.msra.mxu0 0.0
        %2883 = vmatprep.subr.mxu0 0.0
        %2884 = vmatpush2.msra.mxu0 0.0
        %2885 = vmatprep.subr.mxu0 0.0
        %2886 = vmatpush2.msra.mxu0 0.0
        %2887 = vmatprep.subr.mxu0 0.0
        %2888 = vmatpush2.msra.mxu0 0.0
        %2889 = vmatprep.subr.mxu0 0.0
        %2890 = vmatpush2.msra.mxu0 0.0
        %2891 = vmatprep.subr.mxu0 0.0
        %2892 = vmatpush2.msra.mxu0 0.0
        %2893 = vmatprep.subr.mxu0 0.0
        %2894 = vmatpush2.msra.mxu0 0.0
        %2895 = vmatprep.subr.mxu0 0.0
        %2896 = vmatpush2.msra.mxu0 0.0
        %2897 = vmatprep.subr.mxu0 0.0
        %2898 = vmatpush2.msra.mxu0 0.0
        %2899 = vmatprep.subr.mxu0 0.0
        %2900 = vmatpush2.msra.mxu0 0.0
        %2901 = vmatprep.subr.mxu0 0.0
        %2902 = vmatpush2.msra.mxu0 0.0
        %2903 = vmatprep.subr.mxu0 0.0
        %2904 = vmatpush2.msra.mxu0 0.0
        %2905 = vmatprep.subr.mxu0 0.0
        %2906 = vmatpush2.msra.mxu0 0.0
        %2907 = vmatprep.subr.mxu0 0.0
        %2908 = vmatpush2.msra.mxu0 0.0
        %2909 = vmatprep.mubr.f32.mxu0 0.0
        %2910 = vmatmul.mubr.f32.gmra.mxu0 %v2843
        %v2911 = vpop.f32.mrf.mxu0
        %v2912 = vadd.f32 %v2839, %v2911
        %v2913 = vpop.f32.mrf.mxu0
        %2914 = vdwg.mxu0
        %v2915 = vadd.f32 %v1955, %v2912
        %v2916 = vlaneseq
        %v2917 = vshrl.u32 %v2916, 7
        %v2918 = vsub.s32 4, %v2917
        %v2919 = vrot.slane %v1957, %v2918
        %v2920 = vadd.f32 %v2915, %v2919
        %v2921 = vsel %vm394, %v2920, 0.0
        %v2922 = vrot.slane %v2921, 4
        %v2923 = vadd.f32 %v2921, %v2922
        %v2924 = vrot.slane %v2923, 2
        %v2925 = vadd.f32 %v2923, %v2924
        %v2926 = vrot.slane %v2925, 1
        %v2927 = vadd.f32 %v2925, %v2926
        %v2928 = vmul.f32 %v2927, %v1355
        %v2930 = vsel %vm394, %v2928, 0
        %2932 = vmatprep.subr.mxu0 0.0
        %2933 = vmatpush1.msra.mxu0 0.0
        %2934 = vmatprep.subr.mxu0 0.0
        %2935 = vmatpush1.msra.mxu0 0.0
        %2936 = vmatprep.subr.mxu0 0.0
        %2937 = vmatpush1.msra.mxu0 0.0
        %2938 = vmatprep.subr.mxu0 0.0
        %2939 = vmatpush1.msra.mxu0 0.0
        %2940 = vmatprep.subr.mxu0 0.0
        %2941 = vmatpush1.msra.mxu0 0.0
        %2942 = vmatprep.subr.mxu0 0.0
        %2943 = vmatpush1.msra.mxu0 0.0
        %2944 = vmatprep.subr.mxu0 0.0
        %2945 = vmatpush1.msra.mxu0 0.0
        %2946 = vmatprep.subr.mxu0 0.0
        %2947 = vmatpush1.msra.mxu0 0.0
        %2948 = vmatprep.subr.mxu0 0.0
        %2949 = vmatpush1.msra.mxu0 0.0
        %2950 = vmatprep.subr.mxu0 0.0
        %2951 = vmatpush1.msra.mxu0 0.0
        %2952 = vmatprep.subr.mxu0 0.0
        %2953 = vmatpush1.msra.mxu0 0.0
        %2954 = vmatprep.subr.mxu0 0.0
        %2955 = vmatpush1.msra.mxu0 0.0
        %2956 = vmatprep.subr.mxu0 0.0
        %2957 = vmatpush1.msra.mxu0 %v1964
        %2958 = vmatprep.subr.mxu0 0.0
        %2959 = vmatpush1.msra.mxu0 %v1963
        %2960 = vmatprep.subr.mxu0 0.0
        %2961 = vmatpush1.msra.mxu0 %v1962
        %2962 = vmatprep.subr.mxu0 0.0
        %2963 = vmatpush1.msra.mxu0 %v1961
        %2964 = vmatprep.subr.mxu0 0.0
        %2965 = vmatpush2.msra.mxu0 0.0
        %2966 = vmatprep.subr.mxu0 0.0
        %2967 = vmatpush2.msra.mxu0 0.0
        %2968 = vmatprep.subr.mxu0 0.0
        %2969 = vmatpush2.msra.mxu0 0.0
        %2970 = vmatprep.subr.mxu0 0.0
        %2971 = vmatpush2.msra.mxu0 0.0
        %2972 = vmatprep.subr.mxu0 0.0
        %2973 = vmatpush2.msra.mxu0 0.0
        %2974 = vmatprep.subr.mxu0 0.0
        %2975 = vmatpush2.msra.mxu0 0.0
        %2976 = vmatprep.subr.mxu0 0.0
        %2977 = vmatpush2.msra.mxu0 0.0
        %2978 = vmatprep.subr.mxu0 0.0
        %2979 = vmatpush2.msra.mxu0 0.0
        %2980 = vmatprep.subr.mxu0 0.0
        %2981 = vmatpush2.msra.mxu0 0.0
        %2982 = vmatprep.subr.mxu0 0.0
        %2983 = vmatpush2.msra.mxu0 0.0
        %2984 = vmatprep.subr.mxu0 0.0
        %2985 = vmatpush2.msra.mxu0 0.0
        %2986 = vmatprep.subr.mxu0 0.0
        %2987 = vmatpush2.msra.mxu0 0.0
        %2988 = vmatprep.subr.mxu0 0.0
        %2989 = vmatpush2.msra.mxu0 0.0
        %2990 = vmatprep.subr.mxu0 0.0
        %2991 = vmatpush2.msra.mxu0 0.0
        %2992 = vmatprep.subr.mxu0 0.0
        %2993 = vmatpush2.msra.mxu0 0.0
        %2994 = vmatprep.subr.mxu0 0.0
        %2995 = vmatpush2.msra.mxu0 0.0
        %2996 = vmatprep.mubr.f32.mxu0 0.0
        %2997 = vmatmul.mubr.f32.gmra.mxu0 %v2930
        %v2998 = vpop.f32.mrf.mxu0
        %v2999 = vadd.f32 0.0, %v2998
        %v3000 = vpop.f32.mrf.mxu0
        %3001 = vdwg.mxu0
        %v3002 = vmax.f32 %v2999, 0.0
        %v3004 = vsel %vm721, %v3002, 0
        %3006 = vmatprep.subr.mxu0 0.0
        %3007 = vmatpush1.msra.mxu0 0.0
        %3008 = vmatprep.subr.mxu0 0.0
        %3009 = vmatpush1.msra.mxu0 0.0
        %3010 = vmatprep.subr.mxu0 0.0
        %3011 = vmatpush1.msra.mxu0 0.0
        %3012 = vmatprep.subr.mxu0 0.0
        %3013 = vmatpush1.msra.mxu0 0.0
        %3014 = vmatprep.subr.mxu0 0.0
        %3015 = vmatpush1.msra.mxu0 0.0
        %3016 = vmatprep.subr.mxu0 0.0
        %3017 = vmatpush1.msra.mxu0 0.0
        %3018 = vmatprep.subr.mxu0 0.0
        %3019 = vmatpush1.msra.mxu0 0.0
        %3020 = vmatprep.subr.mxu0 0.0
        %3021 = vmatpush1.msra.mxu0 0.0
        %3022 = vmatprep.subr.mxu0 0.0
        %3023 = vmatpush1.msra.mxu0 0.0
        %3024 = vmatprep.subr.mxu0 0.0
        %3025 = vmatpush1.msra.mxu0 0.0
        %3026 = vmatprep.subr.mxu0 0.0
        %3027 = vmatpush1.msra.mxu0 0.0
        %3028 = vmatprep.subr.mxu0 0.0
        %3029 = vmatpush1.msra.mxu0 0.0
        %3030 = vmatprep.subr.mxu0 0.0
        %3031 = vmatpush1.msra.mxu0 0.0
        %3032 = vmatprep.subr.mxu0 0.0
        %3033 = vmatpush1.msra.mxu0 0.0
        %3034 = vmatprep.subr.mxu0 0.0
        %3035 = vmatpush1.msra.mxu0 0.0
        %3036 = vmatprep.subr.mxu0 0.0
        %3037 = vmatpush1.msra.mxu0 %v1966
        %3038 = vmatprep.subr.mxu0 0.0
        %3039 = vmatpush2.msra.mxu0 0.0
        %3040 = vmatprep.subr.mxu0 0.0
        %3041 = vmatpush2.msra.mxu0 0.0
        %3042 = vmatprep.subr.mxu0 0.0
        %3043 = vmatpush2.msra.mxu0 0.0
        %3044 = vmatprep.subr.mxu0 0.0
        %3045 = vmatpush2.msra.mxu0 0.0
        %3046 = vmatprep.subr.mxu0 0.0
        %3047 = vmatpush2.msra.mxu0 0.0
        %3048 = vmatprep.subr.mxu0 0.0
        %3049 = vmatpush2.msra.mxu0 0.0
        %3050 = vmatprep.subr.mxu0 0.0
        %3051 = vmatpush2.msra.mxu0 0.0
        %3052 = vmatprep.subr.mxu0 0.0
        %3053 = vmatpush2.msra.mxu0 0.0
        %3054 = vmatprep.subr.mxu0 0.0
        %3055 = vmatpush2.msra.mxu0 0.0
        %3056 = vmatprep.subr.mxu0 0.0
        %3057 = vmatpush2.msra.mxu0 0.0
        %3058 = vmatprep.subr.mxu0 0.0
        %3059 = vmatpush2.msra.mxu0 0.0
        %3060 = vmatprep.subr.mxu0 0.0
        %3061 = vmatpush2.msra.mxu0 0.0
        %3062 = vmatprep.subr.mxu0 0.0
        %3063 = vmatpush2.msra.mxu0 0.0
        %3064 = vmatprep.subr.mxu0 0.0
        %3065 = vmatpush2.msra.mxu0 0.0
        %3066 = vmatprep.subr.mxu0 0.0
        %3067 = vmatpush2.msra.mxu0 0.0
        %3068 = vmatprep.subr.mxu0 0.0
        %3069 = vmatpush2.msra.mxu0 0.0
        %3070 = vmatprep.mubr.f32.mxu0 0.0
        %3071 = vmatmul.mubr.f32.gmra.mxu0 %v3004
        %v3072 = vpop.f32.mrf.mxu0
        %v3073 = vadd.f32 0.0, %v3072
        %v3074 = vpop.f32.mrf.mxu0
        %3075 = vdwg.mxu0
        %v3076 = vsub.f32 0.0, %v3073
        %v3077 = vmul.f32 %v3076, 1.442695
        %v3078 = vpow.pop %v3077
        %v3079 = vadd.f32 %v3078, 1.0
        %v3080 = vrcp.pop %v3079
        %v3081 = vmul.f32 1.0, %v3080
        %v3082 = vlaneseq
        %v3083 = vshrl.u32 %v3082, 7
        %v3084 = vsub.s32 0, %v3083
        %v3085 = vrot.slane %v3081, %v3084
        %v3086 = vmul.f32 %v2920, %v3085
        %v3087 = vsel %vm394, %v3086, 0.0
        %3088 = vadd.xlane.f32.xlu0 %v3087
        %v3089 = vpop.xlane.xlu0 %3088
        %v3090 = vmul.f32 %v3089, %v398
        %v3091 = vsub.f32 %v3086, %v3090
        %v3092 = vmul.f32 %v3091, %v3091
        %v3093 = vsel %vm394, %v3092, 0.0
        %3094 = vadd.xlane.f32.xlu0 %v3093
        %v3095 = vpop.xlane.xlu0 %3094
        %v3096 = vmul.f32 %v3095, %v398
        %v3097 = vadd.f32 %v3096, 1e-05
        %v3098 = vrsqrt.pop %v3097
        %v3099 = vmul.f32 %v3091, %v3098
        %v3100 = vlaneseq
        %v3101 = vshrl.u32 %v3100, 7
        %v3102 = vsub.s32 2, %v3101
        %v3103 = vrot.slane %v1957, %v3102
        %v3104 = vmul.f32 %v3099, %v3103
        %v3105 = vlaneseq
        %v3106 = vshrl.u32 %v3105, 7
        %v3107 = vsub.s32 3, %v3106
        %v3108 = vrot.slane %v1957, %v3107
        %v3109 = vadd.f32 %v3104, %v3108
        %s3110 = scalar_lea.vmem %s5, 32
        %v3111 = vld [vmem:[%s3110] sm:$0xff]
        %v3112 = vld [vmem:[%s3110 + $0x8] sm:$0xff]
        %v3113 = vld [vmem:[%s3110 + $0x10] sm:$0xff]
        %v3114 = vld [vmem:[%s3110 + $0x18] sm:$0xff]
        %v3115 = vlaneseq
        %v3116 = vshrl.u32 %v3115, 7
        %v3117 = vsub.s32 3, %v3116
        %v3118 = vrot.slane %v1959, %v3117
        %v3120 = vsel %vm394, %v3109, 0
        %3122 = vmatprep.subr.mxu0 0.0
        %3123 = vmatpush1.msra.mxu0 0.0
        %3124 = vmatprep.subr.mxu0 0.0
        %3125 = vmatpush1.msra.mxu0 0.0
        %3126 = vmatprep.subr.mxu0 0.0
        %3127 = vmatpush1.msra.mxu0 0.0
        %3128 = vmatprep.subr.mxu0 0.0
        %3129 = vmatpush1.msra.mxu0 0.0
        %3130 = vmatprep.subr.mxu0 0.0
        %3131 = vmatpush1.msra.mxu0 0.0
        %3132 = vmatprep.subr.mxu0 0.0
        %3133 = vmatpush1.msra.mxu0 0.0
        %3134 = vmatprep.subr.mxu0 0.0
        %3135 = vmatpush1.msra.mxu0 0.0
        %3136 = vmatprep.subr.mxu0 0.0
        %3137 = vmatpush1.msra.mxu0 0.0
        %3138 = vmatprep.subr.mxu0 0.0
        %3139 = vmatpush1.msra.mxu0 0.0
        %3140 = vmatprep.subr.mxu0 0.0
        %3141 = vmatpush1.msra.mxu0 0.0
        %3142 = vmatprep.subr.mxu0 0.0
        %3143 = vmatpush1.msra.mxu0 0.0
        %3144 = vmatprep.subr.mxu0 0.0
        %3145 = vmatpush1.msra.mxu0 0.0
        %3146 = vmatprep.subr.mxu0 0.0
        %3147 = vmatpush1.msra.mxu0 %v3114
        %3148 = vmatprep.subr.mxu0 0.0
        %3149 = vmatpush1.msra.mxu0 %v3113
        %3150 = vmatprep.subr.mxu0 0.0
        %3151 = vmatpush1.msra.mxu0 %v3112
        %3152 = vmatprep.subr.mxu0 0.0
        %3153 = vmatpush1.msra.mxu0 %v3111
        %3154 = vmatprep.subr.mxu0 0.0
        %3155 = vmatpush2.msra.mxu0 0.0
        %3156 = vmatprep.subr.mxu0 0.0
        %3157 = vmatpush2.msra.mxu0 0.0
        %3158 = vmatprep.subr.mxu0 0.0
        %3159 = vmatpush2.msra.mxu0 0.0
        %3160 = vmatprep.subr.mxu0 0.0
        %3161 = vmatpush2.msra.mxu0 0.0
        %3162 = vmatprep.subr.mxu0 0.0
        %3163 = vmatpush2.msra.mxu0 0.0
        %3164 = vmatprep.subr.mxu0 0.0
        %3165 = vmatpush2.msra.mxu0 0.0
        %3166 = vmatprep.subr.mxu0 0.0
        %3167 = vmatpush2.msra.mxu0 0.0
        %3168 = vmatprep.subr.mxu0 0.0
        %3169 = vmatpush2.msra.mxu0 0.0
        %3170 = vmatprep.subr.mxu0 0.0
        %3171 = vmatpush2.msra.mxu0 0.0
        %3172 = vmatprep.subr.mxu0 0.0
        %3173 = vmatpush2.msra.mxu0 0.0
        %3174 = vmatprep.subr.mxu0 0.0
        %3175 = vmatpush2.msra.mxu0 0.0
        %3176 = vmatprep.subr.mxu0 0.0
        %3177 = vmatpush2.msra.mxu0 0.0
        %3178 = vmatprep.subr.mxu0 0.0
        %3179 = vmatpush2.msra.mxu0 0.0
        %3180 = vmatprep.subr.mxu0 0.0
        %3181 = vmatpush2.msra.mxu0 0.0
        %3182 = vmatprep.subr.mxu0 0.0
        %3183 = vmatpush2.msra.mxu0 0.0
        %3184 = vmatprep.subr.mxu0 0.0
        %3185 = vmatpush2.msra.mxu0 0.0
        %3186 = vmatprep.mubr.f32.mxu0 0.0
        %3187 = vmatmul.mubr.f32.gmra.mxu0 %v3120
        %v3188 = vpop.f32.mrf.mxu0
        %v3189 = vadd.f32 %v3118, %v3188
        %v3190 = vpop.f32.mrf.mxu0
        %3191 = vdwg.mxu0
        %v3192 = vmul.f32 %v3189, 0.5
        %v3193 = vmul.f32 %v3189, 0.70710677
        %v3194 = vand.u32 2147483647, %v3193
        %v3195 = vmul.f32 %v3194, 0.3275911
        %v3196 = vadd.f32 %v3195, 1.0
        %v3197 = vrcp.pop %v3196
        %v3198 = vmul.f32 1.0, %v3197
        %v3199 = vmul.f32 %v3198, 1.0614054
        %v3200 = vadd.f32 %v3199, -1.4531521
        %v3201 = vmul.f32 %v3200, %v3198
        %v3202 = vadd.f32 %v3201, 1.4214138
        %v3203 = vmul.f32 %v3202, %v3198
        %v3204 = vadd.f32 %v3203, -0.28449672
        %v3205 = vmul.f32 %v3204, %v3198
        %v3206 = vadd.f32 %v3205, 0.2548296
        %v3207 = vmul.f32 %v3206, %v3198
        %v3208 = vsub.f32 0.0, %v3194
        %v3209 = vmul.f32 %v3208, %v3194
        %v3210 = vmul.f32 %v3209, 1.442695
        %v3211 = vpow.pop %v3210
        %v3212 = vmul.f32 %v3207, %v3211
        %v3213 = vsub.f32 1.0, %v3212
        %vm3214 = vcmp.lt.f32.partialorder %v3193, 0.0
        %v3215 = vsub.f32 0.0, %v3213
        %v3216 = vsel %vm3214, %v3215, %v3213
        %v3217 = vadd.f32 %v3216, 1.0
        %v3218 = vmul.f32 %v3192, %v3217
        %v3219 = vrot.slane %v3218, 7
        %v3220 = vsel %vm1648, %v3219, 0.0
        %v3221 = vrot.slane %v3218, 1
        %v3222 = vsel %vm1652, %v3221, 0.0
        %v3223 = vlaneseq
        %v3224 = vshrl.u32 %v3223, 7
        %v3225 = vsub.s32 0, %v3224
        %v3226 = vrot.slane %v1959, %v3225
        %v3227 = vmul.f32 %v3220, %v3226
        %v3228 = vlaneseq
        %v3229 = vshrl.u32 %v3228, 7
        %v3230 = vsub.s32 1, %v3229
        %v3231 = vrot.slane %v1959, %v3230
        %v3232 = vmul.f32 %v3218, %v3231
        %v3233 = vadd.f32 %v3227, %v3232
        %v3234 = vlaneseq
        %v3235 = vshrl.u32 %v3234, 7
        %v3236 = vsub.s32 2, %v3235
        %v3237 = vrot.slane %v1959, %v3236
        %v3238 = vmul.f32 %v3222, %v3237
        %v3239 = vadd.f32 %v3233, %v3238
        %v3240 = vlaneseq
        %v3241 = vshrl.u32 %v3240, 7
        %v3242 = vsub.s32 4, %v3241
        %v3243 = vrot.slane %v1959, %v3242
        %v3244 = vadd.f32 %v3239, %v3243
        %v3245 = vmul.f32 %v3244, 0.5
        %v3246 = vmul.f32 %v3244, 0.70710677
        %v3247 = vand.u32 2147483647, %v3246
        %v3248 = vmul.f32 %v3247, 0.3275911
        %v3249 = vadd.f32 %v3248, 1.0
        %v3250 = vrcp.pop %v3249
        %v3251 = vmul.f32 1.0, %v3250
        %v3252 = vmul.f32 %v3251, 1.0614054
        %v3253 = vadd.f32 %v3252, -1.4531521
        %v3254 = vmul.f32 %v3253, %v3251
        %v3255 = vadd.f32 %v3254, 1.4214138
        %v3256 = vmul.f32 %v3255, %v3251
        %v3257 = vadd.f32 %v3256, -0.28449672
        %v3258 = vmul.f32 %v3257, %v3251
        %v3259 = vadd.f32 %v3258, 0.2548296
        %v3260 = vmul.f32 %v3259, %v3251
        %v3261 = vsub.f32 0.0, %v3247
        %v3262 = vmul.f32 %v3261, %v3247
        %v3263 = vmul.f32 %v3262, 1.442695
        %v3264 = vpow.pop %v3263
        %v3265 = vmul.f32 %v3260, %v3264
        %v3266 = vsub.f32 1.0, %v3265
        %vm3267 = vcmp.lt.f32.partialorder %v3246, 0.0
        %v3268 = vsub.f32 0.0, %v3266
        %v3269 = vsel %vm3267, %v3268, %v3266
        %v3270 = vadd.f32 %v3269, 1.0
        %v3271 = vmul.f32 %v3245, %v3270
        %s3272 = scalar_lea.vmem %s6, 64
        %v3273 = vld [vmem:[%s3272] sm:$0xff]
        %v3274 = vld [vmem:[%s3272 + $0x8] sm:$0xff]
        %v3275 = vld [vmem:[%s3272 + $0x10] sm:$0xff]
        %v3276 = vld [vmem:[%s3272 + $0x18] sm:$0xff]
        %v3277 = vld [vmem:[%s3272 + $0x20] sm:$0xff]
        %v3278 = vld [vmem:[%s3272 + $0x28] sm:$0xff]
        %v3279 = vld [vmem:[%s3272 + $0x30] sm:$0xff]
        %v3280 = vld [vmem:[%s3272 + $0x38] sm:$0xff]
        %v3281 = vlaneseq
        %v3282 = vshrl.u32 %v3281, 7
        %v3283 = vsub.s32 5, %v3282
        %v3284 = vrot.slane %v1957, %v3283
        %v3286 = vsel %vm1715, %v3271, 0
        %3288 = vmatprep.subr.mxu0 0.0
        %3289 = vmatpush1.msra.mxu0 0.0
        %3290 = vmatprep.subr.mxu0 0.0
        %3291 = vmatpush1.msra.mxu0 0.0
        %3292 = vmatprep.subr.mxu0 0.0
        %3293 = vmatpush1.msra.mxu0 0.0
        %3294 = vmatprep.subr.mxu0 0.0
        %3295 = vmatpush1.msra.mxu0 0.0
        %3296 = vmatprep.subr.mxu0 0.0
        %3297 = vmatpush1.msra.mxu0 0.0
        %3298 = vmatprep.subr.mxu0 0.0
        %3299 = vmatpush1.msra.mxu0 0.0
        %3300 = vmatprep.subr.mxu0 0.0
        %3301 = vmatpush1.msra.mxu0 0.0
        %3302 = vmatprep.subr.mxu0 0.0
        %3303 = vmatpush1.msra.mxu0 0.0
        %3304 = vmatprep.subr.mxu0 0.0
        %3305 = vmatpush1.msra.mxu0 %v3280
        %3306 = vmatprep.subr.mxu0 0.0
        %3307 = vmatpush1.msra.mxu0 %v3279
        %3308 = vmatprep.subr.mxu0 0.0
        %3309 = vmatpush1.msra.mxu0 %v3278
        %3310 = vmatprep.subr.mxu0 0.0
        %3311 = vmatpush1.msra.mxu0 %v3277
        %3312 = vmatprep.subr.mxu0 0.0
        %3313 = vmatpush1.msra.mxu0 %v3276
        %3314 = vmatprep.subr.mxu0 0.0
        %3315 = vmatpush1.msra.mxu0 %v3275
        %3316 = vmatprep.subr.mxu0 0.0
        %3317 = vmatpush1.msra.mxu0 %v3274
        %3318 = vmatprep.subr.mxu0 0.0
        %3319 = vmatpush1.msra.mxu0 %v3273
        %3320 = vmatprep.subr.mxu0 0.0
        %3321 = vmatpush2.msra.mxu0 0.0
        %3322 = vmatprep.subr.mxu0 0.0
        %3323 = vmatpush2.msra.mxu0 0.0
        %3324 = vmatprep.subr.mxu0 0.0
        %3325 = vmatpush2.msra.mxu0 0.0
        %3326 = vmatprep.subr.mxu0 0.0
        %3327 = vmatpush2.msra.mxu0 0.0
        %3328 = vmatprep.subr.mxu0 0.0
        %3329 = vmatpush2.msra.mxu0 0.0
        %3330 = vmatprep.subr.mxu0 0.0
        %3331 = vmatpush2.msra.mxu0 0.0
        %3332 = vmatprep.subr.mxu0 0.0
        %3333 = vmatpush2.msra.mxu0 0.0
        %3334 = vmatprep.subr.mxu0 0.0
        %3335 = vmatpush2.msra.mxu0 0.0
        %3336 = vmatprep.subr.mxu0 0.0
        %3337 = vmatpush2.msra.mxu0 0.0
        %3338 = vmatprep.subr.mxu0 0.0
        %3339 = vmatpush2.msra.mxu0 0.0
        %3340 = vmatprep.subr.mxu0 0.0
        %3341 = vmatpush2.msra.mxu0 0.0
        %3342 = vmatprep.subr.mxu0 0.0
        %3343 = vmatpush2.msra.mxu0 0.0
        %3344 = vmatprep.subr.mxu0 0.0
        %3345 = vmatpush2.msra.mxu0 0.0
        %3346 = vmatprep.subr.mxu0 0.0
        %3347 = vmatpush2.msra.mxu0 0.0
        %3348 = vmatprep.subr.mxu0 0.0
        %3349 = vmatpush2.msra.mxu0 0.0
        %3350 = vmatprep.subr.mxu0 0.0
        %3351 = vmatpush2.msra.mxu0 0.0
        %3352 = vmatprep.mubr.f32.mxu0 0.0
        %3353 = vmatmul.mubr.f32.gmra.mxu0 %v3286
        %v3354 = vpop.f32.mrf.mxu0
        %v3355 = vadd.f32 %v3284, %v3354
        %v3356 = vpop.f32.mrf.mxu0
        %3357 = vdwg.mxu0
        %v3358 = vadd.f32 %v3086, %v3355
        %v3359 = vsel %vm394, %v3358, 0.0
        %v3360 = vrot.slane %v3359, 4
        %v3361 = vadd.f32 %v3359, %v3360
        %v3362 = vrot.slane %v3361, 2
        %v3363 = vadd.f32 %v3361, %v3362
        %v3364 = vrot.slane %v3363, 1
        %v3365 = vadd.f32 %v3363, %v3364
        %v3366 = vmul.f32 %v3365, %v1355
        %v3368 = vsel %vm394, %v3366, 0
        %3370 = vmatprep.subr.mxu0 0.0
        %3371 = vmatpush1.msra.mxu0 0.0
        %3372 = vmatprep.subr.mxu0 0.0
        %3373 = vmatpush1.msra.mxu0 0.0
        %3374 = vmatprep.subr.mxu0 0.0
        %3375 = vmatpush1.msra.mxu0 0.0
        %3376 = vmatprep.subr.mxu0 0.0
        %3377 = vmatpush1.msra.mxu0 0.0
        %3378 = vmatprep.subr.mxu0 0.0
        %3379 = vmatpush1.msra.mxu0 0.0
        %3380 = vmatprep.subr.mxu0 0.0
        %3381 = vmatpush1.msra.mxu0 0.0
        %3382 = vmatprep.subr.mxu0 0.0
        %3383 = vmatpush1.msra.mxu0 0.0
        %3384 = vmatprep.subr.mxu0 0.0
        %3385 = vmatpush1.msra.mxu0 0.0
        %3386 = vmatprep.subr.mxu0 0.0
        %3387 = vmatpush1.msra.mxu0 0.0
        %3388 = vmatprep.subr.mxu0 0.0
        %3389 = vmatpush1.msra.mxu0 0.0
        %3390 = vmatprep.subr.mxu0 0.0
        %3391 = vmatpush1.msra.mxu0 0.0
        %3392 = vmatprep.subr.mxu0 0.0
        %3393 = vmatpush1.msra.mxu0 0.0
        %3394 = vmatprep.subr.mxu0 0.0
        %3395 = vmatpush1.msra.mxu0 %v1964
        %3396 = vmatprep.subr.mxu0 0.0
        %3397 = vmatpush1.msra.mxu0 %v1963
        %3398 = vmatprep.subr.mxu0 0.0
        %3399 = vmatpush1.msra.mxu0 %v1962
        %3400 = vmatprep.subr.mxu0 0.0
        %3401 = vmatpush1.msra.mxu0 %v1961
        %3402 = vmatprep.subr.mxu0 0.0
        %3403 = vmatpush2.msra.mxu0 0.0
        %3404 = vmatprep.subr.mxu0 0.0
        %3405 = vmatpush2.msra.mxu0 0.0
        %3406 = vmatprep.subr.mxu0 0.0
        %3407 = vmatpush2.msra.mxu0 0.0
        %3408 = vmatprep.subr.mxu0 0.0
        %3409 = vmatpush2.msra.mxu0 0.0
        %3410 = vmatprep.subr.mxu0 0.0
        %3411 = vmatpush2.msra.mxu0 0.0
        %3412 = vmatprep.subr.mxu0 0.0
        %3413 = vmatpush2.msra.mxu0 0.0
        %3414 = vmatprep.subr.mxu0 0.0
        %3415 = vmatpush2.msra.mxu0 0.0
        %3416 = vmatprep.subr.mxu0 0.0
        %3417 = vmatpush2.msra.mxu0 0.0
        %3418 = vmatprep.subr.mxu0 0.0
        %3419 = vmatpush2.msra.mxu0 0.0
        %3420 = vmatprep.subr.mxu0 0.0
        %3421 = vmatpush2.msra.mxu0 0.0
        %3422 = vmatprep.subr.mxu0 0.0
        %3423 = vmatpush2.msra.mxu0 0.0
        %3424 = vmatprep.subr.mxu0 0.0
        %3425 = vmatpush2.msra.mxu0 0.0
        %3426 = vmatprep.subr.mxu0 0.0
        %3427 = vmatpush2.msra.mxu0 0.0
        %3428 = vmatprep.subr.mxu0 0.0
        %3429 = vmatpush2.msra.mxu0 0.0
        %3430 = vmatprep.subr.mxu0 0.0
        %3431 = vmatpush2.msra.mxu0 0.0
        %3432 = vmatprep.subr.mxu0 0.0
        %3433 = vmatpush2.msra.mxu0 0.0
        %3434 = vmatprep.mubr.f32.mxu0 0.0
        %3435 = vmatmul.mubr.f32.gmra.mxu0 %v3368
        %v3436 = vpop.f32.mrf.mxu0
        %v3437 = vadd.f32 0.0, %v3436
        %v3438 = vpop.f32.mrf.mxu0
        %3439 = vdwg.mxu0
        %v3440 = vmax.f32 %v3437, 0.0
        %v3442 = vsel %vm721, %v3440, 0
        %3444 = vmatprep.subr.mxu0 0.0
        %3445 = vmatpush1.msra.mxu0 0.0
        %3446 = vmatprep.subr.mxu0 0.0
        %3447 = vmatpush1.msra.mxu0 0.0
        %3448 = vmatprep.subr.mxu0 0.0
        %3449 = vmatpush1.msra.mxu0 0.0
        %3450 = vmatprep.subr.mxu0 0.0
        %3451 = vmatpush1.msra.mxu0 0.0
        %3452 = vmatprep.subr.mxu0 0.0
        %3453 = vmatpush1.msra.mxu0 0.0
        %3454 = vmatprep.subr.mxu0 0.0
        %3455 = vmatpush1.msra.mxu0 0.0
        %3456 = vmatprep.subr.mxu0 0.0
        %3457 = vmatpush1.msra.mxu0 0.0
        %3458 = vmatprep.subr.mxu0 0.0
        %3459 = vmatpush1.msra.mxu0 0.0
        %3460 = vmatprep.subr.mxu0 0.0
        %3461 = vmatpush1.msra.mxu0 0.0
        %3462 = vmatprep.subr.mxu0 0.0
        %3463 = vmatpush1.msra.mxu0 0.0
        %3464 = vmatprep.subr.mxu0 0.0
        %3465 = vmatpush1.msra.mxu0 0.0
        %3466 = vmatprep.subr.mxu0 0.0
        %3467 = vmatpush1.msra.mxu0 0.0
        %3468 = vmatprep.subr.mxu0 0.0
        %3469 = vmatpush1.msra.mxu0 0.0
        %3470 = vmatprep.subr.mxu0 0.0
        %3471 = vmatpush1.msra.mxu0 0.0
        %3472 = vmatprep.subr.mxu0 0.0
        %3473 = vmatpush1.msra.mxu0 0.0
        %3474 = vmatprep.subr.mxu0 0.0
        %3475 = vmatpush1.msra.mxu0 %v1966
        %3476 = vmatprep.subr.mxu0 0.0
        %3477 = vmatpush2.msra.mxu0 0.0
        %3478 = vmatprep.subr.mxu0 0.0
        %3479 = vmatpush2.msra.mxu0 0.0
        %3480 = vmatprep.subr.mxu0 0.0
        %3481 = vmatpush2.msra.mxu0 0.0
        %3482 = vmatprep.subr.mxu0 0.0
        %3483 = vmatpush2.msra.mxu0 0.0
        %3484 = vmatprep.subr.mxu0 0.0
        %3485 = vmatpush2.msra.mxu0 0.0
        %3486 = vmatprep.subr.mxu0 0.0
        %3487 = vmatpush2.msra.mxu0 0.0
        %3488 = vmatprep.subr.mxu0 0.0
        %3489 = vmatpush2.msra.mxu0 0.0
        %3490 = vmatprep.subr.mxu0 0.0
        %3491 = vmatpush2.msra.mxu0 0.0
        %3492 = vmatprep.subr.mxu0 0.0
        %3493 = vmatpush2.msra.mxu0 0.0
        %3494 = vmatprep.subr.mxu0 0.0
        %3495 = vmatpush2.msra.mxu0 0.0
        %3496 = vmatprep.subr.mxu0 0.0
        %3497 = vmatpush2.msra.mxu0 0.0
        %3498 = vmatprep.subr.mxu0 0.0
        %3499 = vmatpush2.msra.mxu0 0.0
        %3500 = vmatprep.subr.mxu0 0.0
        %3501 = vmatpush2.msra.mxu0 0.0
        %3502 = vmatprep.subr.mxu0 0.0
        %3503 = vmatpush2.msra.mxu0 0.0
        %3504 = vmatprep.subr.mxu0 0.0
        %3505 = vmatpush2.msra.mxu0 0.0
        %3506 = vmatprep.subr.mxu0 0.0
        %3507 = vmatpush2.msra.mxu0 0.0
        %3508 = vmatprep.mubr.f32.mxu0 0.0
        %3509 = vmatmul.mubr.f32.gmra.mxu0 %v3442
        %v3510 = vpop.f32.mrf.mxu0
        %v3511 = vadd.f32 0.0, %v3510
        %v3512 = vpop.f32.mrf.mxu0
        %3513 = vdwg.mxu0
        %v3514 = vsub.f32 0.0, %v3511
        %v3515 = vmul.f32 %v3514, 1.442695
        %v3516 = vpow.pop %v3515
        %v3517 = vadd.f32 %v3516, 1.0
        %v3518 = vrcp.pop %v3517
        %v3519 = vmul.f32 1.0, %v3518
        %v3520 = vlaneseq
        %v3521 = vshrl.u32 %v3520, 7
        %v3522 = vsub.s32 0, %v3521
        %v3523 = vrot.slane %v3519, %v3522
        %v3524 = vmul.f32 %v3358, %v3523
        %3525 = vst.msk [vmem:[%s377] sm:$0xff] %vm394, %v3524
        %s3526 = sand.u32 %s269, 1
        %s3527 = scalar_lea.sflag [#allocation3], %s3526
        %s3528 = sand.u32 %s269, 1
        %s3529 = smul.addr %s3528, 8
        %s3530 = scalar_lea.vmem [#allocation2], %s3529
        // Predicated region
        $region65: #{tpu_custom_call.1} parent=63 // pred_check
          %p3531 = pneg %p279
        $region66: #{tpu_custom_call.1} parent=63 // pred_check_branch
          %3533 = sbr.rel (%p3531) target = $region68
        $region67: #{tpu_custom_call.1} parent=63 // pred_region
          %s3535 = ssub.s32 128, 128
          %3536 = vsyncadd %s3527, %s3535
          %s3537 = smul.addr %s25, 128
          %s3538 = scalar_lea.hbm %s11, %s3537
          %s3540 = sshll.u32 %s3530, 4
          %s3541 = int_to_ptr.vmem [resolvable:$true] %s3540
          %3543 = dma.vmem_to_hbm [thread:$0]  %s3541, 128, %s3538, %s3527
        $region68: #{tpu_custom_call.1} parent=63 // pred_fallthru
          _
      $region64: #{tpu_custom_call.1} parent=5 // pred_fallthru
        _
      %p3544 = scmp.le.s32.totalorder 2, %s20
      // Predicated region
      $region69: #{tpu_custom_call.1} parent=5 // pred_check
        %p3545 = pneg %p3544
      $region70: #{tpu_custom_call.1} parent=5 // pred_check_branch
        %3547 = sbr.rel (%p3545) target = $region72
      $region71: #{tpu_custom_call.1} parent=5 // pred_region
        %s3548 = ssub.s32 %s20, 2
        // Predicated region
        $region73: #{tpu_custom_call.1} parent=71 // pred_check
          %p3549 = pneg %p285
        $region74: #{tpu_custom_call.1} parent=71 // pred_check_branch
          %3551 = sbr.rel (%p3549) target = $region76
        $region75: #{tpu_custom_call.1} parent=71 // pred_region
          %s3552 = sand.u32 %s270, 1
          %s3553 = scalar_lea.sflag [#allocation3], %s3552
          %s3554 = sand.u32 %s270, 1
          %s3555 = smul.addr %s3554, 8
          %s3556 = scalar_lea.vmem [#allocation2], %s3555
          %3557 = dma.done %s3553, 128
        $region76: #{tpu_custom_call.1} parent=71 // pred_fallthru
          _
      $region72: #{tpu_custom_call.1} parent=5 // pred_fallthru
        _
    $region6: #{tpu_custom_call.1} parent=1 // loop_footer
      %s24 = sadd.s32 1, %s20
    $region7: #{tpu_custom_call.1} parent=1 // loop_footer_branch
      %19 = sbr.rel target = $region3
    $region8: #{tpu_custom_call.1} parent=1 // loop_exit
      _
    %3558 = vsyncpa [#allocation3], 1
    %s3559 = scalar_lea.sflag [#allocation3], 1
    %3560 = vsyncpa %s3559, 1

</llo_original>
